<compile_context>
chip_gen: v7x
topology: tpu7x:2x2x1
jax: 0.10.0
libtpu: 0.0.40
codegen_flags: <defaults>
</compile_context>

<pallas_src>
import numpy as np

import jax
import jax.numpy as jnp
from jax import lax
from jax.experimental import pallas as pl
from jax.experimental.pallas import tpu as pltpu

# ----------------------------- configuration --------------------------------
TIME_SEC = 1
WIN = 32                       # analysis window (non-overlapping framing)
FRAMES = 64                    # spectrogram rows per 1-s example (scaled from 96)
SR = FRAMES * WIN              # 2048 synthetic samples / second
N_FREQ = WIN // 2 + 1          # 17 real-DFT bins
N_MEL = 32                     # mel bands (scaled from 64)
FC_HIDDEN = 256                # scaled from 4096
EMB_DIM = 128                  # VGGish embedding dim (kept)
OUT_FEATURES = 1
OUT_PAD = 128                  # lane-dense padded output width
OUT_ROWS = 8                   # sublane-padded output rows (unmasked (8,128) store)
LOG_EPS = 1e-2
F32 = jnp.float32
BF16 = jnp.bfloat16

assert TIME_SEC == 1

# Conv geometry: (H, W, Cin, Cout, pool_after).  Channels scaled from
# (64,128,256,256,512,512); every conv output is exactly W*Cout = 256 lanes.
CONV_DEFS = (
    (64, 32, 1,  8,  True),
    (32, 16, 8,  16, True),
    (16, 8,  16, 32, False),
    (16, 8,  32, 32, True),
    (8,  4,  32, 64, False),
    (8,  4,  64, 64, True),
)
WCO = 256                                          # W*Cout for every conv
N_FLAT_ROWS = CONV_DEFS[-1][0] // 2                # 4 rows after last pool
FLAT_ROW_W = (CONV_DEFS[-1][1] // 2) * CONV_DEFS[-1][3]   # 128 lanes per row
FLAT_DIM = N_FLAT_ROWS * FLAT_ROW_W                # 512


# ------------------------- host-side constant builders -----------------------
def _conv_tcat(w, W):
    """[3,3,Cin,Cout] -> [W*Cin, 3*W*Cout].

    3x3 'same' conv as ONE banded matmul: the three dy bands land in lane
    blocks [0:WCO), [WCO:2WCO), [2WCO:3WCO) and are recombined in-kernel with
    sublane rolls + boundary masks (H-direction padding); W-direction padding
    is encoded by the zero band edges (exact).
    """
    ci, co = w.shape[2], w.shape[3]
    t = np.zeros((3, W * ci, W * co), np.float32)
    for dy in range(3):
        for dx in range(3):
            for wo in range(W):
                wi = wo + dx - 1
                if 0 <= wi < W:
                    t[dy, wi * ci:(wi + 1) * ci, wo * co:(wo + 1) * co] = w[dy, dx]
    return np.concatenate([t[0], t[1], t[2]], axis=1)


def _even_row_selector(H):
    """[H//2, H] 0/1 matrix picking even rows (exact in bf16)."""
    e = np.zeros((H // 2, H), np.float32)
    e[np.arange(H // 2), 2 * np.arange(H // 2)] = 1.0
    return e


def _even_col_selector(W, C):
    """[W*C, (W//2)*C] 0/1 matrix picking even w-blocks (column layout w*C+c)."""
    s = np.zeros((W * C, (W // 2) * C), np.float32)
    for m in range(W // 2):
        for c in range(C):
            s[2 * m * C + c, m * C + c] = 1.0
    return s


class _SlabPacker:
    """Packs many small weight matrices into one [rows, width] slab (one DMA)."""

    def __init__(self, width):
        self.width = width
        self._rows = 0
        self._items = []
        self.layout = {}                 # name -> (row_offset, rows, cols)

    def add(self, name, arr):
        arr = np.asarray(arr, np.float32)
        r, c = arr.shape
        assert c <= self.width, (name, arr.shape)
        self.layout[name] = (self._rows, r, c)
        self._items.append((self._rows, arr))
        self._rows += -(-r // 8) * 8     # keep every entry 8-sublane aligned

    def build(self, dtype):
        slab = np.zeros((self._rows, self.width), np.float32)
        for off, a in self._items:
            slab[off:off + a.shape[0], :a.shape[1]] = a
        return jnp.asarray(slab, dtype)


# ------------------------------ parameter init -------------------------------
def init_natural_params(key):
    """Deterministic f32 'natural' parameters of the scaled-down VGGishLinear."""
    keys = iter(jax.random.split(key, 64))
    p = {}

    # Hann-windowed real-DFT matrices (the matmul form of the STFT front end).
    n = np.arange(WIN, dtype=np.float64)
    k = np.arange(N_FREQ, dtype=np.float64)
    hann = 0.5 - 0.5 * np.cos(2.0 * np.pi * n / WIN)
    ang = 2.0 * np.pi * np.outer(n, k) / WIN
    p['dft_cos'] = (hann[:, None] * np.cos(ang)).astype(np.float32)
    p['dft_sin'] = (hann[:, None] * np.sin(ang)).astype(np.float32)
    p['mel_fb'] = np.abs(np.asarray(
        jax.random.normal(next(keys), (N_FREQ, N_MEL), F32))) * 0.1

    for i, (H, W, ci, co, _pool) in enumerate(CONV_DEFS):
        w = np.asarray(jax.random.normal(next(keys), (3, 3, ci, co), F32))
        p[f'conv{i}_w'] = (w / np.sqrt(9.0 * ci)).astype(np.float32)
        p[f'conv{i}_b'] = (np.asarray(
            jax.random.normal(next(keys), (co,), F32)) * 0.01).astype(np.float32)

    def dense(fin, fout):
        w = np.asarray(jax.random.normal(next(keys), (fin, fout), F32))
        b = np.asarray(jax.random.normal(next(keys), (1, fout), F32)) * 0.01
        return (w / np.sqrt(float(fin))).astype(np.float32), b.astype(np.float32)

    p['fc1_w'], p['fc1_b'] = dense(FLAT_DIM, FC_HIDDEN)
    p['fc2_w'], p['fc2_b'] = dense(FC_HIDDEN, FC_HIDDEN)
    p['fc3_w'], p['fc3_b'] = dense(FC_HIDDEN, EMB_DIM)
    p['lin_w'], p['lin_b'] = dense(TIME_SEC * EMB_DIM, OUT_FEATURES)
    return p


def pack_params(nat):
    """Pack all weights into three bf16 slabs (3 DMAs instead of ~37)."""
    pack_a = _SlabPacker(3 * WCO)        # all conv Tcat matrices, width 768
    pack_b = _SlabPacker(WCO)            # everything else, width 256

    # Front end: cos block in lanes [0:17), sin block in lanes [128:145).
    dftc = np.zeros((WIN, 2 * 128), np.float32)
    dftc[:, :N_FREQ] = nat['dft_cos']
    dftc[:, 128:128 + N_FREQ] = nat['dft_sin']
    pack_b.add('dftc', dftc)
    mel = np.zeros((128, N_MEL), np.float32)
    mel[:N_FREQ] = nat['mel_fb']
    pack_b.add('mel_fb', mel)

    # Conv stack + pool selectors.
    for i, (H, W, _ci, co, pool) in enumerate(CONV_DEFS):
        pack_a.add(f'tcat{i}', _conv_tcat(nat[f'conv{i}_w'], W))
        pack_b.add(f'cbias{i}', np.tile(nat[f'conv{i}_b'], W)[None, :])
        if pool:
            pack_b.add(f'erow{i}', _even_row_selector(H))
            pack_b.add(f'ecol{i}', _even_col_selector(W, co))

    # FC head.  fc1 repacked so flatten(x) @ fc1_w == ONE [4,128]@[128,1024] dot
    # (lane block r holds the weights of flatten rows [128r, 128(r+1))).
    fc1_cat = np.concatenate(
        [nat['fc1_w'][r * FLAT_ROW_W:(r + 1) * FLAT_ROW_W, :]
         for r in range(N_FLAT_ROWS)], axis=1)
    pack_b.add('fc1_b', nat['fc1_b'])
    pack_b.add('fc2_w', nat['fc2_w'])
    pack_b.add('fc2_b', nat['fc2_b'])
    pack_b.add('fc3_w', nat['fc3_w'])
    pack_b.add('fc3_b', nat['fc3_b'])
    lin_w = np.zeros((TIME_SEC * EMB_DIM, OUT_PAD), np.float32)
    lin_w[:, :OUT_FEATURES] = nat['lin_w']
    lin_b = np.zeros((1, OUT_PAD), np.float32)
    lin_b[:, :OUT_FEATURES] = nat['lin_b']
    pack_b.add('lin_w', lin_w)
    pack_b.add('lin_b', lin_b)

    slabs = (pack_a.build(BF16), pack_b.build(BF16), jnp.asarray(fc1_cat, BF16))
    return slabs, (pack_a.layout, pack_b.layout)


# ------------------------------ fused kernel ---------------------------------
def make_vggish_kernel(lay_a, lay_b):
    def lda(ref, name):
        off, r, c = lay_a[name]
        return ref[off:off + r, 0:c]

    def ldb(ref, name):
        off, r, c = lay_b[name]
        return ref[off:off + r, 0:c]

    def bf(x):
        return x.astype(BF16)

    def kernel(frames_ref, slab_a_ref, slab_b_ref, fc1_ref, out_ref):
        # ---- log-mel front end: ONE padded DFT dot + ONE mel dot ----
        frames = frames_ref[...]                                     # [64, 32] f32
        y = jnp.dot(bf(frames), ldb(slab_b_ref, 'dftc'),
                    preferred_element_type=F32)                      # [64, 256]
        re, im = y[:, 0:128], y[:, 128:256]
        power = re * re + im * im                                    # cols >= N_FREQ are 0
        mel = jnp.dot(bf(power), ldb(slab_b_ref, 'mel_fb'),
                      preferred_element_type=F32)                    # [64, 32]
        x = jnp.log(jnp.maximum(mel, 0.0) + LOG_EPS)                 # [H, W*C], C=1

        # ---- conv stack: one dot per conv, rolls on the XLU, masks on the VPU ----
        for i, (H, _W, _ci, co, pool) in enumerate(CONV_DEFS):
            yc = jnp.dot(bf(x), lda(slab_a_ref, f'tcat{i}'),
                         preferred_element_type=F32)                 # [H, 3*WCO]
            y0 = yc[:, 0:WCO]            # dy=0 band  (needs input row h-1)
            y1 = yc[:, WCO:2 * WCO]      # dy=1 band  (row h)
            y2 = yc[:, 2 * WCO:3 * WCO]  # dy=2 band  (row h+1)
            row = lax.broadcasted_iota(jnp.int32, (H, WCO), 0)
            dn = jnp.where(row == 0, 0.0,
                           pltpu.roll(y0, shift=1, axis=0))          # row h <- y0[h-1]
            up = jnp.where(row == H - 1, 0.0,
                           pltpu.roll(y2, shift=H - 1, axis=0))      # row h <- y2[h+1]
            bias = ldb(slab_b_ref, f'cbias{i}').astype(F32)          # [1, WCO]
            x = jnp.maximum(dn + y1 + up + bias, 0.0)                # [H, WCO]

            if pool:
                # 2x2 max-pool: rows via roll+max then one even-row selection dot,
                # columns via lane roll+max then one even-w-block selection dot.
                m = jnp.maximum(x, pltpu.roll(x, shift=H - 1, axis=0))
                hp = jnp.dot(ldb(slab_b_ref, f'erow{i}'), bf(m),
                             preferred_element_type=F32)             # [H//2, WCO]
                cm = jnp.maximum(hp, pltpu.roll(hp, shift=WCO - co, axis=1))
                x = jnp.dot(bf(cm), ldb(slab_b_ref, f'ecol{i}'),
                            preferred_element_type=F32)              # [H//2, WCO//2]

        # ---- FC head: x is [4, 128]; NHWC row-major flatten == row-block order ----
        z = jnp.dot(bf(x), fc1_ref[...], preferred_element_type=F32)  # [4, 4*FC_HIDDEN]
        h = ldb(slab_b_ref, 'fc1_b').astype(F32)
        for r in range(N_FLAT_ROWS):
            h = h + z[r:r + 1, r * FC_HIDDEN:(r + 1) * FC_HIDDEN]
        h = jnp.maximum(h, 0.0)                                       # [1, 256]
        h = jnp.maximum(jnp.dot(bf(h), ldb(slab_b_ref, 'fc2_w'),
                                preferred_element_type=F32)
                        + ldb(slab_b_ref, 'fc2_b').astype(F32), 0.0)
        emb = jnp.maximum(jnp.dot(bf(h), ldb(slab_b_ref, 'fc3_w'),
                                  preferred_element_type=F32)
                          + ldb(slab_b_ref, 'fc3_b').astype(F32), 0.0)  # [1, 128]

        # ---- final Linear, zero-padded to 128 lanes; unmasked (8,128) store ----
        res = (jnp.dot(bf(emb), ldb(slab_b_ref, 'lin_w'),
                       preferred_element_type=F32)
               + ldb(slab_b_ref, 'lin_b').astype(F32))                # [1, OUT_PAD]
        out_ref[...] = jnp.broadcast_to(res, (OUT_ROWS, OUT_PAD)).astype(out_ref.dtype)

    return kernel


# ------------------------------- forward wrapper ------------------------------
def build_forward(layouts):
    lay_a, lay_b = layouts
    kernel = make_vggish_kernel(lay_a, lay_b)

    @jax.jit
    def forward(waveforms, slab_a, slab_b, fc1_cat):
        """waveforms: [B, TIME_SEC*SR] f32 -> [B, OUT_FEATURES] (time_sec == 1)."""
        B = waveforms.shape[0]
        frames = waveforms.reshape(B * FRAMES, WIN)   # non-overlapping framing
        out = pl.pallas_call(
            kernel,
            out_shape=jax.ShapeDtypeStruct((B * OUT_ROWS, OUT_PAD), F32),
            grid=(B,),
            in_specs=[
                pl.BlockSpec((FRAMES, WIN), lambda b: (b, 0)),      # per-example frames
                pl.BlockSpec(slab_a.shape, lambda b: (0, 0)),       # weight slabs stay
                pl.BlockSpec(slab_b.shape, lambda b: (0, 0)),       #   VMEM-resident
                pl.BlockSpec(fc1_cat.shape, lambda b: (0, 0)),
            ],
            out_specs=pl.BlockSpec((OUT_ROWS, OUT_PAD), lambda b: (b, 0)),
            compiler_params=pltpu.CompilerParams(
                dimension_semantics=("parallel",)),                 # 2x on v7x megacore
        )(frames, slab_a, slab_b, fc1_cat)
        out = out.reshape(B, OUT_ROWS, OUT_PAD)[:, 0, :OUT_FEATURES]
        return out

    return forward


# ------------------------- pure-JAX reference (for checking) ------------------
def reference_forward(waveforms, nat):
    """Independent XLA reference (lax.conv / reduce_window), same bf16-at-dot precision."""
    def bf(a):
        return jnp.asarray(a).astype(BF16)

    def one(wave):
        frames = wave.reshape(FRAMES, WIN)
        re = jnp.dot(bf(frames), bf(nat['dft_cos']), preferred_element_type=F32)
        im = jnp.dot(bf(frames), bf(nat['dft_sin']), preferred_element_type=F32)
        power = re * re + im * im
        mel = jnp.dot(bf(power), bf(nat['mel_fb']), preferred_element_type=F32)
        x = jnp.log(jnp.maximum(mel, 0.0) + LOG_EPS)
        img = x[None, :, :, None]                                   # NHWC
        for i, (_H, _W, _ci, _co, pool) in enumerate(CONV_DEFS):
            img = lax.conv_general_dilated(
                bf(img), bf(nat[f'conv{i}_w']), (1, 1), 'SAME',
                dimension_numbers=('NHWC', 'HWIO', 'NHWC'),
                preferred_element_type=F32)
            img = jnp.maximum(img + bf(nat[f'conv{i}_b']).astype(F32), 0.0)
            if pool:
                img = lax.reduce_window(img, -jnp.inf, lax.max,
                                        (1, 2, 2, 1), (1, 2, 2, 1), 'VALID')
        flat = img.reshape(1, -1)                                    # NHWC flatten
        h = jnp.maximum(jnp.dot(bf(flat), bf(nat['fc1_w']), preferred_element_type=F32)
                        + bf(nat['fc1_b']).astype(F32), 0.0)
        h = jnp.maximum(jnp.dot(bf(h), bf(nat['fc2_w']), preferred_element_type=F32)
                        + bf(nat['fc2_b']).astype(F32), 0.0)
        emb = jnp.maximum(jnp.dot(bf(h), bf(nat['fc3_w']), preferred_element_type=F32)
                          + bf(nat['fc3_b']).astype(F32), 0.0)
        out = (jnp.dot(bf(emb), bf(nat['lin_w']), preferred_element_type=F32)
               + bf(nat['lin_b']).astype(F32))
        return out[0]                                                # [OUT_FEATURES]

    return jax.vmap(one)(waveforms)


# ----------------------------------- main ------------------------------------
if __name__ == "__main__":
    root = jax.random.PRNGKey(0)
    k_param, k_data = jax.random.split(root)

    nat = init_natural_params(k_param)
    (slab_a, slab_b, fc1_cat), layouts = pack_params(nat)
    forward = build_forward(layouts)

    B = 8                                            # batch of 1-second waveforms
    waveforms = jax.random.normal(k_data, (B, TIME_SEC * SR), F32)

    out = jax.block_until_ready(forward(waveforms, slab_a, slab_b, fc1_cat))
    assert out.shape == (B, OUT_FEATURES), out.shape
    assert bool(jnp.all(jnp.isfinite(out)))

    ref = jax.block_until_ready(reference_forward(waveforms, nat))
    np.testing.assert_allclose(np.asarray(out), np.asarray(ref), rtol=2e-2, atol=2e-2)

    print("KERNEL_OK")
</pallas_src>

<mosaic_0001>
module attributes {stable_mosaic.version = 11 : i64} {
  func.func @kernel(%arg0: i32, %arg1: memref<64x32xf32, #tpu.memory_space<vmem>>, %arg2: memref<928x768xbf16, #tpu.memory_space<vmem>>, %arg3: memref<1968x256xbf16, #tpu.memory_space<vmem>>, %arg4: memref<128x1024xbf16, #tpu.memory_space<vmem>>, %arg5: memref<8x128xf32, #tpu.memory_space<vmem>>) attributes {dimension_semantics = [#tpu.dimension_semantics<parallel>], iteration_bounds = array<i64: 8>, scalar_prefetch = 0 : i64, scratch_operands = 0 : i64, tpu.core_type = #tpu.core_type<tc>, window_params = [{transform_indices = @transform_0, window_bounds = array<i64: 64, 32>}, {pipeline_mode = #tpu.pipeline_mode<synchronous>, transform_indices = @transform_1, window_bounds = array<i64: 928, 768>}, {pipeline_mode = #tpu.pipeline_mode<synchronous>, transform_indices = @transform_2, window_bounds = array<i64: 1968, 256>}, {pipeline_mode = #tpu.pipeline_mode<synchronous>, transform_indices = @transform_3, window_bounds = array<i64: 128, 1024>}, {transform_indices = @transform_4, window_bounds = array<i64: 8, 128>}]} {
    %c0 = arith.constant 0 : index
    %c0_0 = arith.constant 0 : index
    %0 = vector.load %arg1[%c0, %c0_0] : memref<64x32xf32, #tpu.memory_space<vmem>>, vector<64x32xf32>
    %1 = arith.truncf %0 : vector<64x32xf32> to vector<64x32xbf16>
    %c0_1 = arith.constant 0 : index
    %c0_2 = arith.constant 0 : index
    %2 = vector.load %arg3[%c0_1, %c0_2] : memref<1968x256xbf16, #tpu.memory_space<vmem>>, vector<32x256xbf16>
    %cst = arith.constant dense<0.000000e+00> : vector<64x256xf32>
    %3 = tpu.matmul %1, %2, %cst {dimension_numbers = #tpu.dot_dimension_numbers<[1], [0], [0], [1], [0, 0, 1, 1], [], []>} : vector<64x32xbf16>, vector<32x256xbf16>, vector<64x256xf32> -> vector<64x256xf32>
    %4 = vector.extract_strided_slice %3 {offsets = [0, 0], sizes = [64, 128], strides = [1, 1]} : vector<64x256xf32> to vector<64x128xf32>
    %5 = vector.extract_strided_slice %3 {offsets = [0, 128], sizes = [64, 128], strides = [1, 1]} : vector<64x256xf32> to vector<64x128xf32>
    %6 = arith.mulf %4, %4 : vector<64x128xf32>
    %7 = arith.mulf %5, %5 : vector<64x128xf32>
    %8 = arith.addf %6, %7 : vector<64x128xf32>
    %9 = arith.truncf %8 : vector<64x128xf32> to vector<64x128xbf16>
    %c32 = arith.constant 32 : index
    %c0_3 = arith.constant 0 : index
    %10 = vector.load %arg3[%c32, %c0_3] : memref<1968x256xbf16, #tpu.memory_space<vmem>>, vector<128x32xbf16>
    %cst_4 = arith.constant dense<0.000000e+00> : vector<64x32xf32>
    %11 = tpu.matmul %9, %10, %cst_4 {dimension_numbers = #tpu.dot_dimension_numbers<[1], [0], [0], [1], [0, 0, 1, 1], [], []>} : vector<64x128xbf16>, vector<128x32xbf16>, vector<64x32xf32> -> vector<64x32xf32>
    %cst_5 = arith.constant 0.000000e+00 : f32
    %12 = vector.broadcast %cst_5 : f32 to vector<64x32xf32>
    %13 = arith.maximumf %11, %12 : vector<64x32xf32>
    %cst_6 = arith.constant 0.00999999977 : f32
    %14 = vector.broadcast %cst_6 : f32 to vector<64x32xf32>
    %15 = arith.addf %13, %14 : vector<64x32xf32>
    %16 = math.log %15 : vector<64x32xf32>
    %17 = arith.truncf %16 : vector<64x32xf32> to vector<64x32xbf16>
    %c0_7 = arith.constant 0 : index
    %c0_8 = arith.constant 0 : index
    %18 = vector.load %arg2[%c0_7, %c0_8] : memref<928x768xbf16, #tpu.memory_space<vmem>>, vector<32x768xbf16>
    %cst_9 = arith.constant dense<0.000000e+00> : vector<64x768xf32>
    %19 = tpu.matmul %17, %18, %cst_9 {dimension_numbers = #tpu.dot_dimension_numbers<[1], [0], [0], [1], [0, 0, 1, 1], [], []>} : vector<64x32xbf16>, vector<32x768xbf16>, vector<64x768xf32> -> vector<64x768xf32>
    %20 = vector.extract_strided_slice %19 {offsets = [0, 0], sizes = [64, 256], strides = [1, 1]} : vector<64x768xf32> to vector<64x256xf32>
    %21 = vector.extract_strided_slice %19 {offsets = [0, 256], sizes = [64, 256], strides = [1, 1]} : vector<64x768xf32> to vector<64x256xf32>
    %22 = vector.extract_strided_slice %19 {offsets = [0, 512], sizes = [64, 256], strides = [1, 1]} : vector<64x768xf32> to vector<64x256xf32>
    %23 = tpu.iota {dimensions = array<i32: 0>} : vector<64x256xi32>
    %c0_i32 = arith.constant 0 : i32
    %24 = vector.broadcast %c0_i32 : i32 to vector<64x256xi32>
    %25 = arith.cmpi eq, %23, %24 : vector<64x256xi32>
    %c1_i32 = arith.constant 1 : i32
    %26 = tpu.dynamic_rotate %20 by %c1_i32 dim 0 : vector<64x256xf32>, i32 -> vector<64x256xf32>
    %cst_10 = arith.constant 0.000000e+00 : f32
    %27 = vector.broadcast %cst_10 : f32 to vector<64x256xf32>
    %28 = arith.select %25, %27, %26 : vector<64x256xi1>, vector<64x256xf32>
    %c63_i32 = arith.constant 63 : i32
    %29 = vector.broadcast %c63_i32 : i32 to vector<64x256xi32>
    %30 = arith.cmpi eq, %23, %29 : vector<64x256xi32>
    %c63_i32_11 = arith.constant 63 : i32
    %31 = tpu.dynamic_rotate %22 by %c63_i32_11 dim 0 : vector<64x256xf32>, i32 -> vector<64x256xf32>
    %cst_12 = arith.constant 0.000000e+00 : f32
    %32 = vector.broadcast %cst_12 : f32 to vector<64x256xf32>
    %33 = arith.select %30, %32, %31 : vector<64x256xi1>, vector<64x256xf32>
    %c160 = arith.constant 160 : index
    %c0_13 = arith.constant 0 : index
    %34 = vector.load %arg3[%c160, %c0_13] : memref<1968x256xbf16, #tpu.memory_space<vmem>>, vector<1x256xbf16>
    %35 = arith.extf %34 : vector<1x256xbf16> to vector<1x256xf32>
    %36 = arith.addf %28, %21 : vector<64x256xf32>
    %37 = arith.addf %36, %33 : vector<64x256xf32>
    %38 = vector.broadcast %35 : vector<1x256xf32> to vector<64x256xf32>
    %39 = arith.addf %37, %38 : vector<64x256xf32>
    %cst_14 = arith.constant 0.000000e+00 : f32
    %40 = vector.broadcast %cst_14 : f32 to vector<64x256xf32>
    %41 = arith.maximumf %39, %40 : vector<64x256xf32>
    %c63_i32_15 = arith.constant 63 : i32
    %42 = tpu.dynamic_rotate %41 by %c63_i32_15 dim 0 : vector<64x256xf32>, i32 -> vector<64x256xf32>
    %43 = arith.maximumf %41, %42 : vector<64x256xf32>
    %c168 = arith.constant 168 : index
    %c0_16 = arith.constant 0 : index
    %44 = vector.load %arg3[%c168, %c0_16] : memref<1968x256xbf16, #tpu.memory_space<vmem>>, vector<32x64xbf16>
    %45 = arith.truncf %43 : vector<64x256xf32> to vector<64x256xbf16>
    %cst_17 = arith.constant dense<0.000000e+00> : vector<32x256xf32>
    %46 = tpu.matmul %44, %45, %cst_17 {dimension_numbers = #tpu.dot_dimension_numbers<[1], [0], [0], [1], [0, 0, 1, 1], [], []>} : vector<32x64xbf16>, vector<64x256xbf16>, vector<32x256xf32> -> vector<32x256xf32>
    %c248_i32 = arith.constant 248 : i32
    %47 = tpu.dynamic_rotate %46 by %c248_i32 dim 1 : vector<32x256xf32>, i32 -> vector<32x256xf32>
    %48 = arith.maximumf %46, %47 : vector<32x256xf32>
    %49 = arith.truncf %48 : vector<32x256xf32> to vector<32x256xbf16>
    %c200 = arith.constant 200 : index
    %c0_18 = arith.constant 0 : index
    %50 = vector.load %arg3[%c200, %c0_18] : memref<1968x256xbf16, #tpu.memory_space<vmem>>, vector<256x128xbf16>
    %cst_19 = arith.constant dense<0.000000e+00> : vector<32x128xf32>
    %51 = tpu.matmul %49, %50, %cst_19 {dimension_numbers = #tpu.dot_dimension_numbers<[1], [0], [0], [1], [0, 0, 1, 1], [], []>} : vector<32x256xbf16>, vector<256x128xbf16>, vector<32x128xf32> -> vector<32x128xf32>
    %52 = arith.truncf %51 : vector<32x128xf32> to vector<32x128xbf16>
    %c32_20 = arith.constant 32 : index
    %c0_21 = arith.constant 0 : index
    %53 = vector.load %arg2[%c32_20, %c0_21] : memref<928x768xbf16, #tpu.memory_space<vmem>>, vector<128x768xbf16>
    %cst_22 = arith.constant dense<0.000000e+00> : vector<32x768xf32>
    %54 = tpu.matmul %52, %53, %cst_22 {dimension_numbers = #tpu.dot_dimension_numbers<[1], [0], [0], [1], [0, 0, 1, 1], [], []>} : vector<32x128xbf16>, vector<128x768xbf16>, vector<32x768xf32> -> vector<32x768xf32>
    %55 = vector.extract_strided_slice %54 {offsets = [0, 0], sizes = [32, 256], strides = [1, 1]} : vector<32x768xf32> to vector<32x256xf32>
    %56 = vector.extract_strided_slice %54 {offsets = [0, 256], sizes = [32, 256], strides = [1, 1]} : vector<32x768xf32> to vector<32x256xf32>
    %57 = vector.extract_strided_slice %54 {offsets = [0, 512], sizes = [32, 256], strides = [1, 1]} : vector<32x768xf32> to vector<32x256xf32>
    %58 = tpu.iota {dimensions = array<i32: 0>} : vector<32x256xi32>
    %c0_i32_23 = arith.constant 0 : i32
    %59 = vector.broadcast %c0_i32_23 : i32 to vector<32x256xi32>
    %60 = arith.cmpi eq, %58, %59 : vector<32x256xi32>
    %c1_i32_24 = arith.constant 1 : i32
    %61 = tpu.dynamic_rotate %55 by %c1_i32_24 dim 0 : vector<32x256xf32>, i32 -> vector<32x256xf32>
    %cst_25 = arith.constant 0.000000e+00 : f32
    %62 = vector.broadcast %cst_25 : f32 to vector<32x256xf32>
    %63 = arith.select %60, %62, %61 : vector<32x256xi1>, vector<32x256xf32>
    %c31_i32 = arith.constant 31 : i32
    %64 = vector.broadcast %c31_i32 : i32 to vector<32x256xi32>
    %65 = arith.cmpi eq, %58, %64 : vector<32x256xi32>
    %c31_i32_26 = arith.constant 31 : i32
    %66 = tpu.dynamic_rotate %57 by %c31_i32_26 dim 0 : vector<32x256xf32>, i32 -> vector<32x256xf32>
    %cst_27 = arith.constant 0.000000e+00 : f32
    %67 = vector.broadcast %cst_27 : f32 to vector<32x256xf32>
    %68 = arith.select %65, %67, %66 : vector<32x256xi1>, vector<32x256xf32>
    %c456 = arith.constant 456 : index
    %c0_28 = arith.constant 0 : index
    %69 = vector.load %arg3[%c456, %c0_28] : memref<1968x256xbf16, #tpu.memory_space<vmem>>, vector<1x256xbf16>
    %70 = arith.extf %69 : vector<1x256xbf16> to vector<1x256xf32>
    %71 = arith.addf %63, %56 : vector<32x256xf32>
    %72 = arith.addf %71, %68 : vector<32x256xf32>
    %73 = vector.broadcast %70 : vector<1x256xf32> to vector<32x256xf32>
    %74 = arith.addf %72, %73 : vector<32x256xf32>
    %cst_29 = arith.constant 0.000000e+00 : f32
    %75 = vector.broadcast %cst_29 : f32 to vector<32x256xf32>
    %76 = arith.maximumf %74, %75 : vector<32x256xf32>
    %c31_i32_30 = arith.constant 31 : i32
    %77 = tpu.dynamic_rotate %76 by %c31_i32_30 dim 0 : vector<32x256xf32>, i32 -> vector<32x256xf32>
    %78 = arith.maximumf %76, %77 : vector<32x256xf32>
    %c464 = arith.constant 464 : index
    %c0_31 = arith.constant 0 : index
    %79 = vector.load %arg3[%c464, %c0_31] : memref<1968x256xbf16, #tpu.memory_space<vmem>>, vector<16x32xbf16>
    %80 = arith.truncf %78 : vector<32x256xf32> to vector<32x256xbf16>
    %cst_32 = arith.constant dense<0.000000e+00> : vector<16x256xf32>
    %81 = tpu.matmul %79, %80, %cst_32 {dimension_numbers = #tpu.dot_dimension_numbers<[1], [0], [0], [1], [0, 0, 1, 1], [], []>} : vector<16x32xbf16>, vector<32x256xbf16>, vector<16x256xf32> -> vector<16x256xf32>
    %c240_i32 = arith.constant 240 : i32
    %82 = tpu.dynamic_rotate %81 by %c240_i32 dim 1 : vector<16x256xf32>, i32 -> vector<16x256xf32>
    %83 = arith.maximumf %81, %82 : vector<16x256xf32>
    %84 = arith.truncf %83 : vector<16x256xf32> to vector<16x256xbf16>
    %c480 = arith.constant 480 : index
    %c0_33 = arith.constant 0 : index
    %85 = vector.load %arg3[%c480, %c0_33] : memref<1968x256xbf16, #tpu.memory_space<vmem>>, vector<256x128xbf16>
    %cst_34 = arith.constant dense<0.000000e+00> : vector<16x128xf32>
    %86 = tpu.matmul %84, %85, %cst_34 {dimension_numbers = #tpu.dot_dimension_numbers<[1], [0], [0], [1], [0, 0, 1, 1], [], []>} : vector<16x256xbf16>, vector<256x128xbf16>, vector<16x128xf32> -> vector<16x128xf32>
    %87 = arith.truncf %86 : vector<16x128xf32> to vector<16x128xbf16>
    %c160_35 = arith.constant 160 : index
    %c0_36 = arith.constant 0 : index
    %88 = vector.load %arg2[%c160_35, %c0_36] : memref<928x768xbf16, #tpu.memory_space<vmem>>, vector<128x768xbf16>
    %cst_37 = arith.constant dense<0.000000e+00> : vector<16x768xf32>
    %89 = tpu.matmul %87, %88, %cst_37 {dimension_numbers = #tpu.dot_dimension_numbers<[1], [0], [0], [1], [0, 0, 1, 1], [], []>} : vector<16x128xbf16>, vector<128x768xbf16>, vector<16x768xf32> -> vector<16x768xf32>
    %90 = vector.extract_strided_slice %89 {offsets = [0, 0], sizes = [16, 256], strides = [1, 1]} : vector<16x768xf32> to vector<16x256xf32>
    %91 = vector.extract_strided_slice %89 {offsets = [0, 256], sizes = [16, 256], strides = [1, 1]} : vector<16x768xf32> to vector<16x256xf32>
    %92 = vector.extract_strided_slice %89 {offsets = [0, 512], sizes = [16, 256], strides = [1, 1]} : vector<16x768xf32> to vector<16x256xf32>
    %93 = tpu.iota {dimensions = array<i32: 0>} : vector<16x256xi32>
    %c0_i32_38 = arith.constant 0 : i32
    %94 = vector.broadcast %c0_i32_38 : i32 to vector<16x256xi32>
    %95 = arith.cmpi eq, %93, %94 : vector<16x256xi32>
    %c1_i32_39 = arith.constant 1 : i32
    %96 = tpu.dynamic_rotate %90 by %c1_i32_39 dim 0 : vector<16x256xf32>, i32 -> vector<16x256xf32>
    %cst_40 = arith.constant 0.000000e+00 : f32
    %97 = vector.broadcast %cst_40 : f32 to vector<16x256xf32>
    %98 = arith.select %95, %97, %96 : vector<16x256xi1>, vector<16x256xf32>
    %c15_i32 = arith.constant 15 : i32
    %99 = vector.broadcast %c15_i32 : i32 to vector<16x256xi32>
    %100 = arith.cmpi eq, %93, %99 : vector<16x256xi32>
    %c15_i32_41 = arith.constant 15 : i32
    %101 = tpu.dynamic_rotate %92 by %c15_i32_41 dim 0 : vector<16x256xf32>, i32 -> vector<16x256xf32>
    %cst_42 = arith.constant 0.000000e+00 : f32
    %102 = vector.broadcast %cst_42 : f32 to vector<16x256xf32>
    %103 = arith.select %100, %102, %101 : vector<16x256xi1>, vector<16x256xf32>
    %c736 = arith.constant 736 : index
    %c0_43 = arith.constant 0 : index
    %104 = vector.load %arg3[%c736, %c0_43] : memref<1968x256xbf16, #tpu.memory_space<vmem>>, vector<1x256xbf16>
    %105 = arith.extf %104 : vector<1x256xbf16> to vector<1x256xf32>
    %106 = arith.addf %98, %91 : vector<16x256xf32>
    %107 = arith.addf %106, %103 : vector<16x256xf32>
    %108 = vector.broadcast %105 : vector<1x256xf32> to vector<16x256xf32>
    %109 = arith.addf %107, %108 : vector<16x256xf32>
    %cst_44 = arith.constant 0.000000e+00 : f32
    %110 = vector.broadcast %cst_44 : f32 to vector<16x256xf32>
    %111 = arith.maximumf %109, %110 : vector<16x256xf32>
    %112 = arith.truncf %111 : vector<16x256xf32> to vector<16x256xbf16>
    %c288 = arith.constant 288 : index
    %c0_45 = arith.constant 0 : index
    %113 = vector.load %arg2[%c288, %c0_45] : memref<928x768xbf16, #tpu.memory_space<vmem>>, vector<256x768xbf16>
    %cst_46 = arith.constant dense<0.000000e+00> : vector<16x768xf32>
    %114 = tpu.matmul %112, %113, %cst_46 {dimension_numbers = #tpu.dot_dimension_numbers<[1], [0], [0], [1], [0, 0, 1, 1], [], []>} : vector<16x256xbf16>, vector<256x768xbf16>, vector<16x768xf32> -> vector<16x768xf32>
    %115 = vector.extract_strided_slice %114 {offsets = [0, 0], sizes = [16, 256], strides = [1, 1]} : vector<16x768xf32> to vector<16x256xf32>
    %116 = vector.extract_strided_slice %114 {offsets = [0, 256], sizes = [16, 256], strides = [1, 1]} : vector<16x768xf32> to vector<16x256xf32>
    %117 = vector.extract_strided_slice %114 {offsets = [0, 512], sizes = [16, 256], strides = [1, 1]} : vector<16x768xf32> to vector<16x256xf32>
    %118 = tpu.iota {dimensions = array<i32: 0>} : vector<16x256xi32>
    %c0_i32_47 = arith.constant 0 : i32
    %119 = vector.broadcast %c0_i32_47 : i32 to vector<16x256xi32>
    %120 = arith.cmpi eq, %118, %119 : vector<16x256xi32>
    %c1_i32_48 = arith.constant 1 : i32
    %121 = tpu.dynamic_rotate %115 by %c1_i32_48 dim 0 : vector<16x256xf32>, i32 -> vector<16x256xf32>
    %cst_49 = arith.constant 0.000000e+00 : f32
    %122 = vector.broadcast %cst_49 : f32 to vector<16x256xf32>
    %123 = arith.select %120, %122, %121 : vector<16x256xi1>, vector<16x256xf32>
    %c15_i32_50 = arith.constant 15 : i32
    %124 = vector.broadcast %c15_i32_50 : i32 to vector<16x256xi32>
    %125 = arith.cmpi eq, %118, %124 : vector<16x256xi32>
    %c15_i32_51 = arith.constant 15 : i32
    %126 = tpu.dynamic_rotate %117 by %c15_i32_51 dim 0 : vector<16x256xf32>, i32 -> vector<16x256xf32>
    %cst_52 = arith.constant 0.000000e+00 : f32
    %127 = vector.broadcast %cst_52 : f32 to vector<16x256xf32>
    %128 = arith.select %125, %127, %126 : vector<16x256xi1>, vector<16x256xf32>
    %c744 = arith.constant 744 : index
    %c0_53 = arith.constant 0 : index
    %129 = vector.load %arg3[%c744, %c0_53] : memref<1968x256xbf16, #tpu.memory_space<vmem>>, vector<1x256xbf16>
    %130 = arith.extf %129 : vector<1x256xbf16> to vector<1x256xf32>
    %131 = arith.addf %123, %116 : vector<16x256xf32>
    %132 = arith.addf %131, %128 : vector<16x256xf32>
    %133 = vector.broadcast %130 : vector<1x256xf32> to vector<16x256xf32>
    %134 = arith.addf %132, %133 : vector<16x256xf32>
    %cst_54 = arith.constant 0.000000e+00 : f32
    %135 = vector.broadcast %cst_54 : f32 to vector<16x256xf32>
    %136 = arith.maximumf %134, %135 : vector<16x256xf32>
    %c15_i32_55 = arith.constant 15 : i32
    %137 = tpu.dynamic_rotate %136 by %c15_i32_55 dim 0 : vector<16x256xf32>, i32 -> vector<16x256xf32>
    %138 = arith.maximumf %136, %137 : vector<16x256xf32>
    %c752 = arith.constant 752 : index
    %c0_56 = arith.constant 0 : index
    %139 = vector.load %arg3[%c752, %c0_56] : memref<1968x256xbf16, #tpu.memory_space<vmem>>, vector<8x16xbf16>
    %140 = arith.truncf %138 : vector<16x256xf32> to vector<16x256xbf16>
    %cst_57 = arith.constant dense<0.000000e+00> : vector<8x256xf32>
    %141 = tpu.matmul %139, %140, %cst_57 {dimension_numbers = #tpu.dot_dimension_numbers<[1], [0], [0], [1], [0, 0, 1, 1], [], []>} : vector<8x16xbf16>, vector<16x256xbf16>, vector<8x256xf32> -> vector<8x256xf32>
    %c224_i32 = arith.constant 224 : i32
    %142 = tpu.dynamic_rotate %141 by %c224_i32 dim 1 : vector<8x256xf32>, i32 -> vector<8x256xf32>
    %143 = arith.maximumf %141, %142 : vector<8x256xf32>
    %144 = arith.truncf %143 : vector<8x256xf32> to vector<8x256xbf16>
    %c760 = arith.constant 760 : index
    %c0_58 = arith.constant 0 : index
    %145 = vector.load %arg3[%c760, %c0_58] : memref<1968x256xbf16, #tpu.memory_space<vmem>>, vector<256x128xbf16>
    %cst_59 = arith.constant dense<0.000000e+00> : vector<8x128xf32>
    %146 = tpu.matmul %144, %145, %cst_59 {dimension_numbers = #tpu.dot_dimension_numbers<[1], [0], [0], [1], [0, 0, 1, 1], [], []>} : vector<8x256xbf16>, vector<256x128xbf16>, vector<8x128xf32> -> vector<8x128xf32>
    %147 = arith.truncf %146 : vector<8x128xf32> to vector<8x128xbf16>
    %c544 = arith.constant 544 : index
    %c0_60 = arith.constant 0 : index
    %148 = vector.load %arg2[%c544, %c0_60] : memref<928x768xbf16, #tpu.memory_space<vmem>>, vector<128x768xbf16>
    %cst_61 = arith.constant dense<0.000000e+00> : vector<8x768xf32>
    %149 = tpu.matmul %147, %148, %cst_61 {dimension_numbers = #tpu.dot_dimension_numbers<[1], [0], [0], [1], [0, 0, 1, 1], [], []>} : vector<8x128xbf16>, vector<128x768xbf16>, vector<8x768xf32> -> vector<8x768xf32>
    %150 = vector.extract_strided_slice %149 {offsets = [0, 0], sizes = [8, 256], strides = [1, 1]} : vector<8x768xf32> to vector<8x256xf32>
    %151 = vector.extract_strided_slice %149 {offsets = [0, 256], sizes = [8, 256], strides = [1, 1]} : vector<8x768xf32> to vector<8x256xf32>
    %152 = vector.extract_strided_slice %149 {offsets = [0, 512], sizes = [8, 256], strides = [1, 1]} : vector<8x768xf32> to vector<8x256xf32>
    %153 = tpu.iota {dimensions = array<i32: 0>} : vector<8x256xi32>
    %c0_i32_62 = arith.constant 0 : i32
    %154 = vector.broadcast %c0_i32_62 : i32 to vector<8x256xi32>
    %155 = arith.cmpi eq, %153, %154 : vector<8x256xi32>
    %c1_i32_63 = arith.constant 1 : i32
    %156 = tpu.dynamic_rotate %150 by %c1_i32_63 dim 0 : vector<8x256xf32>, i32 -> vector<8x256xf32>
    %cst_64 = arith.constant 0.000000e+00 : f32
    %157 = vector.broadcast %cst_64 : f32 to vector<8x256xf32>
    %158 = arith.select %155, %157, %156 : vector<8x256xi1>, vector<8x256xf32>
    %c7_i32 = arith.constant 7 : i32
    %159 = vector.broadcast %c7_i32 : i32 to vector<8x256xi32>
    %160 = arith.cmpi eq, %153, %159 : vector<8x256xi32>
    %c7_i32_65 = arith.constant 7 : i32
    %161 = tpu.dynamic_rotate %152 by %c7_i32_65 dim 0 : vector<8x256xf32>, i32 -> vector<8x256xf32>
    %cst_66 = arith.constant 0.000000e+00 : f32
    %162 = vector.broadcast %cst_66 : f32 to vector<8x256xf32>
    %163 = arith.select %160, %162, %161 : vector<8x256xi1>, vector<8x256xf32>
    %c1016 = arith.constant 1016 : index
    %c0_67 = arith.constant 0 : index
    %164 = vector.load %arg3[%c1016, %c0_67] : memref<1968x256xbf16, #tpu.memory_space<vmem>>, vector<1x256xbf16>
    %165 = arith.extf %164 : vector<1x256xbf16> to vector<1x256xf32>
    %166 = arith.addf %158, %151 : vector<8x256xf32>
    %167 = arith.addf %166, %163 : vector<8x256xf32>
    %168 = vector.broadcast %165 : vector<1x256xf32> to vector<8x256xf32>
    %169 = arith.addf %167, %168 : vector<8x256xf32>
    %cst_68 = arith.constant 0.000000e+00 : f32
    %170 = vector.broadcast %cst_68 : f32 to vector<8x256xf32>
    %171 = arith.maximumf %169, %170 : vector<8x256xf32>
    %172 = arith.truncf %171 : vector<8x256xf32> to vector<8x256xbf16>
    %c672 = arith.constant 672 : index
    %c0_69 = arith.constant 0 : index
    %173 = vector.load %arg2[%c672, %c0_69] : memref<928x768xbf16, #tpu.memory_space<vmem>>, vector<256x768xbf16>
    %cst_70 = arith.constant dense<0.000000e+00> : vector<8x768xf32>
    %174 = tpu.matmul %172, %173, %cst_70 {dimension_numbers = #tpu.dot_dimension_numbers<[1], [0], [0], [1], [0, 0, 1, 1], [], []>} : vector<8x256xbf16>, vector<256x768xbf16>, vector<8x768xf32> -> vector<8x768xf32>
    %175 = vector.extract_strided_slice %174 {offsets = [0, 0], sizes = [8, 256], strides = [1, 1]} : vector<8x768xf32> to vector<8x256xf32>
    %176 = vector.extract_strided_slice %174 {offsets = [0, 256], sizes = [8, 256], strides = [1, 1]} : vector<8x768xf32> to vector<8x256xf32>
    %177 = vector.extract_strided_slice %174 {offsets = [0, 512], sizes = [8, 256], strides = [1, 1]} : vector<8x768xf32> to vector<8x256xf32>
    %178 = tpu.iota {dimensions = array<i32: 0>} : vector<8x256xi32>
    %c0_i32_71 = arith.constant 0 : i32
    %179 = vector.broadcast %c0_i32_71 : i32 to vector<8x256xi32>
    %180 = arith.cmpi eq, %178, %179 : vector<8x256xi32>
    %c1_i32_72 = arith.constant 1 : i32
    %181 = tpu.dynamic_rotate %175 by %c1_i32_72 dim 0 : vector<8x256xf32>, i32 -> vector<8x256xf32>
    %cst_73 = arith.constant 0.000000e+00 : f32
    %182 = vector.broadcast %cst_73 : f32 to vector<8x256xf32>
    %183 = arith.select %180, %182, %181 : vector<8x256xi1>, vector<8x256xf32>
    %c7_i32_74 = arith.constant 7 : i32
    %184 = vector.broadcast %c7_i32_74 : i32 to vector<8x256xi32>
    %185 = arith.cmpi eq, %178, %184 : vector<8x256xi32>
    %c7_i32_75 = arith.constant 7 : i32
    %186 = tpu.dynamic_rotate %177 by %c7_i32_75 dim 0 : vector<8x256xf32>, i32 -> vector<8x256xf32>
    %cst_76 = arith.constant 0.000000e+00 : f32
    %187 = vector.broadcast %cst_76 : f32 to vector<8x256xf32>
    %188 = arith.select %185, %187, %186 : vector<8x256xi1>, vector<8x256xf32>
    %c1024 = arith.constant 1024 : index
    %c0_77 = arith.constant 0 : index
    %189 = vector.load %arg3[%c1024, %c0_77] : memref<1968x256xbf16, #tpu.memory_space<vmem>>, vector<1x256xbf16>
    %190 = arith.extf %189 : vector<1x256xbf16> to vector<1x256xf32>
    %191 = arith.addf %183, %176 : vector<8x256xf32>
    %192 = arith.addf %191, %188 : vector<8x256xf32>
    %193 = vector.broadcast %190 : vector<1x256xf32> to vector<8x256xf32>
    %194 = arith.addf %192, %193 : vector<8x256xf32>
    %cst_78 = arith.constant 0.000000e+00 : f32
    %195 = vector.broadcast %cst_78 : f32 to vector<8x256xf32>
    %196 = arith.maximumf %194, %195 : vector<8x256xf32>
    %c7_i32_79 = arith.constant 7 : i32
    %197 = tpu.dynamic_rotate %196 by %c7_i32_79 dim 0 : vector<8x256xf32>, i32 -> vector<8x256xf32>
    %198 = arith.maximumf %196, %197 : vector<8x256xf32>
    %c1032 = arith.constant 1032 : index
    %c0_80 = arith.constant 0 : index
    %199 = vector.load %arg3[%c1032, %c0_80] : memref<1968x256xbf16, #tpu.memory_space<vmem>>, vector<4x8xbf16>
    %200 = arith.truncf %198 : vector<8x256xf32> to vector<8x256xbf16>
    %cst_81 = arith.constant dense<0.000000e+00> : vector<4x256xf32>
    %201 = tpu.matmul %199, %200, %cst_81 {dimension_numbers = #tpu.dot_dimension_numbers<[1], [0], [0], [1], [0, 0, 1, 1], [], []>} : vector<4x8xbf16>, vector<8x256xbf16>, vector<4x256xf32> -> vector<4x256xf32>
    %c192_i32 = arith.constant 192 : i32
    %202 = tpu.dynamic_rotate %201 by %c192_i32 dim 1 : vector<4x256xf32>, i32 -> vector<4x256xf32>
    %203 = arith.maximumf %201, %202 : vector<4x256xf32>
    %204 = arith.truncf %203 : vector<4x256xf32> to vector<4x256xbf16>
    %c1040 = arith.constant 1040 : index
    %c0_82 = arith.constant 0 : index
    %205 = vector.load %arg3[%c1040, %c0_82] : memref<1968x256xbf16, #tpu.memory_space<vmem>>, vector<256x128xbf16>
    %cst_83 = arith.constant dense<0.000000e+00> : vector<4x128xf32>
    %206 = tpu.matmul %204, %205, %cst_83 {dimension_numbers = #tpu.dot_dimension_numbers<[1], [0], [0], [1], [0, 0, 1, 1], [], []>} : vector<4x256xbf16>, vector<256x128xbf16>, vector<4x128xf32> -> vector<4x128xf32>
    %207 = arith.truncf %206 : vector<4x128xf32> to vector<4x128xbf16>
    %c0_84 = arith.constant 0 : index
    %c0_85 = arith.constant 0 : index
    %208 = vector.load %arg4[%c0_84, %c0_85] : memref<128x1024xbf16, #tpu.memory_space<vmem>>, vector<128x1024xbf16>
    %cst_86 = arith.constant dense<0.000000e+00> : vector<4x1024xf32>
    %209 = tpu.matmul %207, %208, %cst_86 {dimension_numbers = #tpu.dot_dimension_numbers<[1], [0], [0], [1], [0, 0, 1, 1], [], []>} : vector<4x128xbf16>, vector<128x1024xbf16>, vector<4x1024xf32> -> vector<4x1024xf32>
    %c1296 = arith.constant 1296 : index
    %c0_87 = arith.constant 0 : index
    %210 = vector.load %arg3[%c1296, %c0_87] : memref<1968x256xbf16, #tpu.memory_space<vmem>>, vector<1x256xbf16>
    %211 = arith.extf %210 : vector<1x256xbf16> to vector<1x256xf32>
    %212 = vector.extract_strided_slice %209 {offsets = [0, 0], sizes = [1, 256], strides = [1, 1]} : vector<4x1024xf32> to vector<1x256xf32>
    %213 = arith.addf %211, %212 : vector<1x256xf32>
    %214 = vector.extract_strided_slice %209 {offsets = [1, 256], sizes = [1, 256], strides = [1, 1]} : vector<4x1024xf32> to vector<1x256xf32>
    %215 = arith.addf %213, %214 : vector<1x256xf32>
    %216 = vector.extract_strided_slice %209 {offsets = [2, 512], sizes = [1, 256], strides = [1, 1]} : vector<4x1024xf32> to vector<1x256xf32>
    %217 = arith.addf %215, %216 : vector<1x256xf32>
    %218 = vector.extract_strided_slice %209 {offsets = [3, 768], sizes = [1, 256], strides = [1, 1]} : vector<4x1024xf32> to vector<1x256xf32>
    %219 = arith.addf %217, %218 : vector<1x256xf32>
    %cst_88 = arith.constant 0.000000e+00 : f32
    %220 = vector.broadcast %cst_88 : f32 to vector<1x256xf32>
    %221 = arith.maximumf %219, %220 : vector<1x256xf32>
    %222 = arith.truncf %221 : vector<1x256xf32> to vector<1x256xbf16>
    %c1304 = arith.constant 1304 : index
    %c0_89 = arith.constant 0 : index
    %223 = vector.load %arg3[%c1304, %c0_89] : memref<1968x256xbf16, #tpu.memory_space<vmem>>, vector<256x256xbf16>
    %cst_90 = arith.constant dense<0.000000e+00> : vector<1x256xf32>
    %224 = tpu.matmul %222, %223, %cst_90 {dimension_numbers = #tpu.dot_dimension_numbers<[1], [0], [0], [1], [0, 0, 1, 1], [], []>} : vector<1x256xbf16>, vector<256x256xbf16>, vector<1x256xf32> -> vector<1x256xf32>
    %c1560 = arith.constant 1560 : index
    %c0_91 = arith.constant 0 : index
    %225 = vector.load %arg3[%c1560, %c0_91] : memref<1968x256xbf16, #tpu.memory_space<vmem>>, vector<1x256xbf16>
    %226 = arith.extf %225 : vector<1x256xbf16> to vector<1x256xf32>
    %227 = arith.addf %224, %226 : vector<1x256xf32>
    %cst_92 = arith.constant 0.000000e+00 : f32
    %228 = vector.broadcast %cst_92 : f32 to vector<1x256xf32>
    %229 = arith.maximumf %227, %228 : vector<1x256xf32>
    %230 = arith.truncf %229 : vector<1x256xf32> to vector<1x256xbf16>
    %c1568 = arith.constant 1568 : index
    %c0_93 = arith.constant 0 : index
    %231 = vector.load %arg3[%c1568, %c0_93] : memref<1968x256xbf16, #tpu.memory_space<vmem>>, vector<256x128xbf16>
    %cst_94 = arith.constant dense<0.000000e+00> : vector<1x128xf32>
    %232 = tpu.matmul %230, %231, %cst_94 {dimension_numbers = #tpu.dot_dimension_numbers<[1], [0], [0], [1], [0, 0, 1, 1], [], []>} : vector<1x256xbf16>, vector<256x128xbf16>, vector<1x128xf32> -> vector<1x128xf32>
    %c1824 = arith.constant 1824 : index
    %c0_95 = arith.constant 0 : index
    %233 = vector.load %arg3[%c1824, %c0_95] : memref<1968x256xbf16, #tpu.memory_space<vmem>>, vector<1x128xbf16>
    %234 = arith.extf %233 : vector<1x128xbf16> to vector<1x128xf32>
    %235 = arith.addf %232, %234 : vector<1x128xf32>
    %cst_96 = arith.constant 0.000000e+00 : f32
    %236 = vector.broadcast %cst_96 : f32 to vector<1x128xf32>
    %237 = arith.maximumf %235, %236 : vector<1x128xf32>
    %238 = arith.truncf %237 : vector<1x128xf32> to vector<1x128xbf16>
    %c1832 = arith.constant 1832 : index
    %c0_97 = arith.constant 0 : index
    %239 = vector.load %arg3[%c1832, %c0_97] : memref<1968x256xbf16, #tpu.memory_space<vmem>>, vector<128x128xbf16>
    %cst_98 = arith.constant dense<0.000000e+00> : vector<1x128xf32>
    %240 = tpu.matmul %238, %239, %cst_98 {dimension_numbers = #tpu.dot_dimension_numbers<[1], [0], [0], [1], [0, 0, 1, 1], [], []>} : vector<1x128xbf16>, vector<128x128xbf16>, vector<1x128xf32> -> vector<1x128xf32>
    %c1960 = arith.constant 1960 : index
    %c0_99 = arith.constant 0 : index
    %241 = vector.load %arg3[%c1960, %c0_99] : memref<1968x256xbf16, #tpu.memory_space<vmem>>, vector<1x128xbf16>
    %242 = arith.extf %241 : vector<1x128xbf16> to vector<1x128xf32>
    %243 = arith.addf %240, %242 : vector<1x128xf32>
    %244 = vector.shape_cast %243 : vector<1x128xf32> to vector<1x128xf32>
    %245 = vector.broadcast %244 : vector<1x128xf32> to vector<8x128xf32>
    %c0_100 = arith.constant 0 : index
    %c0_101 = arith.constant 0 : index
    %246 = vector.load %arg5[%c0_100, %c0_101] : memref<8x128xf32, #tpu.memory_space<vmem>>, vector<8x128xf32>
    tpu.vector_store %arg5[%c0_100, %c0_101], %245 {strides = array<i32>} : memref<8x128xf32, #tpu.memory_space<vmem>>, vector<8x128xf32>,
    return
  }
  func.func @transform_0(%arg0: i32) -> (i32, i32) {
    %c0_i32 = arith.constant 0 : i32
    %c0_i32_0 = arith.constant 0 : i32
    return %arg0, %c0_i32 : i32, i32
  }
  func.func @transform_1(%arg0: i32) -> (i32, i32) {
    %c0_i32 = arith.constant 0 : i32
    %c0_i32_0 = arith.constant 0 : i32
    %c0_i32_1 = arith.constant 0 : i32
    return %c0_i32, %c0_i32_0 : i32, i32
  }
  func.func @transform_2(%arg0: i32) -> (i32, i32) {
    %c0_i32 = arith.constant 0 : i32
    %c0_i32_0 = arith.constant 0 : i32
    %c0_i32_1 = arith.constant 0 : i32
    return %c0_i32, %c0_i32_0 : i32, i32
  }
  func.func @transform_3(%arg0: i32) -> (i32, i32) {
    %c0_i32 = arith.constant 0 : i32
    %c0_i32_0 = arith.constant 0 : i32
    %c0_i32_1 = arith.constant 0 : i32
    return %c0_i32, %c0_i32_0 : i32, i32
  }
  func.func @transform_4(%arg0: i32) -> (i32, i32) {
    %c0_i32 = arith.constant 0 : i32
    %c0_i32_0 = arith.constant 0 : i32
    return %arg0, %c0_i32 : i32, i32
  }
}

</mosaic_0001>

<llo_original>
// kernel: forward.1
$region0: #{forward.1}
  #allocation0 [shape = 'u32[]', space=smem, size = 0x4, offset = 0x4, fixed_abs, tag = 'smem constant byte address 0x4 - core index']
  #allocation1 [shape = 'u32[144,128]{1,0:T(1,128)}', space=vmem, size = 0x12000, scoped, tag = 'internal scratch']
  %s0 = inlined_call_operand.vmem [shape: f32[512,32], index: 0, kind: input, shape index: {}]
  %s1 = inlined_call_operand.hbm [shape: bf16[928,768], index: 1, kind: input, shape index: {}]
  %s2 = inlined_call_operand.hbm [shape: bf16[1968,256], index: 2, kind: input, shape index: {}]
  %s3 = inlined_call_operand.hbm [shape: bf16[128,1024], index: 3, kind: input, shape index: {}]
  %s4 = inlined_call_operand.vmem [shape: f32[64,128], index: 4, kind: output, shape index: {}]
  %s5 = sld [smem:[#allocation0]]
  $region61: #{forward.1} parent=0
    _
  %s7 = ssub.s32 1, %s5
  %s8 = scalar_select 0, %s7, %s5
  $region1: #{forward.1} parent=0
    #allocation2 [shape = 'u8[1425408]{0}', space=vmem, size = 0x15c000, scoped, tag = 'input window, operand 1, single buffered']
    #allocation3 [shape = 's32[2]{0}', space=sflag, size = 0x8, scoped, tag = 'scoped memory for forward.1']
    #allocation4 [shape = 'u8[1007616]{0}', space=vmem, size = 0xf6000, scoped, tag = 'input window, operand 2, single buffered']
    #allocation5 [shape = 's32[1]{0}', space=sflag, size = 0x4, scoped, tag = 'scoped memory for forward.1']
    #allocation6 [shape = 'u8[262144]{0}', space=vmem, size = 0x40000, scoped, tag = 'input window, operand 3, single buffered']
    %9 = vsyncpa [#allocation3], 0
    %10 = vsyncpa [#allocation5], 0
    loop: start=0, step=1, limit=10
    $region2: #{forward.1} parent=1 // loop_pre_header
      _
    $region3: #{forward.1} parent=1 // loop_header
      %s12 = sphi 0, %s16
      %p13 = scmp.ge.s32.totalorder %s12, 10
      %s22 = sphi 0, %s24
      %s25 = sphi 0, %s22
      %s26 = sphi 0, %s25
      %s42 = sphi 0, %s26
      %s46 = sphi 0, %s46
      %s48 = sphi 0, %s46
      %s49 = sphi 0, %s48
      %s63 = sphi 0, %s49
      %s67 = sphi 0, %s67
      %s69 = sphi 0, %s67
      %s70 = sphi 0, %s69
      %s84 = sphi 0, %s70
      %s88 = sphi 0, %s88
      %s90 = sphi 0, %s88
      %s91 = sphi 0, %s90
      %s105 = sphi 0, %s91
      %s111 = sphi 0, %s113
      %s114 = sphi 0, %s111
      %s115 = sphi 0, %s114
      %s131 = sphi 0, %s115
    $region4: #{forward.1} parent=1 // loop_header_branch
      %15 = sbr.rel (%p13) target = $region8
    $region5: #{forward.1} parent=1 // loop_body
      %s17 = ssub.s32 %s12, 1
      %s18 = ssub.s32 %s12, 2
      %s19 = sadd.s32 %s12, 1
      %s20 = ssub.s32 %s12, %s19
      %p21 = scmp.eq.s32.totalorder %s20, 0
      %s23 = sadd.s32 %s22, 1
      %s24 = scalar_select %p21, %s22, %s23
      %p27 = pneg %p21
      %p28 = scmp.eq.s32.totalorder %s12, 7
      %p29 = por %p27, %p28
      %p30 = scmp.ne.s32.totalorder %s22, %s25
      %p31 = scmp.eq.s32.totalorder %s12, 0
      %p32 = por %p30, %p31
      %p33 = scmp.ne.s32.totalorder %s22, %s25
      %p34 = scmp.eq.s32.totalorder %s17, 7
      %p35 = por %p33, %p34
      %p36 = scmp.ne.s32.totalorder %s25, %s26
      %p37 = scmp.eq.s32.totalorder %s17, 0
      %p38 = por %p36, %p37
      %p39 = scmp.ne.s32.totalorder %s25, %s26
      %p40 = scmp.eq.s32.totalorder %s18, 7
      %p41 = por %p39, %p40
      %p43 = scmp.ne.s32.totalorder %s26, %s42
      %p44 = scmp.eq.s32.totalorder %s18, 0
      %p45 = por %p43, %p44
      %s47 = sadd.s32 %s46, 1
      %p50 = scmp.eq.s32.totalorder %s12, 7
      %p51 = scmp.ne.s32.totalorder %s46, %s48
      %p52 = scmp.eq.s32.totalorder %s12, 0
      %p53 = por %p51, %p52
      %p54 = scmp.ne.s32.totalorder %s46, %s48
      %p55 = scmp.eq.s32.totalorder %s17, 7
      %p56 = por %p54, %p55
      %p57 = scmp.ne.s32.totalorder %s48, %s49
      %p58 = scmp.eq.s32.totalorder %s17, 0
      %p59 = por %p57, %p58
      %p60 = scmp.ne.s32.totalorder %s48, %s49
      %p61 = scmp.eq.s32.totalorder %s18, 7
      %p62 = por %p60, %p61
      %p64 = scmp.ne.s32.totalorder %s49, %s63
      %p65 = scmp.eq.s32.totalorder %s18, 0
      %p66 = por %p64, %p65
      %s68 = sadd.s32 %s67, 1
      %p71 = scmp.eq.s32.totalorder %s12, 7
      %p72 = scmp.ne.s32.totalorder %s67, %s69
      %p73 = scmp.eq.s32.totalorder %s12, 0
      %p74 = por %p72, %p73
      %p75 = scmp.ne.s32.totalorder %s67, %s69
      %p76 = scmp.eq.s32.totalorder %s17, 7
      %p77 = por %p75, %p76
      %p78 = scmp.ne.s32.totalorder %s69, %s70
      %p79 = scmp.eq.s32.totalorder %s17, 0
      %p80 = por %p78, %p79
      %p81 = scmp.ne.s32.totalorder %s69, %s70
      %p82 = scmp.eq.s32.totalorder %s18, 7
      %p83 = por %p81, %p82
      %p85 = scmp.ne.s32.totalorder %s70, %s84
      %p86 = scmp.eq.s32.totalorder %s18, 0
      %p87 = por %p85, %p86
      %s89 = sadd.s32 %s88, 1
      %p92 = scmp.eq.s32.totalorder %s12, 7
      %p93 = scmp.ne.s32.totalorder %s88, %s90
      %p94 = scmp.eq.s32.totalorder %s12, 0
      %p95 = por %p93, %p94
      %p96 = scmp.ne.s32.totalorder %s88, %s90
      %p97 = scmp.eq.s32.totalorder %s17, 7
      %p98 = por %p96, %p97
      %p99 = scmp.ne.s32.totalorder %s90, %s91
      %p100 = scmp.eq.s32.totalorder %s17, 0
      %p101 = por %p99, %p100
      %p102 = scmp.ne.s32.totalorder %s90, %s91
      %p103 = scmp.eq.s32.totalorder %s18, 7
      %p104 = por %p102, %p103
      %p106 = scmp.ne.s32.totalorder %s91, %s105
      %p107 = scmp.eq.s32.totalorder %s18, 0
      %p108 = por %p106, %p107
      %s109 = ssub.s32 %s12, %s19
      %p110 = scmp.eq.s32.totalorder %s109, 0
      %s112 = sadd.s32 %s111, 1
      %s113 = scalar_select %p110, %s111, %s112
      %p116 = pneg %p110
      %p117 = scmp.eq.s32.totalorder %s12, 7
      %p118 = por %p116, %p117
      %p119 = scmp.ne.s32.totalorder %s111, %s114
      %p120 = scmp.eq.s32.totalorder %s12, 0
      %p121 = por %p119, %p120
      %p122 = scmp.ne.s32.totalorder %s111, %s114
      %p123 = scmp.eq.s32.totalorder %s17, 7
      %p124 = por %p122, %p123
      %p125 = scmp.ne.s32.totalorder %s114, %s115
      %p126 = scmp.eq.s32.totalorder %s17, 0
      %p127 = por %p125, %p126
      %p128 = scmp.ne.s32.totalorder %s114, %s115
      %p129 = scmp.eq.s32.totalorder %s18, 7
      %p130 = por %p128, %p129
      %p132 = scmp.ne.s32.totalorder %s115, %s131
      %p133 = scmp.eq.s32.totalorder %s18, 0
      %p134 = por %p132, %p133
      %p135 = scmp.le.s32.totalorder 1, %s12
      %p136 = scmp.lt.s32.totalorder %s12, 9
      %p137 = pnand %p135, %p136
      %p138 = pneg %p137
      // Predicated region
      $region9: #{forward.1} parent=5 // pred_check
        _
      $region10: #{forward.1} parent=5 // pred_check_branch
        %140 = sbr.rel (%p137) target = $region12
      $region11: #{forward.1} parent=5 // pred_region
        %s141 = ssub.s32 %s12, 1
        // Predicated region
        $region13: #{forward.1} parent=11 // pred_check
          %p142 = pneg %p59
        $region14: #{forward.1} parent=11 // pred_check_branch
          %144 = sbr.rel (%p142) target = $region16
        $region15: #{forward.1} parent=11 // pred_region
          %s146 = ssub.s32 44544, 44544
          %147 = vsyncadd [#allocation3], %s146
          %s148 = sshll.u32 [#allocation2], 4
          %s149 = int_to_ptr.vmem [resolvable:$true] %s148
          %154 = dma.hbm_to_vmem [thread:$0]  %s1, 44544, %s149, [#allocation3], 384, 384, 24
        $region16: #{forward.1} parent=11 // pred_fallthru
          _
        // Predicated region
        $region17: #{forward.1} parent=11 // pred_check
          %p155 = pneg %p80
        $region18: #{forward.1} parent=11 // pred_check_branch
          %157 = sbr.rel (%p155) target = $region20
        $region19: #{forward.1} parent=11 // pred_region
          %s159 = ssub.s32 31488, 31488
          %160 = vsyncadd [#allocation5], %s159
          %s161 = sshll.u32 [#allocation4], 4
          %s162 = int_to_ptr.vmem [resolvable:$true] %s161
          %167 = dma.hbm_to_vmem [thread:$0]  %s2, 31488, %s162, [#allocation5], 128, 128, 8
        $region20: #{forward.1} parent=11 // pred_fallthru
          _
        // Predicated region
        $region21: #{forward.1} parent=11 // pred_check
          %p168 = pneg %p101
        $region22: #{forward.1} parent=11 // pred_check_branch
          %170 = sbr.rel (%p168) target = $region24
        $region23: #{forward.1} parent=11 // pred_region
          %s172 = ssub.s32 8192, 8192
          %173 = vsyncadd [#allocation5], %s172
          %s174 = sshll.u32 [#allocation6], 4
          %s175 = int_to_ptr.vmem [resolvable:$true] %s174
          %180 = dma.hbm_to_vmem [thread:$0]  %s3, 8192, %s175, [#allocation5], 512, 512, 32
        $region24: #{forward.1} parent=11 // pred_fallthru
          _
      $region12: #{forward.1} parent=5 // pred_fallthru
        _
      %p181 = scmp.lt.s32.totalorder %s12, 8
      // Predicated region
      $region25: #{forward.1} parent=5 // pred_check
        %p182 = pneg %p181
      $region26: #{forward.1} parent=5 // pred_check_branch
        %184 = sbr.rel (%p182) target = $region28
      $region27: #{forward.1} parent=5 // pred_region
        // Predicated region
        $region29: #{forward.1} parent=27 // pred_check
          %p185 = pneg %p32
        $region30: #{forward.1} parent=27 // pred_check_branch
          %187 = sbr.rel (%p185) target = $region32
        $region31: #{forward.1} parent=27 // pred_region
          %s188 = smul.u32 8, %s12
          %p189 = scmp.lt.s32.totalorder %s188, 63
          %s190 = scalar_select %p189, %s188, 63
          %s191 = smul.addr %s190, 8
          %s192 = scalar_lea.vmem %s0, %s191
          %s193 = smul.u32 8, %s12
        $region32: #{forward.1} parent=27 // pred_fallthru
          _
      $region28: #{forward.1} parent=5 // pred_fallthru
        _
      %p194 = scmp.le.s32.totalorder 1, %s12
      %p195 = scmp.lt.s32.totalorder %s12, 9
      %p196 = pnand %p194, %p195
      %p197 = pneg %p196
      // Predicated region
      $region33: #{forward.1} parent=5 // pred_check
        _
      $region34: #{forward.1} parent=5 // pred_check_branch
        %199 = sbr.rel (%p196) target = $region36
      $region35: #{forward.1} parent=5 // pred_region
        %s200 = ssub.s32 %s12, 1
        // Predicated region
        $region37: #{forward.1} parent=35 // pred_check
          %p201 = pneg %p59
        $region38: #{forward.1} parent=35 // pred_check_branch
          %203 = sbr.rel (%p201) target = $region40
        $region39: #{forward.1} parent=35 // pred_region
          %204 = dma.done [#allocation3], 44544
        $region40: #{forward.1} parent=35 // pred_fallthru
          _
        // Predicated region
        $region41: #{forward.1} parent=35 // pred_check
          %p205 = pneg %p80
        $region42: #{forward.1} parent=35 // pred_check_branch
          %207 = sbr.rel (%p205) target = $region44
        $region43: #{forward.1} parent=35 // pred_region
          %208 = dma.done [#allocation5], 31488
        $region44: #{forward.1} parent=35 // pred_fallthru
          _
        // Predicated region
        $region45: #{forward.1} parent=35 // pred_check
          %p209 = pneg %p101
        $region46: #{forward.1} parent=35 // pred_check_branch
          %211 = sbr.rel (%p209) target = $region48
        $region47: #{forward.1} parent=35 // pred_region
          %212 = dma.done [#allocation5], 8192
        $region48: #{forward.1} parent=35 // pred_fallthru
          _
        %s213 = smul.u32 8, %s17
        %p214 = scmp.lt.s32.totalorder %s213, 63
        %s215 = scalar_select %p214, %s213, 63
        %s216 = smul.addr %s215, 8
        %s217 = scalar_lea.vmem %s0, %s216
        %p218 = pneg %p38
        %p219 = pneg %p35
        %p220 = pneg %p59
        %p221 = pneg %p56
        %p222 = pneg %p80
        %p223 = pneg %p77
        %p224 = pneg %p101
        %p225 = pneg %p98
        %p226 = pneg %p127
        %p227 = pneg %p124
        %p228 = scmp.lt.s32.totalorder %s17, 7
        %s229 = scalar_select %p228, %s17, 7
        %s230 = smul.addr %s229, 8
        %s231 = scalar_lea.vmem %s4, %s230
        %s232 = smul.u32 8, %s17
        %p233 = scmp.lt.s32.totalorder %s232, 63
        %s234 = scalar_select %p233, %s232, 63
        %s235 = smul.addr %s234, 8
        %s236 = scalar_lea.vmem %s0, %s235
        %s237 = smul.u32 8, %s17
        %p238 = scmp.lt.s32.totalorder %s17, 7
        %s239 = scalar_select %p238, %s17, 7
        %s240 = smul.addr %s239, 8
        %s241 = scalar_lea.vmem %s4, %s240
        %v243 = vld [vmem:[%s236] sm:$0xff]
        %v244 = vld [vmem:[%s236 + $0x8] sm:$0xff]
        %v245 = vld [vmem:[%s236 + $0x10] sm:$0xff]
        %v246 = vld [vmem:[%s236 + $0x18] sm:$0xff]
        %v247 = vld [vmem:[%s236 + $0x20] sm:$0xff]
        %v248 = vld [vmem:[%s236 + $0x28] sm:$0xff]
        %v249 = vld [vmem:[%s236 + $0x30] sm:$0xff]
        %v250 = vld [vmem:[%s236 + $0x38] sm:$0xff]
        %v251 = vpack.c.bf16 %v244, %v243
        %v252 = vpack.c.bf16 %v246, %v245
        %v253 = vpack.c.bf16 %v248, %v247
        %v254 = vpack.c.bf16 %v250, %v249
        %v255 = vld [vmem:[#allocation4] sm:$0xff]
        %v256 = vld [vmem:[#allocation4 + $0x8] sm:$0xff]
        %v257 = vld [vmem:[#allocation4 + $0x10] sm:$0xff]
        %v258 = vld [vmem:[#allocation4 + $0x18] sm:$0xff]
        %v263 = vunpack.c.l.b16 %v255
        %v264 = vunpack.c.h.b16 %v255
        %v265 = vunpack.c.l.b16 %v256
        %v266 = vunpack.c.h.b16 %v256
        %v267 = vunpack.c.l.b16 %v257
        %v268 = vunpack.c.h.b16 %v257
        %v269 = vunpack.c.l.b16 %v258
        %v270 = vunpack.c.h.b16 %v258
        %v271 = vpack.c.b16 %v265, %v263
        %v272 = vpack.c.b16 %v266, %v264
        %v273 = vpack.c.b16 %v269, %v267
        %v274 = vpack.c.b16 %v270, %v268
        %vm279 = vcmask 261120
        %v281 = vsel %vm279, %v251, 0
        %v284 = vsel %vm279, %v252, 0
        %v287 = vsel %vm279, %v253, 0
        %v290 = vsel %vm279, %v254, 0
        %292 = vmatprep.subr.bf16.mxu0 %v272
        %293 = vmatpush1.bf16.msra.mxu0 %v271
        %294 = vmatprep.subr.bf16.mxu0 %v274
        %295 = vmatpush1.bf16.msra.mxu0 %v273
        %296 = vmatprep.subr.bf16.mxu0 0
        %297 = vmatpush1.bf16.msra.mxu0 0
        %298 = vmatprep.subr.bf16.mxu0 0
        %299 = vmatpush1.bf16.msra.mxu0 0
        %300 = vmatprep.subr.bf16.mxu0 0
        %301 = vmatpush1.bf16.msra.mxu0 0
        %302 = vmatprep.subr.bf16.mxu0 0
        %303 = vmatpush1.bf16.msra.mxu0 0
        %304 = vmatprep.subr.bf16.mxu0 0
        %305 = vmatpush1.bf16.msra.mxu0 0
        %306 = vmatprep.subr.bf16.mxu0 0
        %307 = vmatpush1.bf16.msra.mxu0 0
        %308 = vmatprep.subr.bf16.mxu0 0
        %309 = vmatpush1.bf16.msra.mxu0 0
        %310 = vmatprep.subr.bf16.mxu0 0
        %311 = vmatpush1.bf16.msra.mxu0 0
        %312 = vmatprep.subr.bf16.mxu0 0
        %313 = vmatpush1.bf16.msra.mxu0 0
        %314 = vmatprep.subr.bf16.mxu0 0
        %315 = vmatpush1.bf16.msra.mxu0 0
        %316 = vmatprep.subr.bf16.mxu0 0
        %317 = vmatpush1.bf16.msra.mxu0 0
        %318 = vmatprep.subr.bf16.mxu0 0
        %319 = vmatpush1.bf16.msra.mxu0 0
        %320 = vmatprep.subr.bf16.mxu0 0
        %321 = vmatpush1.bf16.msra.mxu0 0
        %322 = vmatprep.subr.bf16.mxu0 0
        %323 = vmatpush1.bf16.msra.mxu0 0
        %324 = vmatprep.mubr.bf16.mxu0 0
        %325 = vmatmul.mubr.bf16.gmra.mrb[0].mxu0 %v281
        %v326 = vpop.f32.mrb[0].mxu0
        %v327 = vadd.f32 0.0, %v326
        %v328 = vpop.f32.mrb[0].mxu0
        %v329 = vadd.f32 0.0, %v328
        %v330 = vpop.f32.mrb[0].mxu0
        %v331 = vadd.f32 0.0, %v330
        %v332 = vpop.f32.mrb[0].mxu0
        %v333 = vadd.f32 0.0, %v332
        %334 = vmatprep.mubr.bf16.mxu0 0
        %335 = vmatmul.mubr.bf16.gmra.mrb[0].mxu0 %v284
        %v336 = vpop.f32.mrb[0].mxu0
        %v337 = vadd.f32 0.0, %v336
        %v338 = vpop.f32.mrb[0].mxu0
        %v339 = vadd.f32 0.0, %v338
        %v340 = vpop.f32.mrb[0].mxu0
        %v341 = vadd.f32 0.0, %v340
        %v342 = vpop.f32.mrb[0].mxu0
        %v343 = vadd.f32 0.0, %v342
        %344 = vmatprep.mubr.bf16.mxu0 0
        %345 = vmatmul.mubr.bf16.gmra.mrb[0].mxu0 %v287
        %v346 = vpop.f32.mrb[0].mxu0
        %v347 = vadd.f32 0.0, %v346
        %v348 = vpop.f32.mrb[0].mxu0
        %v349 = vadd.f32 0.0, %v348
        %v350 = vpop.f32.mrb[0].mxu0
        %v351 = vadd.f32 0.0, %v350
        %v352 = vpop.f32.mrb[0].mxu0
        %v353 = vadd.f32 0.0, %v352
        %354 = vmatprep.mubr.bf16.mxu0 0
        %355 = vmatmul.mubr.bf16.gmra.mrb[0].mxu0 %v290
        %v356 = vpop.f32.mrb[0].mxu0
        %v357 = vadd.f32 0.0, %v356
        %v358 = vpop.f32.mrb[0].mxu0
        %v359 = vadd.f32 0.0, %v358
        %v360 = vpop.f32.mrb[0].mxu0
        %v361 = vadd.f32 0.0, %v360
        %v362 = vpop.f32.mrb[0].mxu0
        %v363 = vadd.f32 0.0, %v362
        %364 = vdwg.mxu0
        %v365 = vmul.f32 %v327, %v327
        %v366 = vmul.f32 %v331, %v331
        %v367 = vmul.f32 %v337, %v337
        %v368 = vmul.f32 %v341, %v341
        %v369 = vmul.f32 %v347, %v347
        %v370 = vmul.f32 %v351, %v351
        %v371 = vmul.f32 %v357, %v357
        %v372 = vmul.f32 %v361, %v361
        %v373 = vmul.f32 %v329, %v329
        %v374 = vmul.f32 %v333, %v333
        %v375 = vmul.f32 %v339, %v339
        %v376 = vmul.f32 %v343, %v343
        %v377 = vmul.f32 %v349, %v349
        %v378 = vmul.f32 %v353, %v353
        %v379 = vmul.f32 %v359, %v359
        %v380 = vmul.f32 %v363, %v363
        %v381 = vadd.f32 %v365, %v373
        %v382 = vadd.f32 %v366, %v374
        %v383 = vadd.f32 %v367, %v375
        %v384 = vadd.f32 %v368, %v376
        %v385 = vadd.f32 %v369, %v377
        %v386 = vadd.f32 %v370, %v378
        %v387 = vadd.f32 %v371, %v379
        %v388 = vadd.f32 %v372, %v380
        %v389 = vpack.c.bf16 %v382, %v381
        %v390 = vpack.c.bf16 %v384, %v383
        %v391 = vpack.c.bf16 %v386, %v385
        %v392 = vpack.c.bf16 %v388, %v387
        %v393 = vld [vmem:[#allocation4 + $0x20] sm:$0xf]
        %v394 = vld [vmem:[#allocation4 + $0x28] sm:$0xf]
        %v395 = vld [vmem:[#allocation4 + $0x30] sm:$0xf]
        %v396 = vld [vmem:[#allocation4 + $0x38] sm:$0xf]
        %v397 = vld [vmem:[#allocation4 + $0x40] sm:$0xf]
        %v398 = vld [vmem:[#allocation4 + $0x48] sm:$0xf]
        %v399 = vld [vmem:[#allocation4 + $0x50] sm:$0xf]
        %v400 = vld [vmem:[#allocation4 + $0x58] sm:$0xf]
        %v401 = vld [vmem:[#allocation4 + $0x60] sm:$0xf]
        %v402 = vld [vmem:[#allocation4 + $0x68] sm:$0xf]
        %v403 = vld [vmem:[#allocation4 + $0x70] sm:$0xf]
        %v404 = vld [vmem:[#allocation4 + $0x78] sm:$0xf]
        %v405 = vld [vmem:[#allocation4 + $0x80] sm:$0xf]
        %v406 = vld [vmem:[#allocation4 + $0x88] sm:$0xf]
        %v407 = vld [vmem:[#allocation4 + $0x90] sm:$0xf]
        %v408 = vld [vmem:[#allocation4 + $0x98] sm:$0xf]
        %v425 = vunpack.c.l.b16 %v393
        %v426 = vunpack.c.l.b16 %v394
        %v427 = vunpack.c.l.b16 %v395
        %v428 = vunpack.c.l.b16 %v396
        %v429 = vunpack.c.l.b16 %v397
        %v430 = vunpack.c.l.b16 %v398
        %v431 = vunpack.c.l.b16 %v399
        %v432 = vunpack.c.l.b16 %v400
        %v433 = vunpack.c.l.b16 %v401
        %v434 = vunpack.c.l.b16 %v402
        %v435 = vunpack.c.l.b16 %v403
        %v436 = vunpack.c.l.b16 %v404
        %v437 = vunpack.c.l.b16 %v405
        %v438 = vunpack.c.l.b16 %v406
        %v439 = vunpack.c.l.b16 %v407
        %v440 = vunpack.c.l.b16 %v408
        %v441 = vpack.c.b16 %v426, %v425
        %v442 = vpack.c.b16 %v428, %v427
        %v443 = vpack.c.b16 %v430, %v429
        %v444 = vpack.c.b16 %v432, %v431
        %v445 = vpack.c.b16 %v434, %v433
        %v446 = vpack.c.b16 %v436, %v435
        %v447 = vpack.c.b16 %v438, %v437
        %v448 = vpack.c.b16 %v440, %v439
        %457 = vmatprep.subr.bf16.mxu0 0
        %458 = vmatpush1.bf16.msra.mxu0 %v441
        %459 = vmatprep.subr.bf16.mxu0 0
        %460 = vmatpush1.bf16.msra.mxu0 %v442
        %461 = vmatprep.subr.bf16.mxu0 0
        %462 = vmatpush1.bf16.msra.mxu0 %v443
        %463 = vmatprep.subr.bf16.mxu0 0
        %464 = vmatpush1.bf16.msra.mxu0 %v444
        %465 = vmatprep.subr.bf16.mxu0 0
        %466 = vmatpush1.bf16.msra.mxu0 %v445
        %467 = vmatprep.subr.bf16.mxu0 0
        %468 = vmatpush1.bf16.msra.mxu0 %v446
        %469 = vmatprep.subr.bf16.mxu0 0
        %470 = vmatpush1.bf16.msra.mxu0 %v447
        %471 = vmatprep.subr.bf16.mxu0 0
        %472 = vmatpush1.bf16.msra.mxu0 %v448
        %473 = vmatprep.subr.bf16.mxu0 0
        %474 = vmatpush1.bf16.msra.mxu0 0
        %475 = vmatprep.subr.bf16.mxu0 0
        %476 = vmatpush1.bf16.msra.mxu0 0
        %477 = vmatprep.subr.bf16.mxu0 0
        %478 = vmatpush1.bf16.msra.mxu0 0
        %479 = vmatprep.subr.bf16.mxu0 0
        %480 = vmatpush1.bf16.msra.mxu0 0
        %481 = vmatprep.subr.bf16.mxu0 0
        %482 = vmatpush1.bf16.msra.mxu0 0
        %483 = vmatprep.subr.bf16.mxu0 0
        %484 = vmatpush1.bf16.msra.mxu0 0
        %485 = vmatprep.subr.bf16.mxu0 0
        %486 = vmatpush1.bf16.msra.mxu0 0
        %487 = vmatprep.subr.bf16.mxu0 0
        %488 = vmatpush1.bf16.msra.mxu0 0
        %489 = vmatprep.mubr.bf16.mxu0 0
        %490 = vmatmul.mubr.bf16.gmra.mrb[0].mxu0 %v389
        %v491 = vpop.f32.mrb[0].mxu0
        %v492 = vadd.f32 0.0, %v491
        %v493 = vpop.f32.mrb[0].mxu0
        %v494 = vpop.f32.mrb[0].mxu0
        %v495 = vadd.f32 0.0, %v494
        %v496 = vpop.f32.mrb[0].mxu0
        %497 = vmatprep.mubr.bf16.mxu0 0
        %498 = vmatmul.mubr.bf16.gmra.mrb[0].mxu0 %v390
        %v499 = vpop.f32.mrb[0].mxu0
        %v500 = vadd.f32 0.0, %v499
        %v501 = vpop.f32.mrb[0].mxu0
        %v502 = vpop.f32.mrb[0].mxu0
        %v503 = vadd.f32 0.0, %v502
        %v504 = vpop.f32.mrb[0].mxu0
        %505 = vmatprep.mubr.bf16.mxu0 0
        %506 = vmatmul.mubr.bf16.gmra.mrb[0].mxu0 %v391
        %v507 = vpop.f32.mrb[0].mxu0
        %v508 = vadd.f32 0.0, %v507
        %v509 = vpop.f32.mrb[0].mxu0
        %v510 = vpop.f32.mrb[0].mxu0
        %v511 = vadd.f32 0.0, %v510
        %v512 = vpop.f32.mrb[0].mxu0
        %513 = vmatprep.mubr.bf16.mxu0 0
        %514 = vmatmul.mubr.bf16.gmra.mrb[0].mxu0 %v392
        %v515 = vpop.f32.mrb[0].mxu0
        %v516 = vadd.f32 0.0, %v515
        %v517 = vpop.f32.mrb[0].mxu0
        %v518 = vpop.f32.mrb[0].mxu0
        %v519 = vadd.f32 0.0, %v518
        %v520 = vpop.f32.mrb[0].mxu0
        %521 = vdwg.mxu0
        %v522 = vmax.f32 %v492, 0.0
        %v523 = vmax.f32 %v495, 0.0
        %v524 = vmax.f32 %v500, 0.0
        %v525 = vmax.f32 %v503, 0.0
        %v526 = vmax.f32 %v508, 0.0
        %v527 = vmax.f32 %v511, 0.0
        %v528 = vmax.f32 %v516, 0.0
        %v529 = vmax.f32 %v519, 0.0
        %v530 = vadd.f32 %v522, 0.01
        %v531 = vadd.f32 %v523, 0.01
        %v532 = vadd.f32 %v524, 0.01
        %v533 = vadd.f32 %v525, 0.01
        %v534 = vadd.f32 %v526, 0.01
        %v535 = vadd.f32 %v527, 0.01
        %v536 = vadd.f32 %v528, 0.01
        %v537 = vadd.f32 %v529, 0.01
        %v538 = vlog2.pop %v530
        %v539 = vmul.f32 %v538, 0.6931472
        %v540 = vlog2.pop %v531
        %v541 = vmul.f32 %v540, 0.6931472
        %v542 = vlog2.pop %v532
        %v543 = vmul.f32 %v542, 0.6931472
        %v544 = vlog2.pop %v533
        %v545 = vmul.f32 %v544, 0.6931472
        %v546 = vlog2.pop %v534
        %v547 = vmul.f32 %v546, 0.6931472
        %v548 = vlog2.pop %v535
        %v549 = vmul.f32 %v548, 0.6931472
        %v550 = vlog2.pop %v536
        %v551 = vmul.f32 %v550, 0.6931472
        %v552 = vlog2.pop %v537
        %v553 = vmul.f32 %v552, 0.6931472
        %v554 = vpack.c.bf16 %v541, %v539
        %v555 = vpack.c.bf16 %v545, %v543
        %v556 = vpack.c.bf16 %v549, %v547
        %v557 = vpack.c.bf16 %v553, %v551
        %v558 = vld [vmem:[#allocation2] sm:$0xff]
        %v559 = vld [vmem:[#allocation2 + $0x8] sm:$0xff]
        %v560 = vld [vmem:[#allocation2 + $0x10] sm:$0xff]
        %v561 = vld [vmem:[#allocation2 + $0x18] sm:$0xff]
        %v562 = vld [vmem:[#allocation2 + $0x20] sm:$0xff]
        %v563 = vld [vmem:[#allocation2 + $0x28] sm:$0xff]
        %v564 = vld [vmem:[#allocation2 + $0x30] sm:$0xff]
        %v565 = vld [vmem:[#allocation2 + $0x38] sm:$0xff]
        %v566 = vld [vmem:[#allocation2 + $0x40] sm:$0xff]
        %v567 = vld [vmem:[#allocation2 + $0x48] sm:$0xff]
        %v568 = vld [vmem:[#allocation2 + $0x50] sm:$0xff]
        %v569 = vld [vmem:[#allocation2 + $0x58] sm:$0xff]
        %v582 = vunpack.c.l.b16 %v558
        %v583 = vunpack.c.h.b16 %v558
        %v584 = vunpack.c.l.b16 %v559
        %v585 = vunpack.c.h.b16 %v559
        %v586 = vunpack.c.l.b16 %v560
        %v587 = vunpack.c.h.b16 %v560
        %v588 = vunpack.c.l.b16 %v561
        %v589 = vunpack.c.h.b16 %v561
        %v590 = vunpack.c.l.b16 %v562
        %v591 = vunpack.c.h.b16 %v562
        %v592 = vunpack.c.l.b16 %v563
        %v593 = vunpack.c.h.b16 %v563
        %v594 = vunpack.c.l.b16 %v564
        %v595 = vunpack.c.h.b16 %v564
        %v596 = vunpack.c.l.b16 %v565
        %v597 = vunpack.c.h.b16 %v565
        %v598 = vunpack.c.l.b16 %v566
        %v599 = vunpack.c.h.b16 %v566
        %v600 = vunpack.c.l.b16 %v567
        %v601 = vunpack.c.h.b16 %v567
        %v602 = vunpack.c.l.b16 %v568
        %v603 = vunpack.c.h.b16 %v568
        %v604 = vunpack.c.l.b16 %v569
        %v605 = vunpack.c.h.b16 %v569
        %v606 = vpack.c.b16 %v588, %v582
        %v607 = vpack.c.b16 %v589, %v583
        %v608 = vpack.c.b16 %v590, %v584
        %v609 = vpack.c.b16 %v591, %v585
        %v610 = vpack.c.b16 %v592, %v586
        %v611 = vpack.c.b16 %v593, %v587
        %v612 = vpack.c.b16 %v600, %v594
        %v613 = vpack.c.b16 %v601, %v595
        %v614 = vpack.c.b16 %v602, %v596
        %v615 = vpack.c.b16 %v603, %v597
        %v616 = vpack.c.b16 %v604, %v598
        %v617 = vpack.c.b16 %v605, %v599
        %v631 = vsel %vm279, %v554, 0
        %v634 = vsel %vm279, %v555, 0
        %v637 = vsel %vm279, %v556, 0
        %v640 = vsel %vm279, %v557, 0
        %642 = vmatprep.subr.bf16.mxu0 %v607
        %643 = vmatpush1.bf16.msra.mxu0 %v606
        %644 = vmatprep.subr.bf16.mxu0 %v613
        %645 = vmatpush1.bf16.msra.mxu0 %v612
        %646 = vmatprep.subr.bf16.mxu0 0
        %647 = vmatpush1.bf16.msra.mxu0 0
        %648 = vmatprep.subr.bf16.mxu0 0
        %649 = vmatpush1.bf16.msra.mxu0 0
        %650 = vmatprep.subr.bf16.mxu0 0
        %651 = vmatpush1.bf16.msra.mxu0 0
        %652 = vmatprep.subr.bf16.mxu0 0
        %653 = vmatpush1.bf16.msra.mxu0 0
        %654 = vmatprep.subr.bf16.mxu0 0
        %655 = vmatpush1.bf16.msra.mxu0 0
        %656 = vmatprep.subr.bf16.mxu0 0
        %657 = vmatpush1.bf16.msra.mxu0 0
        %658 = vmatprep.subr.bf16.mxu0 0
        %659 = vmatpush1.bf16.msra.mxu0 0
        %660 = vmatprep.subr.bf16.mxu0 0
        %661 = vmatpush1.bf16.msra.mxu0 0
        %662 = vmatprep.subr.bf16.mxu0 0
        %663 = vmatpush1.bf16.msra.mxu0 0
        %664 = vmatprep.subr.bf16.mxu0 0
        %665 = vmatpush1.bf16.msra.mxu0 0
        %666 = vmatprep.subr.bf16.mxu0 0
        %667 = vmatpush1.bf16.msra.mxu0 0
        %668 = vmatprep.subr.bf16.mxu0 0
        %669 = vmatpush1.bf16.msra.mxu0 0
        %670 = vmatprep.subr.bf16.mxu0 0
        %671 = vmatpush1.bf16.msra.mxu0 0
        %672 = vmatprep.subr.bf16.mxu0 0
        %673 = vmatpush1.bf16.msra.mxu0 0
        %674 = vmatprep.mubr.bf16.mxu0 0
        %675 = vmatmul.mubr.bf16.gmra.mrb[0].mxu0 %v631
        %v676 = vpop.f32.mrb[0].mxu0
        %v677 = vadd.f32 0.0, %v676
        %v678 = vpop.f32.mrb[0].mxu0
        %v679 = vadd.f32 0.0, %v678
        %v680 = vpop.f32.mrb[0].mxu0
        %v681 = vadd.f32 0.0, %v680
        %v682 = vpop.f32.mrb[0].mxu0
        %v683 = vadd.f32 0.0, %v682
        %684 = vmatprep.mubr.bf16.mxu0 0
        %685 = vmatmul.mubr.bf16.gmra.mrb[0].mxu0 %v634
        %v686 = vpop.f32.mrb[0].mxu0
        %v687 = vadd.f32 0.0, %v686
        %v688 = vpop.f32.mrb[0].mxu0
        %v689 = vadd.f32 0.0, %v688
        %v690 = vpop.f32.mrb[0].mxu0
        %v691 = vadd.f32 0.0, %v690
        %v692 = vpop.f32.mrb[0].mxu0
        %v693 = vadd.f32 0.0, %v692
        %694 = vmatprep.mubr.bf16.mxu0 0
        %695 = vmatmul.mubr.bf16.gmra.mrb[0].mxu0 %v637
        %v696 = vpop.f32.mrb[0].mxu0
        %v697 = vadd.f32 0.0, %v696
        %v698 = vpop.f32.mrb[0].mxu0
        %v699 = vadd.f32 0.0, %v698
        %v700 = vpop.f32.mrb[0].mxu0
        %v701 = vadd.f32 0.0, %v700
        %v702 = vpop.f32.mrb[0].mxu0
        %v703 = vadd.f32 0.0, %v702
        %704 = vmatprep.mubr.bf16.mxu0 0
        %705 = vmatmul.mubr.bf16.gmra.mrb[0].mxu0 %v640
        %v706 = vpop.f32.mrb[0].mxu0
        %v707 = vadd.f32 0.0, %v706
        %v708 = vpop.f32.mrb[0].mxu0
        %v709 = vadd.f32 0.0, %v708
        %v710 = vpop.f32.mrb[0].mxu0
        %v711 = vadd.f32 0.0, %v710
        %v712 = vpop.f32.mrb[0].mxu0
        %v713 = vadd.f32 0.0, %v712
        %714 = vdwg.mxu0
        %715 = vmatprep.subr.bf16.mxu0 %v609
        %716 = vmatpush1.bf16.msra.mxu0 %v608
        %717 = vmatprep.subr.bf16.mxu0 %v615
        %718 = vmatpush1.bf16.msra.mxu0 %v614
        %719 = vmatprep.subr.bf16.mxu0 0
        %720 = vmatpush1.bf16.msra.mxu0 0
        %721 = vmatprep.subr.bf16.mxu0 0
        %722 = vmatpush1.bf16.msra.mxu0 0
        %723 = vmatprep.subr.bf16.mxu0 0
        %724 = vmatpush1.bf16.msra.mxu0 0
        %725 = vmatprep.subr.bf16.mxu0 0
        %726 = vmatpush1.bf16.msra.mxu0 0
        %727 = vmatprep.subr.bf16.mxu0 0
        %728 = vmatpush1.bf16.msra.mxu0 0
        %729 = vmatprep.subr.bf16.mxu0 0
        %730 = vmatpush1.bf16.msra.mxu0 0
        %731 = vmatprep.subr.bf16.mxu0 0
        %732 = vmatpush1.bf16.msra.mxu0 0
        %733 = vmatprep.subr.bf16.mxu0 0
        %734 = vmatpush1.bf16.msra.mxu0 0
        %735 = vmatprep.subr.bf16.mxu0 0
        %736 = vmatpush1.bf16.msra.mxu0 0
        %737 = vmatprep.subr.bf16.mxu0 0
        %738 = vmatpush1.bf16.msra.mxu0 0
        %739 = vmatprep.subr.bf16.mxu0 0
        %740 = vmatpush1.bf16.msra.mxu0 0
        %741 = vmatprep.subr.bf16.mxu0 0
        %742 = vmatpush1.bf16.msra.mxu0 0
        %743 = vmatprep.subr.bf16.mxu0 0
        %744 = vmatpush1.bf16.msra.mxu0 0
        %745 = vmatprep.subr.bf16.mxu0 0
        %746 = vmatpush1.bf16.msra.mxu0 0
        %747 = vmatprep.mubr.bf16.mxu0 0
        %748 = vmatmul.mubr.bf16.gmra.mrb[0].mxu0 %v631
        %v749 = vpop.f32.mrb[0].mxu0
        %v750 = vadd.f32 0.0, %v749
        %v751 = vpop.f32.mrb[0].mxu0
        %v752 = vadd.f32 0.0, %v751
        %v753 = vpop.f32.mrb[0].mxu0
        %v754 = vadd.f32 0.0, %v753
        %v755 = vpop.f32.mrb[0].mxu0
        %v756 = vadd.f32 0.0, %v755
        %757 = vmatprep.mubr.bf16.mxu0 0
        %758 = vmatmul.mubr.bf16.gmra.mrb[0].mxu0 %v634
        %v759 = vpop.f32.mrb[0].mxu0
        %v760 = vadd.f32 0.0, %v759
        %v761 = vpop.f32.mrb[0].mxu0
        %v762 = vadd.f32 0.0, %v761
        %v763 = vpop.f32.mrb[0].mxu0
        %v764 = vadd.f32 0.0, %v763
        %v765 = vpop.f32.mrb[0].mxu0
        %v766 = vadd.f32 0.0, %v765
        %767 = vmatprep.mubr.bf16.mxu0 0
        %768 = vmatmul.mubr.bf16.gmra.mrb[0].mxu0 %v637
        %v769 = vpop.f32.mrb[0].mxu0
        %v770 = vadd.f32 0.0, %v769
        %v771 = vpop.f32.mrb[0].mxu0
        %v772 = vadd.f32 0.0, %v771
        %v773 = vpop.f32.mrb[0].mxu0
        %v774 = vadd.f32 0.0, %v773
        %v775 = vpop.f32.mrb[0].mxu0
        %v776 = vadd.f32 0.0, %v775
        %777 = vmatprep.mubr.bf16.mxu0 0
        %778 = vmatmul.mubr.bf16.gmra.mrb[0].mxu0 %v640
        %v779 = vpop.f32.mrb[0].mxu0
        %v780 = vadd.f32 0.0, %v779
        %v781 = vpop.f32.mrb[0].mxu0
        %v782 = vadd.f32 0.0, %v781
        %v783 = vpop.f32.mrb[0].mxu0
        %v784 = vadd.f32 0.0, %v783
        %v785 = vpop.f32.mrb[0].mxu0
        %v786 = vadd.f32 0.0, %v785
        %787 = vdwg.mxu0
        %788 = vmatprep.subr.bf16.mxu0 %v611
        %789 = vmatpush1.bf16.msra.mxu0 %v610
        %790 = vmatprep.subr.bf16.mxu0 %v617
        %791 = vmatpush1.bf16.msra.mxu0 %v616
        %792 = vmatprep.subr.bf16.mxu0 0
        %793 = vmatpush1.bf16.msra.mxu0 0
        %794 = vmatprep.subr.bf16.mxu0 0
        %795 = vmatpush1.bf16.msra.mxu0 0
        %796 = vmatprep.subr.bf16.mxu0 0
        %797 = vmatpush1.bf16.msra.mxu0 0
        %798 = vmatprep.subr.bf16.mxu0 0
        %799 = vmatpush1.bf16.msra.mxu0 0
        %800 = vmatprep.subr.bf16.mxu0 0
        %801 = vmatpush1.bf16.msra.mxu0 0
        %802 = vmatprep.subr.bf16.mxu0 0
        %803 = vmatpush1.bf16.msra.mxu0 0
        %804 = vmatprep.subr.bf16.mxu0 0
        %805 = vmatpush1.bf16.msra.mxu0 0
        %806 = vmatprep.subr.bf16.mxu0 0
        %807 = vmatpush1.bf16.msra.mxu0 0
        %808 = vmatprep.subr.bf16.mxu0 0
        %809 = vmatpush1.bf16.msra.mxu0 0
        %810 = vmatprep.subr.bf16.mxu0 0
        %811 = vmatpush1.bf16.msra.mxu0 0
        %812 = vmatprep.subr.bf16.mxu0 0
        %813 = vmatpush1.bf16.msra.mxu0 0
        %814 = vmatprep.subr.bf16.mxu0 0
        %815 = vmatpush1.bf16.msra.mxu0 0
        %816 = vmatprep.subr.bf16.mxu0 0
        %817 = vmatpush1.bf16.msra.mxu0 0
        %818 = vmatprep.subr.bf16.mxu0 0
        %819 = vmatpush1.bf16.msra.mxu0 0
        %820 = vmatprep.mubr.bf16.mxu0 0
        %821 = vmatmul.mubr.bf16.gmra.mrb[0].mxu0 %v631
        %v822 = vpop.f32.mrb[0].mxu0
        %v823 = vadd.f32 0.0, %v822
        %v824 = vpop.f32.mrb[0].mxu0
        %v825 = vadd.f32 0.0, %v824
        %v826 = vpop.f32.mrb[0].mxu0
        %v827 = vadd.f32 0.0, %v826
        %v828 = vpop.f32.mrb[0].mxu0
        %v829 = vadd.f32 0.0, %v828
        %830 = vmatprep.mubr.bf16.mxu0 0
        %831 = vmatmul.mubr.bf16.gmra.mrb[0].mxu0 %v634
        %v832 = vpop.f32.mrb[0].mxu0
        %v833 = vadd.f32 0.0, %v832
        %v834 = vpop.f32.mrb[0].mxu0
        %v835 = vadd.f32 0.0, %v834
        %v836 = vpop.f32.mrb[0].mxu0
        %v837 = vadd.f32 0.0, %v836
        %v838 = vpop.f32.mrb[0].mxu0
        %v839 = vadd.f32 0.0, %v838
        %840 = vmatprep.mubr.bf16.mxu0 0
        %841 = vmatmul.mubr.bf16.gmra.mrb[0].mxu0 %v637
        %v842 = vpop.f32.mrb[0].mxu0
        %v843 = vadd.f32 0.0, %v842
        %v844 = vpop.f32.mrb[0].mxu0
        %v845 = vadd.f32 0.0, %v844
        %v846 = vpop.f32.mrb[0].mxu0
        %v847 = vadd.f32 0.0, %v846
        %v848 = vpop.f32.mrb[0].mxu0
        %v849 = vadd.f32 0.0, %v848
        %850 = vmatprep.mubr.bf16.mxu0 0
        %851 = vmatmul.mubr.bf16.gmra.mrb[0].mxu0 %v640
        %v852 = vpop.f32.mrb[0].mxu0
        %v853 = vadd.f32 0.0, %v852
        %v854 = vpop.f32.mrb[0].mxu0
        %v855 = vadd.f32 0.0, %v854
        %v856 = vpop.f32.mrb[0].mxu0
        %v857 = vadd.f32 0.0, %v856
        %v858 = vpop.f32.mrb[0].mxu0
        %v859 = vadd.f32 0.0, %v858
        %860 = vdwg.mxu0
        %v861 = vlaneseq
        %v862 = vshrl.u32 %v861, 7
        %v863 = vadd.s32 %v862, 8
        %v864 = vadd.s32 %v862, 16
        %v865 = vadd.s32 %v862, 24
        %v866 = vadd.s32 %v862, 32
        %v867 = vadd.s32 %v862, 40
        %v868 = vadd.s32 %v862, 48
        %v869 = vadd.s32 %v862, 56
        %vm870 = vcmp.eq.s32.totalorder %v862, 0
        %vm871 = vcmp.eq.s32.totalorder %v863, 0
        %vm872 = vcmp.eq.s32.totalorder %v864, 0
        %vm873 = vcmp.eq.s32.totalorder %v865, 0
        %vm874 = vcmp.eq.s32.totalorder %v866, 0
        %vm875 = vcmp.eq.s32.totalorder %v867, 0
        %vm876 = vcmp.eq.s32.totalorder %v868, 0
        %vm877 = vcmp.eq.s32.totalorder %v869, 0
        %v878 = vrot.slane %v677, 7
        %v879 = vrot.slane %v679, 7
        %v880 = vrot.slane %v681, 7
        %v881 = vrot.slane %v683, 7
        %v882 = vrot.slane %v687, 7
        %v883 = vrot.slane %v689, 7
        %v884 = vrot.slane %v691, 7
        %v885 = vrot.slane %v693, 7
        %v886 = vrot.slane %v697, 7
        %v887 = vrot.slane %v699, 7
        %v888 = vrot.slane %v701, 7
        %v889 = vrot.slane %v703, 7
        %v890 = vrot.slane %v707, 7
        %v891 = vrot.slane %v709, 7
        %v892 = vrot.slane %v711, 7
        %v893 = vrot.slane %v713, 7
        %vm894 = vcmp.lt.s32.totalorder %v862, 1
        %v895 = vsel %vm894, %v890, %v892
        %v896 = vsel %vm894, %v891, %v893
        %v897 = vsel %vm894, %v888, %v890
        %v898 = vsel %vm894, %v889, %v891
        %v899 = vsel %vm894, %v886, %v888
        %v900 = vsel %vm894, %v887, %v889
        %v901 = vsel %vm894, %v884, %v886
        %v902 = vsel %vm894, %v885, %v887
        %v903 = vsel %vm894, %v882, %v884
        %v904 = vsel %vm894, %v883, %v885
        %v905 = vsel %vm894, %v880, %v882
        %v906 = vsel %vm894, %v881, %v883
        %v907 = vsel %vm894, %v878, %v880
        %v908 = vsel %vm894, %v879, %v881
        %v909 = vsel %vm894, %v892, %v878
        %v910 = vsel %vm894, %v893, %v879
        %v911 = vsel %vm870, 0.0, %v909
        %v912 = vsel %vm870, 0.0, %v910
        %v913 = vsel %vm871, 0.0, %v907
        %v914 = vsel %vm871, 0.0, %v908
        %v915 = vsel %vm872, 0.0, %v905
        %v916 = vsel %vm872, 0.0, %v906
        %v917 = vsel %vm873, 0.0, %v903
        %v918 = vsel %vm873, 0.0, %v904
        %v919 = vsel %vm874, 0.0, %v901
        %v920 = vsel %vm874, 0.0, %v902
        %v921 = vsel %vm875, 0.0, %v899
        %v922 = vsel %vm875, 0.0, %v900
        %v923 = vsel %vm876, 0.0, %v897
        %v924 = vsel %vm876, 0.0, %v898
        %v925 = vsel %vm877, 0.0, %v895
        %v926 = vsel %vm877, 0.0, %v896
        %vm927 = vcmp.eq.s32.totalorder %v862, 63
        %vm928 = vcmp.eq.s32.totalorder %v863, 63
        %vm929 = vcmp.eq.s32.totalorder %v864, 63
        %vm930 = vcmp.eq.s32.totalorder %v865, 63
        %vm931 = vcmp.eq.s32.totalorder %v866, 63
        %vm932 = vcmp.eq.s32.totalorder %v867, 63
        %vm933 = vcmp.eq.s32.totalorder %v868, 63
        %vm934 = vcmp.eq.s32.totalorder %v869, 63
        %v935 = vrot.slane %v823, 1
        %v936 = vrot.slane %v825, 1
        %v937 = vrot.slane %v827, 1
        %v938 = vrot.slane %v829, 1
        %v939 = vrot.slane %v833, 1
        %v940 = vrot.slane %v835, 1
        %v941 = vrot.slane %v837, 1
        %v942 = vrot.slane %v839, 1
        %v943 = vrot.slane %v843, 1
        %v944 = vrot.slane %v845, 1
        %v945 = vrot.slane %v847, 1
        %v946 = vrot.slane %v849, 1
        %v947 = vrot.slane %v853, 1
        %v948 = vrot.slane %v855, 1
        %v949 = vrot.slane %v857, 1
        %v950 = vrot.slane %v859, 1
        %vm951 = vcmp.lt.s32.totalorder %v862, 7
        %v952 = vsel %vm951, %v947, %v949
        %v953 = vsel %vm951, %v948, %v950
        %v954 = vsel %vm951, %v945, %v947
        %v955 = vsel %vm951, %v946, %v948
        %v956 = vsel %vm951, %v943, %v945
        %v957 = vsel %vm951, %v944, %v946
        %v958 = vsel %vm951, %v941, %v943
        %v959 = vsel %vm951, %v942, %v944
        %v960 = vsel %vm951, %v939, %v941
        %v961 = vsel %vm951, %v940, %v942
        %v962 = vsel %vm951, %v937, %v939
        %v963 = vsel %vm951, %v938, %v940
        %v964 = vsel %vm951, %v935, %v937
        %v965 = vsel %vm951, %v936, %v938
        %v966 = vsel %vm951, %v949, %v935
        %v967 = vsel %vm951, %v950, %v936
        %v968 = vsel %vm927, 0.0, %v964
        %v969 = vsel %vm927, 0.0, %v965
        %v970 = vsel %vm928, 0.0, %v962
        %v971 = vsel %vm928, 0.0, %v963
        %v972 = vsel %vm929, 0.0, %v960
        %v973 = vsel %vm929, 0.0, %v961
        %v974 = vsel %vm930, 0.0, %v958
        %v975 = vsel %vm930, 0.0, %v959
        %v976 = vsel %vm931, 0.0, %v956
        %v977 = vsel %vm931, 0.0, %v957
        %v978 = vsel %vm932, 0.0, %v954
        %v979 = vsel %vm932, 0.0, %v955
        %v980 = vsel %vm933, 0.0, %v952
        %v981 = vsel %vm933, 0.0, %v953
        %v982 = vsel %vm934, 0.0, %v966
        %v983 = vsel %vm934, 0.0, %v967
        %v984 = vld [vmem:[#allocation4 + $0xa0] sm:$0x11]
        %v985 = vunpack.c.l.bf16 %v984
        %v986 = vunpack.c.h.bf16 %v984
        %v987 = vadd.f32 %v911, %v750
        %v988 = vadd.f32 %v912, %v752
        %v989 = vadd.f32 %v913, %v754
        %v990 = vadd.f32 %v914, %v756
        %v991 = vadd.f32 %v915, %v760
        %v992 = vadd.f32 %v916, %v762
        %v993 = vadd.f32 %v917, %v764
        %v994 = vadd.f32 %v918, %v766
        %v995 = vadd.f32 %v919, %v770
        %v996 = vadd.f32 %v920, %v772
        %v997 = vadd.f32 %v921, %v774
        %v998 = vadd.f32 %v922, %v776
        %v999 = vadd.f32 %v923, %v780
        %v1000 = vadd.f32 %v924, %v782
        %v1001 = vadd.f32 %v925, %v784
        %v1002 = vadd.f32 %v926, %v786
        %v1003 = vadd.f32 %v987, %v968
        %v1004 = vadd.f32 %v988, %v969
        %v1005 = vadd.f32 %v989, %v970
        %v1006 = vadd.f32 %v990, %v971
        %v1007 = vadd.f32 %v991, %v972
        %v1008 = vadd.f32 %v992, %v973
        %v1009 = vadd.f32 %v993, %v974
        %v1010 = vadd.f32 %v994, %v975
        %v1011 = vadd.f32 %v995, %v976
        %v1012 = vadd.f32 %v996, %v977
        %v1013 = vadd.f32 %v997, %v978
        %v1014 = vadd.f32 %v998, %v979
        %v1015 = vadd.f32 %v999, %v980
        %v1016 = vadd.f32 %v1000, %v981
        %v1017 = vadd.f32 %v1001, %v982
        %v1018 = vadd.f32 %v1002, %v983
        %v1019 = vlaneseq
        %v1020 = vshrl.u32 %v1019, 7
        %v1021 = vsub.s32 0, %v1020
        %v1022 = vrot.slane %v985, %v1021
        %v1023 = vlaneseq
        %v1024 = vshrl.u32 %v1023, 7
        %v1025 = vsub.s32 0, %v1024
        %v1026 = vrot.slane %v986, %v1025
        %v1027 = vadd.f32 %v1003, %v1022
        %v1028 = vadd.f32 %v1004, %v1026
        %v1029 = vadd.f32 %v1005, %v1022
        %v1030 = vadd.f32 %v1006, %v1026
        %v1031 = vadd.f32 %v1007, %v1022
        %v1032 = vadd.f32 %v1008, %v1026
        %v1033 = vadd.f32 %v1009, %v1022
        %v1034 = vadd.f32 %v1010, %v1026
        %v1035 = vadd.f32 %v1011, %v1022
        %v1036 = vadd.f32 %v1012, %v1026
        %v1037 = vadd.f32 %v1013, %v1022
        %v1038 = vadd.f32 %v1014, %v1026
        %v1039 = vadd.f32 %v1015, %v1022
        %v1040 = vadd.f32 %v1016, %v1026
        %v1041 = vadd.f32 %v1017, %v1022
        %v1042 = vadd.f32 %v1018, %v1026
        %v1043 = vmax.f32 %v1027, 0.0
        %v1044 = vmax.f32 %v1028, 0.0
        %v1045 = vmax.f32 %v1029, 0.0
        %v1046 = vmax.f32 %v1030, 0.0
        %v1047 = vmax.f32 %v1031, 0.0
        %v1048 = vmax.f32 %v1032, 0.0
        %v1049 = vmax.f32 %v1033, 0.0
        %v1050 = vmax.f32 %v1034, 0.0
        %v1051 = vmax.f32 %v1035, 0.0
        %v1052 = vmax.f32 %v1036, 0.0
        %v1053 = vmax.f32 %v1037, 0.0
        %v1054 = vmax.f32 %v1038, 0.0
        %v1055 = vmax.f32 %v1039, 0.0
        %v1056 = vmax.f32 %v1040, 0.0
        %v1057 = vmax.f32 %v1041, 0.0
        %v1058 = vmax.f32 %v1042, 0.0
        %v1059 = vrot.slane %v1043, 1
        %v1060 = vrot.slane %v1044, 1
        %v1061 = vrot.slane %v1045, 1
        %v1062 = vrot.slane %v1046, 1
        %v1063 = vrot.slane %v1047, 1
        %v1064 = vrot.slane %v1048, 1
        %v1065 = vrot.slane %v1049, 1
        %v1066 = vrot.slane %v1050, 1
        %v1067 = vrot.slane %v1051, 1
        %v1068 = vrot.slane %v1052, 1
        %v1069 = vrot.slane %v1053, 1
        %v1070 = vrot.slane %v1054, 1
        %v1071 = vrot.slane %v1055, 1
        %v1072 = vrot.slane %v1056, 1
        %v1073 = vrot.slane %v1057, 1
        %v1074 = vrot.slane %v1058, 1
        %v1075 = vsel %vm951, %v1071, %v1073
        %v1076 = vsel %vm951, %v1072, %v1074
        %v1077 = vsel %vm951, %v1069, %v1071
        %v1078 = vsel %vm951, %v1070, %v1072
        %v1079 = vsel %vm951, %v1067, %v1069
        %v1080 = vsel %vm951, %v1068, %v1070
        %v1081 = vsel %vm951, %v1065, %v1067
        %v1082 = vsel %vm951, %v1066, %v1068
        %v1083 = vsel %vm951, %v1063, %v1065
        %v1084 = vsel %vm951, %v1064, %v1066
        %v1085 = vsel %vm951, %v1061, %v1063
        %v1086 = vsel %vm951, %v1062, %v1064
        %v1087 = vsel %vm951, %v1059, %v1061
        %v1088 = vsel %vm951, %v1060, %v1062
        %v1089 = vsel %vm951, %v1073, %v1059
        %v1090 = vsel %vm951, %v1074, %v1060
        %v1091 = vmax.f32 %v1043, %v1087
        %v1092 = vmax.f32 %v1044, %v1088
        %v1093 = vmax.f32 %v1045, %v1085
        %v1094 = vmax.f32 %v1046, %v1086
        %v1095 = vmax.f32 %v1047, %v1083
        %v1096 = vmax.f32 %v1048, %v1084
        %v1097 = vmax.f32 %v1049, %v1081
        %v1098 = vmax.f32 %v1050, %v1082
        %v1099 = vmax.f32 %v1051, %v1079
        %v1100 = vmax.f32 %v1052, %v1080
        %v1101 = vmax.f32 %v1053, %v1077
        %v1102 = vmax.f32 %v1054, %v1078
        %v1103 = vmax.f32 %v1055, %v1075
        %v1104 = vmax.f32 %v1056, %v1076
        %v1105 = vmax.f32 %v1057, %v1089
        %v1106 = vmax.f32 %v1058, %v1090
        %v1107 = vld [vmem:[#allocation4 + $0xa8] sm:$0xf]
        %v1108 = vld [vmem:[#allocation4 + $0xb0] sm:$0xf]
        %v1109 = vld [vmem:[#allocation4 + $0xb8] sm:$0xf]
        %v1110 = vld [vmem:[#allocation4 + $0xc0] sm:$0xf]
        %v1111 = vpack.c.bf16 %v1093, %v1091
        %v1112 = vpack.c.bf16 %v1094, %v1092
        %v1113 = vpack.c.bf16 %v1097, %v1095
        %v1114 = vpack.c.bf16 %v1098, %v1096
        %v1115 = vpack.c.bf16 %v1101, %v1099
        %v1116 = vpack.c.bf16 %v1102, %v1100
        %v1117 = vpack.c.bf16 %v1105, %v1103
        %v1118 = vpack.c.bf16 %v1106, %v1104
        %v1123 = vunpack.c.l.b16 %v1107
        %v1124 = vunpack.c.l.b16 %v1108
        %v1125 = vunpack.c.l.b16 %v1109
        %v1126 = vunpack.c.l.b16 %v1110
        %v1127 = vpack.c.b16 %v1124, %v1123
        %v1128 = vpack.c.b16 %v1126, %v1125
        %vm1129 = vcmask 523264
        %v1131 = vsel %vm1129, %v1127, 0
        %v1134 = vsel %vm1129, %v1128, 0
        %1136 = vmatprep.subr.bf16.mxu0 %v1112
        %1137 = vmatpush1.bf16.msra.mxu0 %v1111
        %1138 = vmatprep.subr.bf16.mxu0 %v1114
        %1139 = vmatpush1.bf16.msra.mxu0 %v1113
        %1140 = vmatprep.subr.bf16.mxu0 %v1116
        %1141 = vmatpush1.bf16.msra.mxu0 %v1115
        %1142 = vmatprep.subr.bf16.mxu0 %v1118
        %1143 = vmatpush1.bf16.msra.mxu0 %v1117
        %1144 = vmatprep.subr.bf16.mxu0 0
        %1145 = vmatpush1.bf16.msra.mxu0 0
        %1146 = vmatprep.subr.bf16.mxu0 0
        %1147 = vmatpush1.bf16.msra.mxu0 0
        %1148 = vmatprep.subr.bf16.mxu0 0
        %1149 = vmatpush1.bf16.msra.mxu0 0
        %1150 = vmatprep.subr.bf16.mxu0 0
        %1151 = vmatpush1.bf16.msra.mxu0 0
        %1152 = vmatprep.subr.bf16.mxu0 0
        %1153 = vmatpush1.bf16.msra.mxu0 0
        %1154 = vmatprep.subr.bf16.mxu0 0
        %1155 = vmatpush1.bf16.msra.mxu0 0
        %1156 = vmatprep.subr.bf16.mxu0 0
        %1157 = vmatpush1.bf16.msra.mxu0 0
        %1158 = vmatprep.subr.bf16.mxu0 0
        %1159 = vmatpush1.bf16.msra.mxu0 0
        %1160 = vmatprep.subr.bf16.mxu0 0
        %1161 = vmatpush1.bf16.msra.mxu0 0
        %1162 = vmatprep.subr.bf16.mxu0 0
        %1163 = vmatpush1.bf16.msra.mxu0 0
        %1164 = vmatprep.subr.bf16.mxu0 0
        %1165 = vmatpush1.bf16.msra.mxu0 0
        %1166 = vmatprep.subr.bf16.mxu0 0
        %1167 = vmatpush1.bf16.msra.mxu0 0
        %1168 = vmatprep.mubr.bf16.mxu0 0
        %1169 = vmatmul.mubr.bf16.gmra.mrb[0].mxu0 %v1131
        %v1170 = vpop.f32.mrb[0].mxu0
        %v1171 = vadd.f32 0.0, %v1170
        %v1172 = vpop.f32.mrb[0].mxu0
        %v1173 = vadd.f32 0.0, %v1172
        %v1174 = vpop.f32.mrb[0].mxu0
        %v1175 = vadd.f32 0.0, %v1174
        %v1176 = vpop.f32.mrb[0].mxu0
        %v1177 = vadd.f32 0.0, %v1176
        %1178 = vmatprep.mubr.bf16.mxu0 0
        %1179 = vmatmul.mubr.bf16.gmra.mrb[0].mxu0 %v1134
        %v1180 = vpop.f32.mrb[0].mxu0
        %v1181 = vadd.f32 0.0, %v1180
        %v1182 = vpop.f32.mrb[0].mxu0
        %v1183 = vadd.f32 0.0, %v1182
        %v1184 = vpop.f32.mrb[0].mxu0
        %v1185 = vadd.f32 0.0, %v1184
        %v1186 = vpop.f32.mrb[0].mxu0
        %v1187 = vadd.f32 0.0, %v1186
        %1188 = vdwg.mxu0
        %1189 = vrot.lane.b32.xlu0 %v1171, 120
        %v1190 = vpop.permute.xlu0 %1189
        %1191 = vrot.lane.b32.xlu0 %v1175, 120
        %v1192 = vpop.permute.xlu0 %1191
        %1193 = vrot.lane.b32.xlu0 %v1181, 120
        %v1194 = vpop.permute.xlu0 %1193
        %1195 = vrot.lane.b32.xlu0 %v1185, 120
        %v1196 = vpop.permute.xlu0 %1195
        %1197 = vrot.lane.b32.xlu0 %v1173, 120
        %v1198 = vpop.permute.xlu0 %1197
        %1199 = vrot.lane.b32.xlu0 %v1177, 120
        %v1200 = vpop.permute.xlu0 %1199
        %1201 = vrot.lane.b32.xlu0 %v1183, 120
        %v1202 = vpop.permute.xlu0 %1201
        %1203 = vrot.lane.b32.xlu0 %v1187, 120
        %v1204 = vpop.permute.xlu0 %1203
        %v1205 = vlaneseq
        %v1206 = vand.u32 %v1205, 127
        %vm1207 = vcmp.lt.s32.totalorder %v1206, 120
        %v1208 = vsel %vm1207, %v1190, %v1198
        %v1209 = vsel %vm1207, %v1192, %v1200
        %v1210 = vsel %vm1207, %v1194, %v1202
        %v1211 = vsel %vm1207, %v1196, %v1204
        %v1212 = vsel %vm1207, %v1198, %v1190
        %v1213 = vsel %vm1207, %v1200, %v1192
        %v1214 = vsel %vm1207, %v1202, %v1194
        %v1215 = vsel %vm1207, %v1204, %v1196
        %v1216 = vmax.f32 %v1171, %v1208
        %v1217 = vmax.f32 %v1173, %v1212
        %v1218 = vmax.f32 %v1175, %v1209
        %v1219 = vmax.f32 %v1177, %v1213
        %v1220 = vmax.f32 %v1181, %v1210
        %v1221 = vmax.f32 %v1183, %v1214
        %v1222 = vmax.f32 %v1185, %v1211
        %v1223 = vmax.f32 %v1187, %v1215
        %v1224 = vpack.c.bf16 %v1218, %v1216
        %v1225 = vpack.c.bf16 %v1219, %v1217
        %v1226 = vpack.c.bf16 %v1222, %v1220
        %v1227 = vpack.c.bf16 %v1223, %v1221
        %v1228 = vld [vmem:[#allocation4 + $0xc8] sm:$0xf]
        %v1229 = vld [vmem:[#allocation4 + $0xd0] sm:$0xf]
        %v1230 = vld [vmem:[#allocation4 + $0xd8] sm:$0xf]
        %v1231 = vld [vmem:[#allocation4 + $0xe0] sm:$0xf]
        %v1232 = vld [vmem:[#allocation4 + $0xe8] sm:$0xf]
        %v1233 = vld [vmem:[#allocation4 + $0xf0] sm:$0xf]
        %v1234 = vld [vmem:[#allocation4 + $0xf8] sm:$0xf]
        %v1235 = vld [vmem:[#allocation4 + $0x100] sm:$0xf]
        %v1236 = vld [vmem:[#allocation4 + $0x108] sm:$0xf]
        %v1237 = vld [vmem:[#allocation4 + $0x110] sm:$0xf]
        %v1238 = vld [vmem:[#allocation4 + $0x118] sm:$0xf]
        %v1239 = vld [vmem:[#allocation4 + $0x120] sm:$0xf]
        %v1240 = vld [vmem:[#allocation4 + $0x128] sm:$0xf]
        %v1241 = vld [vmem:[#allocation4 + $0x130] sm:$0xf]
        %v1242 = vld [vmem:[#allocation4 + $0x138] sm:$0xf]
        %v1243 = vld [vmem:[#allocation4 + $0x140] sm:$0xf]
        %v1244 = vld [vmem:[#allocation4 + $0x148] sm:$0xf]
        %v1245 = vld [vmem:[#allocation4 + $0x150] sm:$0xf]
        %v1246 = vld [vmem:[#allocation4 + $0x158] sm:$0xf]
        %v1247 = vld [vmem:[#allocation4 + $0x160] sm:$0xf]
        %v1248 = vld [vmem:[#allocation4 + $0x168] sm:$0xf]
        %v1249 = vld [vmem:[#allocation4 + $0x170] sm:$0xf]
        %v1250 = vld [vmem:[#allocation4 + $0x178] sm:$0xf]
        %v1251 = vld [vmem:[#allocation4 + $0x180] sm:$0xf]
        %v1252 = vld [vmem:[#allocation4 + $0x188] sm:$0xf]
        %v1253 = vld [vmem:[#allocation4 + $0x190] sm:$0xf]
        %v1254 = vld [vmem:[#allocation4 + $0x198] sm:$0xf]
        %v1255 = vld [vmem:[#allocation4 + $0x1a0] sm:$0xf]
        %v1256 = vld [vmem:[#allocation4 + $0x1a8] sm:$0xf]
        %v1257 = vld [vmem:[#allocation4 + $0x1b0] sm:$0xf]
        %v1258 = vld [vmem:[#allocation4 + $0x1b8] sm:$0xf]
        %v1259 = vld [vmem:[#allocation4 + $0x1c0] sm:$0xf]
        %v1292 = vunpack.c.l.b16 %v1228
        %v1293 = vunpack.c.l.b16 %v1229
        %v1294 = vunpack.c.l.b16 %v1230
        %v1295 = vunpack.c.l.b16 %v1231
        %v1296 = vunpack.c.l.b16 %v1232
        %v1297 = vunpack.c.l.b16 %v1233
        %v1298 = vunpack.c.l.b16 %v1234
        %v1299 = vunpack.c.l.b16 %v1235
        %v1300 = vunpack.c.l.b16 %v1236
        %v1301 = vunpack.c.l.b16 %v1237
        %v1302 = vunpack.c.l.b16 %v1238
        %v1303 = vunpack.c.l.b16 %v1239
        %v1304 = vunpack.c.l.b16 %v1240
        %v1305 = vunpack.c.l.b16 %v1241
        %v1306 = vunpack.c.l.b16 %v1242
        %v1307 = vunpack.c.l.b16 %v1243
        %v1308 = vunpack.c.l.b16 %v1244
        %v1309 = vunpack.c.l.b16 %v1245
        %v1310 = vunpack.c.l.b16 %v1246
        %v1311 = vunpack.c.l.b16 %v1247
        %v1312 = vunpack.c.l.b16 %v1248
        %v1313 = vunpack.c.l.b16 %v1249
        %v1314 = vunpack.c.l.b16 %v1250
        %v1315 = vunpack.c.l.b16 %v1251
        %v1316 = vunpack.c.l.b16 %v1252
        %v1317 = vunpack.c.l.b16 %v1253
        %v1318 = vunpack.c.l.b16 %v1254
        %v1319 = vunpack.c.l.b16 %v1255
        %v1320 = vunpack.c.l.b16 %v1256
        %v1321 = vunpack.c.l.b16 %v1257
        %v1322 = vunpack.c.l.b16 %v1258
        %v1323 = vunpack.c.l.b16 %v1259
        %v1324 = vpack.c.b16 %v1293, %v1292
        %v1325 = vpack.c.b16 %v1295, %v1294
        %v1326 = vpack.c.b16 %v1297, %v1296
        %v1327 = vpack.c.b16 %v1299, %v1298
        %v1328 = vpack.c.b16 %v1301, %v1300
        %v1329 = vpack.c.b16 %v1303, %v1302
        %v1330 = vpack.c.b16 %v1305, %v1304
        %v1331 = vpack.c.b16 %v1307, %v1306
        %v1332 = vpack.c.b16 %v1309, %v1308
        %v1333 = vpack.c.b16 %v1311, %v1310
        %v1334 = vpack.c.b16 %v1313, %v1312
        %v1335 = vpack.c.b16 %v1315, %v1314
        %v1336 = vpack.c.b16 %v1317, %v1316
        %v1337 = vpack.c.b16 %v1319, %v1318
        %v1338 = vpack.c.b16 %v1321, %v1320
        %v1339 = vpack.c.b16 %v1323, %v1322
        %1356 = vmatprep.subr.bf16.mxu0 0
        %1357 = vmatpush1.bf16.msra.mxu0 %v1324
        %1358 = vmatprep.subr.bf16.mxu0 0
        %1359 = vmatpush1.bf16.msra.mxu0 %v1325
        %1360 = vmatprep.subr.bf16.mxu0 0
        %1361 = vmatpush1.bf16.msra.mxu0 %v1326
        %1362 = vmatprep.subr.bf16.mxu0 0
        %1363 = vmatpush1.bf16.msra.mxu0 %v1327
        %1364 = vmatprep.subr.bf16.mxu0 0
        %1365 = vmatpush1.bf16.msra.mxu0 %v1328
        %1366 = vmatprep.subr.bf16.mxu0 0
        %1367 = vmatpush1.bf16.msra.mxu0 %v1329
        %1368 = vmatprep.subr.bf16.mxu0 0
        %1369 = vmatpush1.bf16.msra.mxu0 %v1330
        %1370 = vmatprep.subr.bf16.mxu0 0
        %1371 = vmatpush1.bf16.msra.mxu0 %v1331
        %1372 = vmatprep.subr.bf16.mxu0 0
        %1373 = vmatpush1.bf16.msra.mxu0 %v1332
        %1374 = vmatprep.subr.bf16.mxu0 0
        %1375 = vmatpush1.bf16.msra.mxu0 %v1333
        %1376 = vmatprep.subr.bf16.mxu0 0
        %1377 = vmatpush1.bf16.msra.mxu0 %v1334
        %1378 = vmatprep.subr.bf16.mxu0 0
        %1379 = vmatpush1.bf16.msra.mxu0 %v1335
        %1380 = vmatprep.subr.bf16.mxu0 0
        %1381 = vmatpush1.bf16.msra.mxu0 %v1336
        %1382 = vmatprep.subr.bf16.mxu0 0
        %1383 = vmatpush1.bf16.msra.mxu0 %v1337
        %1384 = vmatprep.subr.bf16.mxu0 0
        %1385 = vmatpush1.bf16.msra.mxu0 %v1338
        %1386 = vmatprep.subr.bf16.mxu0 0
        %1387 = vmatpush1.bf16.msra.mxu0 %v1339
        %1388 = vmatprep.mubr.bf16.mxu0 %v1225
        %1389 = vmatmul.mubr.bf16.gmra.mrb[0].mxu0 %v1224
        %v1390 = vpop.f32.mrb[0].mxu0
        %v1391 = vadd.f32 0.0, %v1390
        %v1392 = vpop.f32.mrb[0].mxu0
        %v1393 = vpop.f32.mrb[0].mxu0
        %v1394 = vadd.f32 0.0, %v1393
        %v1395 = vpop.f32.mrb[0].mxu0
        %1396 = vmatprep.mubr.bf16.mxu0 %v1227
        %1397 = vmatmul.mubr.bf16.gmra.mrb[0].mxu0 %v1226
        %v1398 = vpop.f32.mrb[0].mxu0
        %v1399 = vadd.f32 0.0, %v1398
        %v1400 = vpop.f32.mrb[0].mxu0
        %v1401 = vpop.f32.mrb[0].mxu0
        %v1402 = vadd.f32 0.0, %v1401
        %v1403 = vpop.f32.mrb[0].mxu0
        %1404 = vdwg.mxu0
        %v1405 = vpack.c.bf16 %v1394, %v1391
        %v1406 = vpack.c.bf16 %v1402, %v1399
        %v1407 = vld [vmem:[#allocation2 + $0x60] sm:$0xff]
        %v1408 = vld [vmem:[#allocation2 + $0x68] sm:$0xff]
        %v1409 = vld [vmem:[#allocation2 + $0x70] sm:$0xff]
        %v1410 = vld [vmem:[#allocation2 + $0x78] sm:$0xff]
        %v1411 = vld [vmem:[#allocation2 + $0x80] sm:$0xff]
        %v1412 = vld [vmem:[#allocation2 + $0x88] sm:$0xff]
        %v1413 = vld [vmem:[#allocation2 + $0x90] sm:$0xff]
        %v1414 = vld [vmem:[#allocation2 + $0x98] sm:$0xff]
        %v1415 = vld [vmem:[#allocation2 + $0xa0] sm:$0xff]
        %v1416 = vld [vmem:[#allocation2 + $0xa8] sm:$0xff]
        %v1417 = vld [vmem:[#allocation2 + $0xb0] sm:$0xff]
        %v1418 = vld [vmem:[#allocation2 + $0xb8] sm:$0xff]
        %v1419 = vld [vmem:[#allocation2 + $0xc0] sm:$0xff]
        %v1420 = vld [vmem:[#allocation2 + $0xc8] sm:$0xff]
        %v1421 = vld [vmem:[#allocation2 + $0xd0] sm:$0xff]
        %v1422 = vld [vmem:[#allocation2 + $0xd8] sm:$0xff]
        %v1423 = vld [vmem:[#allocation2 + $0xe0] sm:$0xff]
        %v1424 = vld [vmem:[#allocation2 + $0xe8] sm:$0xff]
        %v1425 = vld [vmem:[#allocation2 + $0xf0] sm:$0xff]
        %v1426 = vld [vmem:[#allocation2 + $0xf8] sm:$0xff]
        %v1427 = vld [vmem:[#allocation2 + $0x100] sm:$0xff]
        %v1428 = vld [vmem:[#allocation2 + $0x108] sm:$0xff]
        %v1429 = vld [vmem:[#allocation2 + $0x110] sm:$0xff]
        %v1430 = vld [vmem:[#allocation2 + $0x118] sm:$0xff]
        %v1431 = vld [vmem:[#allocation2 + $0x120] sm:$0xff]
        %v1432 = vld [vmem:[#allocation2 + $0x128] sm:$0xff]
        %v1433 = vld [vmem:[#allocation2 + $0x130] sm:$0xff]
        %v1434 = vld [vmem:[#allocation2 + $0x138] sm:$0xff]
        %v1435 = vld [vmem:[#allocation2 + $0x140] sm:$0xff]
        %v1436 = vld [vmem:[#allocation2 + $0x148] sm:$0xff]
        %v1437 = vld [vmem:[#allocation2 + $0x150] sm:$0xff]
        %v1438 = vld [vmem:[#allocation2 + $0x158] sm:$0xff]
        %v1439 = vld [vmem:[#allocation2 + $0x160] sm:$0xff]
        %v1440 = vld [vmem:[#allocation2 + $0x168] sm:$0xff]
        %v1441 = vld [vmem:[#allocation2 + $0x170] sm:$0xff]
        %v1442 = vld [vmem:[#allocation2 + $0x178] sm:$0xff]
        %v1443 = vld [vmem:[#allocation2 + $0x180] sm:$0xff]
        %v1444 = vld [vmem:[#allocation2 + $0x188] sm:$0xff]
        %v1445 = vld [vmem:[#allocation2 + $0x190] sm:$0xff]
        %v1446 = vld [vmem:[#allocation2 + $0x198] sm:$0xff]
        %v1447 = vld [vmem:[#allocation2 + $0x1a0] sm:$0xff]
        %v1448 = vld [vmem:[#allocation2 + $0x1a8] sm:$0xff]
        %v1449 = vld [vmem:[#allocation2 + $0x1b0] sm:$0xff]
        %v1450 = vld [vmem:[#allocation2 + $0x1b8] sm:$0xff]
        %v1451 = vld [vmem:[#allocation2 + $0x1c0] sm:$0xff]
        %v1452 = vld [vmem:[#allocation2 + $0x1c8] sm:$0xff]
        %v1453 = vld [vmem:[#allocation2 + $0x1d0] sm:$0xff]
        %v1454 = vld [vmem:[#allocation2 + $0x1d8] sm:$0xff]
        %v1503 = vunpack.c.l.b16 %v1407
        %v1504 = vunpack.c.h.b16 %v1407
        %v1505 = vunpack.c.l.b16 %v1408
        %v1506 = vunpack.c.h.b16 %v1408
        %v1507 = vunpack.c.l.b16 %v1409
        %v1508 = vunpack.c.h.b16 %v1409
        %v1509 = vunpack.c.l.b16 %v1410
        %v1510 = vunpack.c.h.b16 %v1410
        %v1511 = vunpack.c.l.b16 %v1411
        %v1512 = vunpack.c.h.b16 %v1411
        %v1513 = vunpack.c.l.b16 %v1412
        %v1514 = vunpack.c.h.b16 %v1412
        %v1515 = vunpack.c.l.b16 %v1413
        %v1516 = vunpack.c.h.b16 %v1413
        %v1517 = vunpack.c.l.b16 %v1414
        %v1518 = vunpack.c.h.b16 %v1414
        %v1519 = vunpack.c.l.b16 %v1415
        %v1520 = vunpack.c.h.b16 %v1415
        %v1521 = vunpack.c.l.b16 %v1416
        %v1522 = vunpack.c.h.b16 %v1416
        %v1523 = vunpack.c.l.b16 %v1417
        %v1524 = vunpack.c.h.b16 %v1417
        %v1525 = vunpack.c.l.b16 %v1418
        %v1526 = vunpack.c.h.b16 %v1418
        %v1527 = vunpack.c.l.b16 %v1419
        %v1528 = vunpack.c.h.b16 %v1419
        %v1529 = vunpack.c.l.b16 %v1420
        %v1530 = vunpack.c.h.b16 %v1420
        %v1531 = vunpack.c.l.b16 %v1421
        %v1532 = vunpack.c.h.b16 %v1421
        %v1533 = vunpack.c.l.b16 %v1422
        %v1534 = vunpack.c.h.b16 %v1422
        %v1535 = vunpack.c.l.b16 %v1423
        %v1536 = vunpack.c.h.b16 %v1423
        %v1537 = vunpack.c.l.b16 %v1424
        %v1538 = vunpack.c.h.b16 %v1424
        %v1539 = vunpack.c.l.b16 %v1425
        %v1540 = vunpack.c.h.b16 %v1425
        %v1541 = vunpack.c.l.b16 %v1426
        %v1542 = vunpack.c.h.b16 %v1426
        %v1543 = vunpack.c.l.b16 %v1427
        %v1544 = vunpack.c.h.b16 %v1427
        %v1545 = vunpack.c.l.b16 %v1428
        %v1546 = vunpack.c.h.b16 %v1428
        %v1547 = vunpack.c.l.b16 %v1429
        %v1548 = vunpack.c.h.b16 %v1429
        %v1549 = vunpack.c.l.b16 %v1430
        %v1550 = vunpack.c.h.b16 %v1430
        %v1551 = vunpack.c.l.b16 %v1431
        %v1552 = vunpack.c.h.b16 %v1431
        %v1553 = vunpack.c.l.b16 %v1432
        %v1554 = vunpack.c.h.b16 %v1432
        %v1555 = vunpack.c.l.b16 %v1433
        %v1556 = vunpack.c.h.b16 %v1433
        %v1557 = vunpack.c.l.b16 %v1434
        %v1558 = vunpack.c.h.b16 %v1434
        %v1559 = vunpack.c.l.b16 %v1435
        %v1560 = vunpack.c.h.b16 %v1435
        %v1561 = vunpack.c.l.b16 %v1436
        %v1562 = vunpack.c.h.b16 %v1436
        %v1563 = vunpack.c.l.b16 %v1437
        %v1564 = vunpack.c.h.b16 %v1437
        %v1565 = vunpack.c.l.b16 %v1438
        %v1566 = vunpack.c.h.b16 %v1438
        %v1567 = vunpack.c.l.b16 %v1439
        %v1568 = vunpack.c.h.b16 %v1439
        %v1569 = vunpack.c.l.b16 %v1440
        %v1570 = vunpack.c.h.b16 %v1440
        %v1571 = vunpack.c.l.b16 %v1441
        %v1572 = vunpack.c.h.b16 %v1441
        %v1573 = vunpack.c.l.b16 %v1442
        %v1574 = vunpack.c.h.b16 %v1442
        %v1575 = vunpack.c.l.b16 %v1443
        %v1576 = vunpack.c.h.b16 %v1443
        %v1577 = vunpack.c.l.b16 %v1444
        %v1578 = vunpack.c.h.b16 %v1444
        %v1579 = vunpack.c.l.b16 %v1445
        %v1580 = vunpack.c.h.b16 %v1445
        %v1581 = vunpack.c.l.b16 %v1446
        %v1582 = vunpack.c.h.b16 %v1446
        %v1583 = vunpack.c.l.b16 %v1447
        %v1584 = vunpack.c.h.b16 %v1447
        %v1585 = vunpack.c.l.b16 %v1448
        %v1586 = vunpack.c.h.b16 %v1448
        %v1587 = vunpack.c.l.b16 %v1449
        %v1588 = vunpack.c.h.b16 %v1449
        %v1589 = vunpack.c.l.b16 %v1450
        %v1590 = vunpack.c.h.b16 %v1450
        %v1591 = vunpack.c.l.b16 %v1451
        %v1592 = vunpack.c.h.b16 %v1451
        %v1593 = vunpack.c.l.b16 %v1452
        %v1594 = vunpack.c.h.b16 %v1452
        %v1595 = vunpack.c.l.b16 %v1453
        %v1596 = vunpack.c.h.b16 %v1453
        %v1597 = vunpack.c.l.b16 %v1454
        %v1598 = vunpack.c.h.b16 %v1454
        %v1599 = vpack.c.b16 %v1509, %v1503
        %v1600 = vpack.c.b16 %v1510, %v1504
        %v1601 = vpack.c.b16 %v1511, %v1505
        %v1602 = vpack.c.b16 %v1512, %v1506
        %v1603 = vpack.c.b16 %v1513, %v1507
        %v1604 = vpack.c.b16 %v1514, %v1508
        %v1605 = vpack.c.b16 %v1521, %v1515
        %v1606 = vpack.c.b16 %v1522, %v1516
        %v1607 = vpack.c.b16 %v1523, %v1517
        %v1608 = vpack.c.b16 %v1524, %v1518
        %v1609 = vpack.c.b16 %v1525, %v1519
        %v1610 = vpack.c.b16 %v1526, %v1520
        %v1611 = vpack.c.b16 %v1533, %v1527
        %v1612 = vpack.c.b16 %v1534, %v1528
        %v1613 = vpack.c.b16 %v1535, %v1529
        %v1614 = vpack.c.b16 %v1536, %v1530
        %v1615 = vpack.c.b16 %v1537, %v1531
        %v1616 = vpack.c.b16 %v1538, %v1532
        %v1617 = vpack.c.b16 %v1545, %v1539
        %v1618 = vpack.c.b16 %v1546, %v1540
        %v1619 = vpack.c.b16 %v1547, %v1541
        %v1620 = vpack.c.b16 %v1548, %v1542
        %v1621 = vpack.c.b16 %v1549, %v1543
        %v1622 = vpack.c.b16 %v1550, %v1544
        %v1623 = vpack.c.b16 %v1557, %v1551
        %v1624 = vpack.c.b16 %v1558, %v1552
        %v1625 = vpack.c.b16 %v1559, %v1553
        %v1626 = vpack.c.b16 %v1560, %v1554
        %v1627 = vpack.c.b16 %v1561, %v1555
        %v1628 = vpack.c.b16 %v1562, %v1556
        %v1629 = vpack.c.b16 %v1569, %v1563
        %v1630 = vpack.c.b16 %v1570, %v1564
        %v1631 = vpack.c.b16 %v1571, %v1565
        %v1632 = vpack.c.b16 %v1572, %v1566
        %v1633 = vpack.c.b16 %v1573, %v1567
        %v1634 = vpack.c.b16 %v1574, %v1568
        %v1635 = vpack.c.b16 %v1581, %v1575
        %v1636 = vpack.c.b16 %v1582, %v1576
        %v1637 = vpack.c.b16 %v1583, %v1577
        %v1638 = vpack.c.b16 %v1584, %v1578
        %v1639 = vpack.c.b16 %v1585, %v1579
        %v1640 = vpack.c.b16 %v1586, %v1580
        %v1641 = vpack.c.b16 %v1593, %v1587
        %v1642 = vpack.c.b16 %v1594, %v1588
        %v1643 = vpack.c.b16 %v1595, %v1589
        %v1644 = vpack.c.b16 %v1596, %v1590
        %v1645 = vpack.c.b16 %v1597, %v1591
        %v1646 = vpack.c.b16 %v1598, %v1592
        %1695 = vmatprep.subr.bf16.mxu0 %v1600
        %1696 = vmatpush1.bf16.msra.mxu0 %v1599
        %1697 = vmatprep.subr.bf16.mxu0 %v1606
        %1698 = vmatpush1.bf16.msra.mxu0 %v1605
        %1699 = vmatprep.subr.bf16.mxu0 %v1612
        %1700 = vmatpush1.bf16.msra.mxu0 %v1611
        %1701 = vmatprep.subr.bf16.mxu0 %v1618
        %1702 = vmatpush1.bf16.msra.mxu0 %v1617
        %1703 = vmatprep.subr.bf16.mxu0 %v1624
        %1704 = vmatpush1.bf16.msra.mxu0 %v1623
        %1705 = vmatprep.subr.bf16.mxu0 %v1630
        %1706 = vmatpush1.bf16.msra.mxu0 %v1629
        %1707 = vmatprep.subr.bf16.mxu0 %v1636
        %1708 = vmatpush1.bf16.msra.mxu0 %v1635
        %1709 = vmatprep.subr.bf16.mxu0 %v1642
        %1710 = vmatpush1.bf16.msra.mxu0 %v1641
        %1711 = vmatprep.subr.bf16.mxu0 0
        %1712 = vmatpush1.bf16.msra.mxu0 0
        %1713 = vmatprep.subr.bf16.mxu0 0
        %1714 = vmatpush1.bf16.msra.mxu0 0
        %1715 = vmatprep.subr.bf16.mxu0 0
        %1716 = vmatpush1.bf16.msra.mxu0 0
        %1717 = vmatprep.subr.bf16.mxu0 0
        %1718 = vmatpush1.bf16.msra.mxu0 0
        %1719 = vmatprep.subr.bf16.mxu0 0
        %1720 = vmatpush1.bf16.msra.mxu0 0
        %1721 = vmatprep.subr.bf16.mxu0 0
        %1722 = vmatpush1.bf16.msra.mxu0 0
        %1723 = vmatprep.subr.bf16.mxu0 0
        %1724 = vmatpush1.bf16.msra.mxu0 0
        %1725 = vmatprep.subr.bf16.mxu0 0
        %1726 = vmatpush1.bf16.msra.mxu0 0
        %1727 = vmatprep.mubr.bf16.mxu0 0
        %1728 = vmatmul.mubr.bf16.gmra.mrb[0].mxu0 %v1405
        %v1729 = vpop.f32.mrb[0].mxu0
        %v1730 = vadd.f32 0.0, %v1729
        %v1731 = vpop.f32.mrb[0].mxu0
        %v1732 = vadd.f32 0.0, %v1731
        %v1733 = vpop.f32.mrb[0].mxu0
        %v1734 = vadd.f32 0.0, %v1733
        %v1735 = vpop.f32.mrb[0].mxu0
        %v1736 = vadd.f32 0.0, %v1735
        %1737 = vmatprep.mubr.bf16.mxu0 0
        %1738 = vmatmul.mubr.bf16.gmra.mrb[0].mxu0 %v1406
        %v1739 = vpop.f32.mrb[0].mxu0
        %v1740 = vadd.f32 0.0, %v1739
        %v1741 = vpop.f32.mrb[0].mxu0
        %v1742 = vadd.f32 0.0, %v1741
        %v1743 = vpop.f32.mrb[0].mxu0
        %v1744 = vadd.f32 0.0, %v1743
        %v1745 = vpop.f32.mrb[0].mxu0
        %v1746 = vadd.f32 0.0, %v1745
        %1747 = vdwg.mxu0
        %1748 = vmatprep.subr.bf16.mxu0 %v1602
        %1749 = vmatpush1.bf16.msra.mxu0 %v1601
        %1750 = vmatprep.subr.bf16.mxu0 %v1608
        %1751 = vmatpush1.bf16.msra.mxu0 %v1607
        %1752 = vmatprep.subr.bf16.mxu0 %v1614
        %1753 = vmatpush1.bf16.msra.mxu0 %v1613
        %1754 = vmatprep.subr.bf16.mxu0 %v1620
        %1755 = vmatpush1.bf16.msra.mxu0 %v1619
        %1756 = vmatprep.subr.bf16.mxu0 %v1626
        %1757 = vmatpush1.bf16.msra.mxu0 %v1625
        %1758 = vmatprep.subr.bf16.mxu0 %v1632
        %1759 = vmatpush1.bf16.msra.mxu0 %v1631
        %1760 = vmatprep.subr.bf16.mxu0 %v1638
        %1761 = vmatpush1.bf16.msra.mxu0 %v1637
        %1762 = vmatprep.subr.bf16.mxu0 %v1644
        %1763 = vmatpush1.bf16.msra.mxu0 %v1643
        %1764 = vmatprep.subr.bf16.mxu0 0
        %1765 = vmatpush1.bf16.msra.mxu0 0
        %1766 = vmatprep.subr.bf16.mxu0 0
        %1767 = vmatpush1.bf16.msra.mxu0 0
        %1768 = vmatprep.subr.bf16.mxu0 0
        %1769 = vmatpush1.bf16.msra.mxu0 0
        %1770 = vmatprep.subr.bf16.mxu0 0
        %1771 = vmatpush1.bf16.msra.mxu0 0
        %1772 = vmatprep.subr.bf16.mxu0 0
        %1773 = vmatpush1.bf16.msra.mxu0 0
        %1774 = vmatprep.subr.bf16.mxu0 0
        %1775 = vmatpush1.bf16.msra.mxu0 0
        %1776 = vmatprep.subr.bf16.mxu0 0
        %1777 = vmatpush1.bf16.msra.mxu0 0
        %1778 = vmatprep.subr.bf16.mxu0 0
        %1779 = vmatpush1.bf16.msra.mxu0 0
        %1780 = vmatprep.mubr.bf16.mxu0 0
        %1781 = vmatmul.mubr.bf16.gmra.mrb[0].mxu0 %v1405
        %v1782 = vpop.f32.mrb[0].mxu0
        %v1783 = vadd.f32 0.0, %v1782
        %v1784 = vpop.f32.mrb[0].mxu0
        %v1785 = vadd.f32 0.0, %v1784
        %v1786 = vpop.f32.mrb[0].mxu0
        %v1787 = vadd.f32 0.0, %v1786
        %v1788 = vpop.f32.mrb[0].mxu0
        %v1789 = vadd.f32 0.0, %v1788
        %1790 = vmatprep.mubr.bf16.mxu0 0
        %1791 = vmatmul.mubr.bf16.gmra.mrb[0].mxu0 %v1406
        %v1792 = vpop.f32.mrb[0].mxu0
        %v1793 = vadd.f32 0.0, %v1792
        %v1794 = vpop.f32.mrb[0].mxu0
        %v1795 = vadd.f32 0.0, %v1794
        %v1796 = vpop.f32.mrb[0].mxu0
        %v1797 = vadd.f32 0.0, %v1796
        %v1798 = vpop.f32.mrb[0].mxu0
        %v1799 = vadd.f32 0.0, %v1798
        %1800 = vdwg.mxu0
        %1801 = vmatprep.subr.bf16.mxu0 %v1604
        %1802 = vmatpush1.bf16.msra.mxu0 %v1603
        %1803 = vmatprep.subr.bf16.mxu0 %v1610
        %1804 = vmatpush1.bf16.msra.mxu0 %v1609
        %1805 = vmatprep.subr.bf16.mxu0 %v1616
        %1806 = vmatpush1.bf16.msra.mxu0 %v1615
        %1807 = vmatprep.subr.bf16.mxu0 %v1622
        %1808 = vmatpush1.bf16.msra.mxu0 %v1621
        %1809 = vmatprep.subr.bf16.mxu0 %v1628
        %1810 = vmatpush1.bf16.msra.mxu0 %v1627
        %1811 = vmatprep.subr.bf16.mxu0 %v1634
        %1812 = vmatpush1.bf16.msra.mxu0 %v1633
        %1813 = vmatprep.subr.bf16.mxu0 %v1640
        %1814 = vmatpush1.bf16.msra.mxu0 %v1639
        %1815 = vmatprep.subr.bf16.mxu0 %v1646
        %1816 = vmatpush1.bf16.msra.mxu0 %v1645
        %1817 = vmatprep.subr.bf16.mxu0 0
        %1818 = vmatpush1.bf16.msra.mxu0 0
        %1819 = vmatprep.subr.bf16.mxu0 0
        %1820 = vmatpush1.bf16.msra.mxu0 0
        %1821 = vmatprep.subr.bf16.mxu0 0
        %1822 = vmatpush1.bf16.msra.mxu0 0
        %1823 = vmatprep.subr.bf16.mxu0 0
        %1824 = vmatpush1.bf16.msra.mxu0 0
        %1825 = vmatprep.subr.bf16.mxu0 0
        %1826 = vmatpush1.bf16.msra.mxu0 0
        %1827 = vmatprep.subr.bf16.mxu0 0
        %1828 = vmatpush1.bf16.msra.mxu0 0
        %1829 = vmatprep.subr.bf16.mxu0 0
        %1830 = vmatpush1.bf16.msra.mxu0 0
        %1831 = vmatprep.subr.bf16.mxu0 0
        %1832 = vmatpush1.bf16.msra.mxu0 0
        %1833 = vmatprep.mubr.bf16.mxu0 0
        %1834 = vmatmul.mubr.bf16.gmra.mrb[0].mxu0 %v1405
        %v1835 = vpop.f32.mrb[0].mxu0
        %v1836 = vadd.f32 0.0, %v1835
        %v1837 = vpop.f32.mrb[0].mxu0
        %v1838 = vadd.f32 0.0, %v1837
        %v1839 = vpop.f32.mrb[0].mxu0
        %v1840 = vadd.f32 0.0, %v1839
        %v1841 = vpop.f32.mrb[0].mxu0
        %v1842 = vadd.f32 0.0, %v1841
        %1843 = vmatprep.mubr.bf16.mxu0 0
        %1844 = vmatmul.mubr.bf16.gmra.mrb[0].mxu0 %v1406
        %v1845 = vpop.f32.mrb[0].mxu0
        %v1846 = vadd.f32 0.0, %v1845
        %v1847 = vpop.f32.mrb[0].mxu0
        %v1848 = vadd.f32 0.0, %v1847
        %v1849 = vpop.f32.mrb[0].mxu0
        %v1850 = vadd.f32 0.0, %v1849
        %v1851 = vpop.f32.mrb[0].mxu0
        %v1852 = vadd.f32 0.0, %v1851
        %1853 = vdwg.mxu0
        %v1854 = vrot.slane %v1730, 7
        %v1855 = vrot.slane %v1732, 7
        %v1856 = vrot.slane %v1734, 7
        %v1857 = vrot.slane %v1736, 7
        %v1858 = vrot.slane %v1740, 7
        %v1859 = vrot.slane %v1742, 7
        %v1860 = vrot.slane %v1744, 7
        %v1861 = vrot.slane %v1746, 7
        %v1862 = vsel %vm894, %v1858, %v1860
        %v1863 = vsel %vm894, %v1859, %v1861
        %v1864 = vsel %vm894, %v1856, %v1858
        %v1865 = vsel %vm894, %v1857, %v1859
        %v1866 = vsel %vm894, %v1854, %v1856
        %v1867 = vsel %vm894, %v1855, %v1857
        %v1868 = vsel %vm894, %v1860, %v1854
        %v1869 = vsel %vm894, %v1861, %v1855
        %v1870 = vsel %vm870, 0.0, %v1868
        %v1871 = vsel %vm870, 0.0, %v1869
        %v1872 = vsel %vm871, 0.0, %v1866
        %v1873 = vsel %vm871, 0.0, %v1867
        %v1874 = vsel %vm872, 0.0, %v1864
        %v1875 = vsel %vm872, 0.0, %v1865
        %v1876 = vsel %vm873, 0.0, %v1862
        %v1877 = vsel %vm873, 0.0, %v1863
        %vm1878 = vcmp.eq.s32.totalorder %v862, 31
        %vm1879 = vcmp.eq.s32.totalorder %v863, 31
        %vm1880 = vcmp.eq.s32.totalorder %v864, 31
        %vm1881 = vcmp.eq.s32.totalorder %v865, 31
        %v1882 = vrot.slane %v1836, 1
        %v1883 = vrot.slane %v1838, 1
        %v1884 = vrot.slane %v1840, 1
        %v1885 = vrot.slane %v1842, 1
        %v1886 = vrot.slane %v1846, 1
        %v1887 = vrot.slane %v1848, 1
        %v1888 = vrot.slane %v1850, 1
        %v1889 = vrot.slane %v1852, 1
        %v1890 = vsel %vm951, %v1886, %v1888
        %v1891 = vsel %vm951, %v1887, %v1889
        %v1892 = vsel %vm951, %v1884, %v1886
        %v1893 = vsel %vm951, %v1885, %v1887
        %v1894 = vsel %vm951, %v1882, %v1884
        %v1895 = vsel %vm951, %v1883, %v1885
        %v1896 = vsel %vm951, %v1888, %v1882
        %v1897 = vsel %vm951, %v1889, %v1883
        %v1898 = vsel %vm1878, 0.0, %v1894
        %v1899 = vsel %vm1878, 0.0, %v1895
        %v1900 = vsel %vm1879, 0.0, %v1892
        %v1901 = vsel %vm1879, 0.0, %v1893
        %v1902 = vsel %vm1880, 0.0, %v1890
        %v1903 = vsel %vm1880, 0.0, %v1891
        %v1904 = vsel %vm1881, 0.0, %v1896
        %v1905 = vsel %vm1881, 0.0, %v1897
        %v1906 = vld [vmem:[#allocation4 + $0x1c8] sm:$0x11]
        %v1907 = vunpack.c.l.bf16 %v1906
        %v1908 = vunpack.c.h.bf16 %v1906
        %v1909 = vadd.f32 %v1870, %v1783
        %v1910 = vadd.f32 %v1871, %v1785
        %v1911 = vadd.f32 %v1872, %v1787
        %v1912 = vadd.f32 %v1873, %v1789
        %v1913 = vadd.f32 %v1874, %v1793
        %v1914 = vadd.f32 %v1875, %v1795
        %v1915 = vadd.f32 %v1876, %v1797
        %v1916 = vadd.f32 %v1877, %v1799
        %v1917 = vadd.f32 %v1909, %v1898
        %v1918 = vadd.f32 %v1910, %v1899
        %v1919 = vadd.f32 %v1911, %v1900
        %v1920 = vadd.f32 %v1912, %v1901
        %v1921 = vadd.f32 %v1913, %v1902
        %v1922 = vadd.f32 %v1914, %v1903
        %v1923 = vadd.f32 %v1915, %v1904
        %v1924 = vadd.f32 %v1916, %v1905
        %v1925 = vlaneseq
        %v1926 = vshrl.u32 %v1925, 7
        %v1927 = vsub.s32 0, %v1926
        %v1928 = vrot.slane %v1907, %v1927
        %v1929 = vlaneseq
        %v1930 = vshrl.u32 %v1929, 7
        %v1931 = vsub.s32 0, %v1930
        %v1932 = vrot.slane %v1908, %v1931
        %v1933 = vadd.f32 %v1917, %v1928
        %v1934 = vadd.f32 %v1918, %v1932
        %v1935 = vadd.f32 %v1919, %v1928
        %v1936 = vadd.f32 %v1920, %v1932
        %v1937 = vadd.f32 %v1921, %v1928
        %v1938 = vadd.f32 %v1922, %v1932
        %v1939 = vadd.f32 %v1923, %v1928
        %v1940 = vadd.f32 %v1924, %v1932
        %v1941 = vmax.f32 %v1933, 0.0
        %v1942 = vmax.f32 %v1934, 0.0
        %v1943 = vmax.f32 %v1935, 0.0
        %v1944 = vmax.f32 %v1936, 0.0
        %v1945 = vmax.f32 %v1937, 0.0
        %v1946 = vmax.f32 %v1938, 0.0
        %v1947 = vmax.f32 %v1939, 0.0
        %v1948 = vmax.f32 %v1940, 0.0
        %v1949 = vrot.slane %v1941, 1
        %v1950 = vrot.slane %v1942, 1
        %v1951 = vrot.slane %v1943, 1
        %v1952 = vrot.slane %v1944, 1
        %v1953 = vrot.slane %v1945, 1
        %v1954 = vrot.slane %v1946, 1
        %v1955 = vrot.slane %v1947, 1
        %v1956 = vrot.slane %v1948, 1
        %v1957 = vsel %vm951, %v1953, %v1955
        %v1958 = vsel %vm951, %v1954, %v1956
        %v1959 = vsel %vm951, %v1951, %v1953
        %v1960 = vsel %vm951, %v1952, %v1954
        %v1961 = vsel %vm951, %v1949, %v1951
        %v1962 = vsel %vm951, %v1950, %v1952
        %v1963 = vsel %vm951, %v1955, %v1949
        %v1964 = vsel %vm951, %v1956, %v1950
        %v1965 = vmax.f32 %v1941, %v1961
        %v1966 = vmax.f32 %v1942, %v1962
        %v1967 = vmax.f32 %v1943, %v1959
        %v1968 = vmax.f32 %v1944, %v1960
        %v1969 = vmax.f32 %v1945, %v1957
        %v1970 = vmax.f32 %v1946, %v1958
        %v1971 = vmax.f32 %v1947, %v1963
        %v1972 = vmax.f32 %v1948, %v1964
        %v1973 = vld [vmem:[#allocation4 + $0x1d0] sm:$0xf]
        %v1974 = vld [vmem:[#allocation4 + $0x1d8] sm:$0xf]
        %v1975 = vpack.c.bf16 %v1967, %v1965
        %v1976 = vpack.c.bf16 %v1968, %v1966
        %v1977 = vpack.c.bf16 %v1971, %v1969
        %v1978 = vpack.c.bf16 %v1972, %v1970
        %v1981 = vunpack.c.l.b16 %v1973
        %v1982 = vunpack.c.l.b16 %v1974
        %v1983 = vpack.c.b16 %v1982, %v1981
        %v1985 = vsel %vm279, %v1983, 0
        %1987 = vmatprep.subr.bf16.mxu0 %v1976
        %1988 = vmatpush1.bf16.msra.mxu0 %v1975
        %1989 = vmatprep.subr.bf16.mxu0 %v1978
        %1990 = vmatpush1.bf16.msra.mxu0 %v1977
        %1991 = vmatprep.subr.bf16.mxu0 0
        %1992 = vmatpush1.bf16.msra.mxu0 0
        %1993 = vmatprep.subr.bf16.mxu0 0
        %1994 = vmatpush1.bf16.msra.mxu0 0
        %1995 = vmatprep.subr.bf16.mxu0 0
        %1996 = vmatpush1.bf16.msra.mxu0 0
        %1997 = vmatprep.subr.bf16.mxu0 0
        %1998 = vmatpush1.bf16.msra.mxu0 0
        %1999 = vmatprep.subr.bf16.mxu0 0
        %2000 = vmatpush1.bf16.msra.mxu0 0
        %2001 = vmatprep.subr.bf16.mxu0 0
        %2002 = vmatpush1.bf16.msra.mxu0 0
        %2003 = vmatprep.subr.bf16.mxu0 0
        %2004 = vmatpush1.bf16.msra.mxu0 0
        %2005 = vmatprep.subr.bf16.mxu0 0
        %2006 = vmatpush1.bf16.msra.mxu0 0
        %2007 = vmatprep.subr.bf16.mxu0 0
        %2008 = vmatpush1.bf16.msra.mxu0 0
        %2009 = vmatprep.subr.bf16.mxu0 0
        %2010 = vmatpush1.bf16.msra.mxu0 0
        %2011 = vmatprep.subr.bf16.mxu0 0
        %2012 = vmatpush1.bf16.msra.mxu0 0
        %2013 = vmatprep.subr.bf16.mxu0 0
        %2014 = vmatpush1.bf16.msra.mxu0 0
        %2015 = vmatprep.subr.bf16.mxu0 0
        %2016 = vmatpush1.bf16.msra.mxu0 0
        %2017 = vmatprep.subr.bf16.mxu0 0
        %2018 = vmatpush1.bf16.msra.mxu0 0
        %2019 = vmatprep.mubr.bf16.mxu0 0
        %2020 = vmatmul.mubr.bf16.gmra.mrb[0].mxu0 %v1985
        %v2021 = vpop.f32.mrb[0].mxu0
        %v2022 = vadd.f32 0.0, %v2021
        %v2023 = vpop.f32.mrb[0].mxu0
        %v2024 = vadd.f32 0.0, %v2023
        %v2025 = vpop.f32.mrb[0].mxu0
        %v2026 = vadd.f32 0.0, %v2025
        %v2027 = vpop.f32.mrb[0].mxu0
        %v2028 = vadd.f32 0.0, %v2027
        %2029 = vdwg.mxu0
        %2030 = vrot.lane.b32.xlu0 %v2022, 112
        %v2031 = vpop.permute.xlu0 %2030
        %2032 = vrot.lane.b32.xlu0 %v2026, 112
        %v2033 = vpop.permute.xlu0 %2032
        %2034 = vrot.lane.b32.xlu0 %v2024, 112
        %v2035 = vpop.permute.xlu0 %2034
        %2036 = vrot.lane.b32.xlu0 %v2028, 112
        %v2037 = vpop.permute.xlu0 %2036
        %vm2038 = vcmp.lt.s32.totalorder %v1206, 112
        %v2039 = vsel %vm2038, %v2031, %v2035
        %v2040 = vsel %vm2038, %v2033, %v2037
        %v2041 = vsel %vm2038, %v2035, %v2031
        %v2042 = vsel %vm2038, %v2037, %v2033
        %v2043 = vmax.f32 %v2022, %v2039
        %v2044 = vmax.f32 %v2024, %v2041
        %v2045 = vmax.f32 %v2026, %v2040
        %v2046 = vmax.f32 %v2028, %v2042
        %v2047 = vpack.c.bf16 %v2045, %v2043
        %v2048 = vpack.c.bf16 %v2046, %v2044
        %v2049 = vld [vmem:[#allocation4 + $0x1e0] sm:$0xf]
        %v2050 = vld [vmem:[#allocation4 + $0x1e8] sm:$0xf]
        %v2051 = vld [vmem:[#allocation4 + $0x1f0] sm:$0xf]
        %v2052 = vld [vmem:[#allocation4 + $0x1f8] sm:$0xf]
        %v2053 = vld [vmem:[#allocation4 + $0x200] sm:$0xf]
        %v2054 = vld [vmem:[#allocation4 + $0x208] sm:$0xf]
        %v2055 = vld [vmem:[#allocation4 + $0x210] sm:$0xf]
        %v2056 = vld [vmem:[#allocation4 + $0x218] sm:$0xf]
        %v2057 = vld [vmem:[#allocation4 + $0x220] sm:$0xf]
        %v2058 = vld [vmem:[#allocation4 + $0x228] sm:$0xf]
        %v2059 = vld [vmem:[#allocation4 + $0x230] sm:$0xf]
        %v2060 = vld [vmem:[#allocation4 + $0x238] sm:$0xf]
        %v2061 = vld [vmem:[#allocation4 + $0x240] sm:$0xf]
        %v2062 = vld [vmem:[#allocation4 + $0x248] sm:$0xf]
        %v2063 = vld [vmem:[#allocation4 + $0x250] sm:$0xf]
        %v2064 = vld [vmem:[#allocation4 + $0x258] sm:$0xf]
        %v2065 = vld [vmem:[#allocation4 + $0x260] sm:$0xf]
        %v2066 = vld [vmem:[#allocation4 + $0x268] sm:$0xf]
        %v2067 = vld [vmem:[#allocation4 + $0x270] sm:$0xf]
        %v2068 = vld [vmem:[#allocation4 + $0x278] sm:$0xf]
        %v2069 = vld [vmem:[#allocation4 + $0x280] sm:$0xf]
        %v2070 = vld [vmem:[#allocation4 + $0x288] sm:$0xf]
        %v2071 = vld [vmem:[#allocation4 + $0x290] sm:$0xf]
        %v2072 = vld [vmem:[#allocation4 + $0x298] sm:$0xf]
        %v2073 = vld [vmem:[#allocation4 + $0x2a0] sm:$0xf]
        %v2074 = vld [vmem:[#allocation4 + $0x2a8] sm:$0xf]
        %v2075 = vld [vmem:[#allocation4 + $0x2b0] sm:$0xf]
        %v2076 = vld [vmem:[#allocation4 + $0x2b8] sm:$0xf]
        %v2077 = vld [vmem:[#allocation4 + $0x2c0] sm:$0xf]
        %v2078 = vld [vmem:[#allocation4 + $0x2c8] sm:$0xf]
        %v2079 = vld [vmem:[#allocation4 + $0x2d0] sm:$0xf]
        %v2080 = vld [vmem:[#allocation4 + $0x2d8] sm:$0xf]
        %v2113 = vunpack.c.l.b16 %v2049
        %v2114 = vunpack.c.l.b16 %v2050
        %v2115 = vunpack.c.l.b16 %v2051
        %v2116 = vunpack.c.l.b16 %v2052
        %v2117 = vunpack.c.l.b16 %v2053
        %v2118 = vunpack.c.l.b16 %v2054
        %v2119 = vunpack.c.l.b16 %v2055
        %v2120 = vunpack.c.l.b16 %v2056
        %v2121 = vunpack.c.l.b16 %v2057
        %v2122 = vunpack.c.l.b16 %v2058
        %v2123 = vunpack.c.l.b16 %v2059
        %v2124 = vunpack.c.l.b16 %v2060
        %v2125 = vunpack.c.l.b16 %v2061
        %v2126 = vunpack.c.l.b16 %v2062
        %v2127 = vunpack.c.l.b16 %v2063
        %v2128 = vunpack.c.l.b16 %v2064
        %v2129 = vunpack.c.l.b16 %v2065
        %v2130 = vunpack.c.l.b16 %v2066
        %v2131 = vunpack.c.l.b16 %v2067
        %v2132 = vunpack.c.l.b16 %v2068
        %v2133 = vunpack.c.l.b16 %v2069
        %v2134 = vunpack.c.l.b16 %v2070
        %v2135 = vunpack.c.l.b16 %v2071
        %v2136 = vunpack.c.l.b16 %v2072
        %v2137 = vunpack.c.l.b16 %v2073
        %v2138 = vunpack.c.l.b16 %v2074
        %v2139 = vunpack.c.l.b16 %v2075
        %v2140 = vunpack.c.l.b16 %v2076
        %v2141 = vunpack.c.l.b16 %v2077
        %v2142 = vunpack.c.l.b16 %v2078
        %v2143 = vunpack.c.l.b16 %v2079
        %v2144 = vunpack.c.l.b16 %v2080
        %v2145 = vpack.c.b16 %v2114, %v2113
        %v2146 = vpack.c.b16 %v2116, %v2115
        %v2147 = vpack.c.b16 %v2118, %v2117
        %v2148 = vpack.c.b16 %v2120, %v2119
        %v2149 = vpack.c.b16 %v2122, %v2121
        %v2150 = vpack.c.b16 %v2124, %v2123
        %v2151 = vpack.c.b16 %v2126, %v2125
        %v2152 = vpack.c.b16 %v2128, %v2127
        %v2153 = vpack.c.b16 %v2130, %v2129
        %v2154 = vpack.c.b16 %v2132, %v2131
        %v2155 = vpack.c.b16 %v2134, %v2133
        %v2156 = vpack.c.b16 %v2136, %v2135
        %v2157 = vpack.c.b16 %v2138, %v2137
        %v2158 = vpack.c.b16 %v2140, %v2139
        %v2159 = vpack.c.b16 %v2142, %v2141
        %v2160 = vpack.c.b16 %v2144, %v2143
        %2177 = vmatprep.subr.bf16.mxu0 0
        %2178 = vmatpush1.bf16.msra.mxu0 %v2145
        %2179 = vmatprep.subr.bf16.mxu0 0
        %2180 = vmatpush1.bf16.msra.mxu0 %v2146
        %2181 = vmatprep.subr.bf16.mxu0 0
        %2182 = vmatpush1.bf16.msra.mxu0 %v2147
        %2183 = vmatprep.subr.bf16.mxu0 0
        %2184 = vmatpush1.bf16.msra.mxu0 %v2148
        %2185 = vmatprep.subr.bf16.mxu0 0
        %2186 = vmatpush1.bf16.msra.mxu0 %v2149
        %2187 = vmatprep.subr.bf16.mxu0 0
        %2188 = vmatpush1.bf16.msra.mxu0 %v2150
        %2189 = vmatprep.subr.bf16.mxu0 0
        %2190 = vmatpush1.bf16.msra.mxu0 %v2151
        %2191 = vmatprep.subr.bf16.mxu0 0
        %2192 = vmatpush1.bf16.msra.mxu0 %v2152
        %2193 = vmatprep.subr.bf16.mxu0 0
        %2194 = vmatpush1.bf16.msra.mxu0 %v2153
        %2195 = vmatprep.subr.bf16.mxu0 0
        %2196 = vmatpush1.bf16.msra.mxu0 %v2154
        %2197 = vmatprep.subr.bf16.mxu0 0
        %2198 = vmatpush1.bf16.msra.mxu0 %v2155
        %2199 = vmatprep.subr.bf16.mxu0 0
        %2200 = vmatpush1.bf16.msra.mxu0 %v2156
        %2201 = vmatprep.subr.bf16.mxu0 0
        %2202 = vmatpush1.bf16.msra.mxu0 %v2157
        %2203 = vmatprep.subr.bf16.mxu0 0
        %2204 = vmatpush1.bf16.msra.mxu0 %v2158
        %2205 = vmatprep.subr.bf16.mxu0 0
        %2206 = vmatpush1.bf16.msra.mxu0 %v2159
        %2207 = vmatprep.subr.bf16.mxu0 0
        %2208 = vmatpush1.bf16.msra.mxu0 %v2160
        %2209 = vmatprep.mubr.bf16.mxu0 %v2048
        %2210 = vmatmul.mubr.bf16.gmra.mrb[0].mxu0 %v2047
        %v2211 = vpop.f32.mrb[0].mxu0
        %v2212 = vadd.f32 0.0, %v2211
        %v2213 = vpop.f32.mrb[0].mxu0
        %v2214 = vpop.f32.mrb[0].mxu0
        %v2215 = vadd.f32 0.0, %v2214
        %v2216 = vpop.f32.mrb[0].mxu0
        %2217 = vdwg.mxu0
        %v2218 = vpack.c.bf16 %v2215, %v2212
        %v2219 = vld [vmem:[#allocation2 + $0x1e0] sm:$0xff]
        %v2220 = vld [vmem:[#allocation2 + $0x1e8] sm:$0xff]
        %v2221 = vld [vmem:[#allocation2 + $0x1f0] sm:$0xff]
        %v2222 = vld [vmem:[#allocation2 + $0x1f8] sm:$0xff]
        %v2223 = vld [vmem:[#allocation2 + $0x200] sm:$0xff]
        %v2224 = vld [vmem:[#allocation2 + $0x208] sm:$0xff]
        %v2225 = vld [vmem:[#allocation2 + $0x210] sm:$0xff]
        %v2226 = vld [vmem:[#allocation2 + $0x218] sm:$0xff]
        %v2227 = vld [vmem:[#allocation2 + $0x220] sm:$0xff]
        %v2228 = vld [vmem:[#allocation2 + $0x228] sm:$0xff]
        %v2229 = vld [vmem:[#allocation2 + $0x230] sm:$0xff]
        %v2230 = vld [vmem:[#allocation2 + $0x238] sm:$0xff]
        %v2231 = vld [vmem:[#allocation2 + $0x240] sm:$0xff]
        %v2232 = vld [vmem:[#allocation2 + $0x248] sm:$0xff]
        %v2233 = vld [vmem:[#allocation2 + $0x250] sm:$0xff]
        %v2234 = vld [vmem:[#allocation2 + $0x258] sm:$0xff]
        %v2235 = vld [vmem:[#allocation2 + $0x260] sm:$0xff]
        %v2236 = vld [vmem:[#allocation2 + $0x268] sm:$0xff]
        %v2237 = vld [vmem:[#allocation2 + $0x270] sm:$0xff]
        %v2238 = vld [vmem:[#allocation2 + $0x278] sm:$0xff]
        %v2239 = vld [vmem:[#allocation2 + $0x280] sm:$0xff]
        %v2240 = vld [vmem:[#allocation2 + $0x288] sm:$0xff]
        %v2241 = vld [vmem:[#allocation2 + $0x290] sm:$0xff]
        %v2242 = vld [vmem:[#allocation2 + $0x298] sm:$0xff]
        %v2243 = vld [vmem:[#allocation2 + $0x2a0] sm:$0xff]
        %v2244 = vld [vmem:[#allocation2 + $0x2a8] sm:$0xff]
        %v2245 = vld [vmem:[#allocation2 + $0x2b0] sm:$0xff]
        %v2246 = vld [vmem:[#allocation2 + $0x2b8] sm:$0xff]
        %v2247 = vld [vmem:[#allocation2 + $0x2c0] sm:$0xff]
        %v2248 = vld [vmem:[#allocation2 + $0x2c8] sm:$0xff]
        %v2249 = vld [vmem:[#allocation2 + $0x2d0] sm:$0xff]
        %v2250 = vld [vmem:[#allocation2 + $0x2d8] sm:$0xff]
        %v2251 = vld [vmem:[#allocation2 + $0x2e0] sm:$0xff]
        %v2252 = vld [vmem:[#allocation2 + $0x2e8] sm:$0xff]
        %v2253 = vld [vmem:[#allocation2 + $0x2f0] sm:$0xff]
        %v2254 = vld [vmem:[#allocation2 + $0x2f8] sm:$0xff]
        %v2255 = vld [vmem:[#allocation2 + $0x300] sm:$0xff]
        %v2256 = vld [vmem:[#allocation2 + $0x308] sm:$0xff]
        %v2257 = vld [vmem:[#allocation2 + $0x310] sm:$0xff]
        %v2258 = vld [vmem:[#allocation2 + $0x318] sm:$0xff]
        %v2259 = vld [vmem:[#allocation2 + $0x320] sm:$0xff]
        %v2260 = vld [vmem:[#allocation2 + $0x328] sm:$0xff]
        %v2261 = vld [vmem:[#allocation2 + $0x330] sm:$0xff]
        %v2262 = vld [vmem:[#allocation2 + $0x338] sm:$0xff]
        %v2263 = vld [vmem:[#allocation2 + $0x340] sm:$0xff]
        %v2264 = vld [vmem:[#allocation2 + $0x348] sm:$0xff]
        %v2265 = vld [vmem:[#allocation2 + $0x350] sm:$0xff]
        %v2266 = vld [vmem:[#allocation2 + $0x358] sm:$0xff]
        %v2315 = vunpack.c.l.b16 %v2219
        %v2316 = vunpack.c.h.b16 %v2219
        %v2317 = vunpack.c.l.b16 %v2220
        %v2318 = vunpack.c.h.b16 %v2220
        %v2319 = vunpack.c.l.b16 %v2221
        %v2320 = vunpack.c.h.b16 %v2221
        %v2321 = vunpack.c.l.b16 %v2222
        %v2322 = vunpack.c.h.b16 %v2222
        %v2323 = vunpack.c.l.b16 %v2223
        %v2324 = vunpack.c.h.b16 %v2223
        %v2325 = vunpack.c.l.b16 %v2224
        %v2326 = vunpack.c.h.b16 %v2224
        %v2327 = vunpack.c.l.b16 %v2225
        %v2328 = vunpack.c.h.b16 %v2225
        %v2329 = vunpack.c.l.b16 %v2226
        %v2330 = vunpack.c.h.b16 %v2226
        %v2331 = vunpack.c.l.b16 %v2227
        %v2332 = vunpack.c.h.b16 %v2227
        %v2333 = vunpack.c.l.b16 %v2228
        %v2334 = vunpack.c.h.b16 %v2228
        %v2335 = vunpack.c.l.b16 %v2229
        %v2336 = vunpack.c.h.b16 %v2229
        %v2337 = vunpack.c.l.b16 %v2230
        %v2338 = vunpack.c.h.b16 %v2230
        %v2339 = vunpack.c.l.b16 %v2231
        %v2340 = vunpack.c.h.b16 %v2231
        %v2341 = vunpack.c.l.b16 %v2232
        %v2342 = vunpack.c.h.b16 %v2232
        %v2343 = vunpack.c.l.b16 %v2233
        %v2344 = vunpack.c.h.b16 %v2233
        %v2345 = vunpack.c.l.b16 %v2234
        %v2346 = vunpack.c.h.b16 %v2234
        %v2347 = vunpack.c.l.b16 %v2235
        %v2348 = vunpack.c.h.b16 %v2235
        %v2349 = vunpack.c.l.b16 %v2236
        %v2350 = vunpack.c.h.b16 %v2236
        %v2351 = vunpack.c.l.b16 %v2237
        %v2352 = vunpack.c.h.b16 %v2237
        %v2353 = vunpack.c.l.b16 %v2238
        %v2354 = vunpack.c.h.b16 %v2238
        %v2355 = vunpack.c.l.b16 %v2239
        %v2356 = vunpack.c.h.b16 %v2239
        %v2357 = vunpack.c.l.b16 %v2240
        %v2358 = vunpack.c.h.b16 %v2240
        %v2359 = vunpack.c.l.b16 %v2241
        %v2360 = vunpack.c.h.b16 %v2241
        %v2361 = vunpack.c.l.b16 %v2242
        %v2362 = vunpack.c.h.b16 %v2242
        %v2363 = vunpack.c.l.b16 %v2243
        %v2364 = vunpack.c.h.b16 %v2243
        %v2365 = vunpack.c.l.b16 %v2244
        %v2366 = vunpack.c.h.b16 %v2244
        %v2367 = vunpack.c.l.b16 %v2245
        %v2368 = vunpack.c.h.b16 %v2245
        %v2369 = vunpack.c.l.b16 %v2246
        %v2370 = vunpack.c.h.b16 %v2246
        %v2371 = vunpack.c.l.b16 %v2247
        %v2372 = vunpack.c.h.b16 %v2247
        %v2373 = vunpack.c.l.b16 %v2248
        %v2374 = vunpack.c.h.b16 %v2248
        %v2375 = vunpack.c.l.b16 %v2249
        %v2376 = vunpack.c.h.b16 %v2249
        %v2377 = vunpack.c.l.b16 %v2250
        %v2378 = vunpack.c.h.b16 %v2250
        %v2379 = vunpack.c.l.b16 %v2251
        %v2380 = vunpack.c.h.b16 %v2251
        %v2381 = vunpack.c.l.b16 %v2252
        %v2382 = vunpack.c.h.b16 %v2252
        %v2383 = vunpack.c.l.b16 %v2253
        %v2384 = vunpack.c.h.b16 %v2253
        %v2385 = vunpack.c.l.b16 %v2254
        %v2386 = vunpack.c.h.b16 %v2254
        %v2387 = vunpack.c.l.b16 %v2255
        %v2388 = vunpack.c.h.b16 %v2255
        %v2389 = vunpack.c.l.b16 %v2256
        %v2390 = vunpack.c.h.b16 %v2256
        %v2391 = vunpack.c.l.b16 %v2257
        %v2392 = vunpack.c.h.b16 %v2257
        %v2393 = vunpack.c.l.b16 %v2258
        %v2394 = vunpack.c.h.b16 %v2258
        %v2395 = vunpack.c.l.b16 %v2259
        %v2396 = vunpack.c.h.b16 %v2259
        %v2397 = vunpack.c.l.b16 %v2260
        %v2398 = vunpack.c.h.b16 %v2260
        %v2399 = vunpack.c.l.b16 %v2261
        %v2400 = vunpack.c.h.b16 %v2261
        %v2401 = vunpack.c.l.b16 %v2262
        %v2402 = vunpack.c.h.b16 %v2262
        %v2403 = vunpack.c.l.b16 %v2263
        %v2404 = vunpack.c.h.b16 %v2263
        %v2405 = vunpack.c.l.b16 %v2264
        %v2406 = vunpack.c.h.b16 %v2264
        %v2407 = vunpack.c.l.b16 %v2265
        %v2408 = vunpack.c.h.b16 %v2265
        %v2409 = vunpack.c.l.b16 %v2266
        %v2410 = vunpack.c.h.b16 %v2266
        %v2411 = vpack.c.b16 %v2321, %v2315
        %v2412 = vpack.c.b16 %v2322, %v2316
        %v2413 = vpack.c.b16 %v2323, %v2317
        %v2414 = vpack.c.b16 %v2324, %v2318
        %v2415 = vpack.c.b16 %v2325, %v2319
        %v2416 = vpack.c.b16 %v2326, %v2320
        %v2417 = vpack.c.b16 %v2333, %v2327
        %v2418 = vpack.c.b16 %v2334, %v2328
        %v2419 = vpack.c.b16 %v2335, %v2329
        %v2420 = vpack.c.b16 %v2336, %v2330
        %v2421 = vpack.c.b16 %v2337, %v2331
        %v2422 = vpack.c.b16 %v2338, %v2332
        %v2423 = vpack.c.b16 %v2345, %v2339
        %v2424 = vpack.c.b16 %v2346, %v2340
        %v2425 = vpack.c.b16 %v2347, %v2341
        %v2426 = vpack.c.b16 %v2348, %v2342
        %v2427 = vpack.c.b16 %v2349, %v2343
        %v2428 = vpack.c.b16 %v2350, %v2344
        %v2429 = vpack.c.b16 %v2357, %v2351
        %v2430 = vpack.c.b16 %v2358, %v2352
        %v2431 = vpack.c.b16 %v2359, %v2353
        %v2432 = vpack.c.b16 %v2360, %v2354
        %v2433 = vpack.c.b16 %v2361, %v2355
        %v2434 = vpack.c.b16 %v2362, %v2356
        %v2435 = vpack.c.b16 %v2369, %v2363
        %v2436 = vpack.c.b16 %v2370, %v2364
        %v2437 = vpack.c.b16 %v2371, %v2365
        %v2438 = vpack.c.b16 %v2372, %v2366
        %v2439 = vpack.c.b16 %v2373, %v2367
        %v2440 = vpack.c.b16 %v2374, %v2368
        %v2441 = vpack.c.b16 %v2381, %v2375
        %v2442 = vpack.c.b16 %v2382, %v2376
        %v2443 = vpack.c.b16 %v2383, %v2377
        %v2444 = vpack.c.b16 %v2384, %v2378
        %v2445 = vpack.c.b16 %v2385, %v2379
        %v2446 = vpack.c.b16 %v2386, %v2380
        %v2447 = vpack.c.b16 %v2393, %v2387
        %v2448 = vpack.c.b16 %v2394, %v2388
        %v2449 = vpack.c.b16 %v2395, %v2389
        %v2450 = vpack.c.b16 %v2396, %v2390
        %v2451 = vpack.c.b16 %v2397, %v2391
        %v2452 = vpack.c.b16 %v2398, %v2392
        %v2453 = vpack.c.b16 %v2405, %v2399
        %v2454 = vpack.c.b16 %v2406, %v2400
        %v2455 = vpack.c.b16 %v2407, %v2401
        %v2456 = vpack.c.b16 %v2408, %v2402
        %v2457 = vpack.c.b16 %v2409, %v2403
        %v2458 = vpack.c.b16 %v2410, %v2404
        %2507 = vmatprep.subr.bf16.mxu0 %v2412
        %2508 = vmatpush1.bf16.msra.mxu0 %v2411
        %2509 = vmatprep.subr.bf16.mxu0 %v2418
        %2510 = vmatpush1.bf16.msra.mxu0 %v2417
        %2511 = vmatprep.subr.bf16.mxu0 %v2424
        %2512 = vmatpush1.bf16.msra.mxu0 %v2423
        %2513 = vmatprep.subr.bf16.mxu0 %v2430
        %2514 = vmatpush1.bf16.msra.mxu0 %v2429
        %2515 = vmatprep.subr.bf16.mxu0 %v2436
        %2516 = vmatpush1.bf16.msra.mxu0 %v2435
        %2517 = vmatprep.subr.bf16.mxu0 %v2442
        %2518 = vmatpush1.bf16.msra.mxu0 %v2441
        %2519 = vmatprep.subr.bf16.mxu0 %v2448
        %2520 = vmatpush1.bf16.msra.mxu0 %v2447
        %2521 = vmatprep.subr.bf16.mxu0 %v2454
        %2522 = vmatpush1.bf16.msra.mxu0 %v2453
        %2523 = vmatprep.subr.bf16.mxu0 0
        %2524 = vmatpush1.bf16.msra.mxu0 0
        %2525 = vmatprep.subr.bf16.mxu0 0
        %2526 = vmatpush1.bf16.msra.mxu0 0
        %2527 = vmatprep.subr.bf16.mxu0 0
        %2528 = vmatpush1.bf16.msra.mxu0 0
        %2529 = vmatprep.subr.bf16.mxu0 0
        %2530 = vmatpush1.bf16.msra.mxu0 0
        %2531 = vmatprep.subr.bf16.mxu0 0
        %2532 = vmatpush1.bf16.msra.mxu0 0
        %2533 = vmatprep.subr.bf16.mxu0 0
        %2534 = vmatpush1.bf16.msra.mxu0 0
        %2535 = vmatprep.subr.bf16.mxu0 0
        %2536 = vmatpush1.bf16.msra.mxu0 0
        %2537 = vmatprep.subr.bf16.mxu0 0
        %2538 = vmatpush1.bf16.msra.mxu0 0
        %2539 = vmatprep.mubr.bf16.mxu0 0
        %2540 = vmatmul.mubr.bf16.gmra.mrb[0].mxu0 %v2218
        %v2541 = vpop.f32.mrb[0].mxu0
        %v2542 = vadd.f32 0.0, %v2541
        %v2543 = vpop.f32.mrb[0].mxu0
        %v2544 = vadd.f32 0.0, %v2543
        %v2545 = vpop.f32.mrb[0].mxu0
        %v2546 = vadd.f32 0.0, %v2545
        %v2547 = vpop.f32.mrb[0].mxu0
        %v2548 = vadd.f32 0.0, %v2547
        %2549 = vdwg.mxu0
        %2550 = vmatprep.subr.bf16.mxu0 %v2414
        %2551 = vmatpush1.bf16.msra.mxu0 %v2413
        %2552 = vmatprep.subr.bf16.mxu0 %v2420
        %2553 = vmatpush1.bf16.msra.mxu0 %v2419
        %2554 = vmatprep.subr.bf16.mxu0 %v2426
        %2555 = vmatpush1.bf16.msra.mxu0 %v2425
        %2556 = vmatprep.subr.bf16.mxu0 %v2432
        %2557 = vmatpush1.bf16.msra.mxu0 %v2431
        %2558 = vmatprep.subr.bf16.mxu0 %v2438
        %2559 = vmatpush1.bf16.msra.mxu0 %v2437
        %2560 = vmatprep.subr.bf16.mxu0 %v2444
        %2561 = vmatpush1.bf16.msra.mxu0 %v2443
        %2562 = vmatprep.subr.bf16.mxu0 %v2450
        %2563 = vmatpush1.bf16.msra.mxu0 %v2449
        %2564 = vmatprep.subr.bf16.mxu0 %v2456
        %2565 = vmatpush1.bf16.msra.mxu0 %v2455
        %2566 = vmatprep.subr.bf16.mxu0 0
        %2567 = vmatpush1.bf16.msra.mxu0 0
        %2568 = vmatprep.subr.bf16.mxu0 0
        %2569 = vmatpush1.bf16.msra.mxu0 0
        %2570 = vmatprep.subr.bf16.mxu0 0
        %2571 = vmatpush1.bf16.msra.mxu0 0
        %2572 = vmatprep.subr.bf16.mxu0 0
        %2573 = vmatpush1.bf16.msra.mxu0 0
        %2574 = vmatprep.subr.bf16.mxu0 0
        %2575 = vmatpush1.bf16.msra.mxu0 0
        %2576 = vmatprep.subr.bf16.mxu0 0
        %2577 = vmatpush1.bf16.msra.mxu0 0
        %2578 = vmatprep.subr.bf16.mxu0 0
        %2579 = vmatpush1.bf16.msra.mxu0 0
        %2580 = vmatprep.subr.bf16.mxu0 0
        %2581 = vmatpush1.bf16.msra.mxu0 0
        %2582 = vmatprep.mubr.bf16.mxu0 0
        %2583 = vmatmul.mubr.bf16.gmra.mrb[0].mxu0 %v2218
        %v2584 = vpop.f32.mrb[0].mxu0
        %v2585 = vadd.f32 0.0, %v2584
        %v2586 = vpop.f32.mrb[0].mxu0
        %v2587 = vadd.f32 0.0, %v2586
        %v2588 = vpop.f32.mrb[0].mxu0
        %v2589 = vadd.f32 0.0, %v2588
        %v2590 = vpop.f32.mrb[0].mxu0
        %v2591 = vadd.f32 0.0, %v2590
        %2592 = vdwg.mxu0
        %2593 = vmatprep.subr.bf16.mxu0 %v2416
        %2594 = vmatpush1.bf16.msra.mxu0 %v2415
        %2595 = vmatprep.subr.bf16.mxu0 %v2422
        %2596 = vmatpush1.bf16.msra.mxu0 %v2421
        %2597 = vmatprep.subr.bf16.mxu0 %v2428
        %2598 = vmatpush1.bf16.msra.mxu0 %v2427
        %2599 = vmatprep.subr.bf16.mxu0 %v2434
        %2600 = vmatpush1.bf16.msra.mxu0 %v2433
        %2601 = vmatprep.subr.bf16.mxu0 %v2440
        %2602 = vmatpush1.bf16.msra.mxu0 %v2439
        %2603 = vmatprep.subr.bf16.mxu0 %v2446
        %2604 = vmatpush1.bf16.msra.mxu0 %v2445
        %2605 = vmatprep.subr.bf16.mxu0 %v2452
        %2606 = vmatpush1.bf16.msra.mxu0 %v2451
        %2607 = vmatprep.subr.bf16.mxu0 %v2458
        %2608 = vmatpush1.bf16.msra.mxu0 %v2457
        %2609 = vmatprep.subr.bf16.mxu0 0
        %2610 = vmatpush1.bf16.msra.mxu0 0
        %2611 = vmatprep.subr.bf16.mxu0 0
        %2612 = vmatpush1.bf16.msra.mxu0 0
        %2613 = vmatprep.subr.bf16.mxu0 0
        %2614 = vmatpush1.bf16.msra.mxu0 0
        %2615 = vmatprep.subr.bf16.mxu0 0
        %2616 = vmatpush1.bf16.msra.mxu0 0
        %2617 = vmatprep.subr.bf16.mxu0 0
        %2618 = vmatpush1.bf16.msra.mxu0 0
        %2619 = vmatprep.subr.bf16.mxu0 0
        %2620 = vmatpush1.bf16.msra.mxu0 0
        %2621 = vmatprep.subr.bf16.mxu0 0
        %2622 = vmatpush1.bf16.msra.mxu0 0
        %2623 = vmatprep.subr.bf16.mxu0 0
        %2624 = vmatpush1.bf16.msra.mxu0 0
        %2625 = vmatprep.mubr.bf16.mxu0 0
        %2626 = vmatmul.mubr.bf16.gmra.mrb[0].mxu0 %v2218
        %v2627 = vpop.f32.mrb[0].mxu0
        %v2628 = vadd.f32 0.0, %v2627
        %v2629 = vpop.f32.mrb[0].mxu0
        %v2630 = vadd.f32 0.0, %v2629
        %v2631 = vpop.f32.mrb[0].mxu0
        %v2632 = vadd.f32 0.0, %v2631
        %v2633 = vpop.f32.mrb[0].mxu0
        %v2634 = vadd.f32 0.0, %v2633
        %2635 = vdwg.mxu0
        %v2636 = vrot.slane %v2542, 7
        %v2637 = vrot.slane %v2544, 7
        %v2638 = vrot.slane %v2546, 7
        %v2639 = vrot.slane %v2548, 7
        %v2640 = vsel %vm894, %v2636, %v2638
        %v2641 = vsel %vm894, %v2637, %v2639
        %v2642 = vsel %vm894, %v2638, %v2636
        %v2643 = vsel %vm894, %v2639, %v2637
        %v2644 = vsel %vm870, 0.0, %v2642
        %v2645 = vsel %vm870, 0.0, %v2643
        %v2646 = vsel %vm871, 0.0, %v2640
        %v2647 = vsel %vm871, 0.0, %v2641
        %vm2648 = vcmp.eq.s32.totalorder %v862, 15
        %vm2649 = vcmp.eq.s32.totalorder %v863, 15
        %v2650 = vrot.slane %v2628, 1
        %v2651 = vrot.slane %v2630, 1
        %v2652 = vrot.slane %v2632, 1
        %v2653 = vrot.slane %v2634, 1
        %v2654 = vsel %vm951, %v2650, %v2652
        %v2655 = vsel %vm951, %v2651, %v2653
        %v2656 = vsel %vm951, %v2652, %v2650
        %v2657 = vsel %vm951, %v2653, %v2651
        %v2658 = vsel %vm2648, 0.0, %v2654
        %v2659 = vsel %vm2648, 0.0, %v2655
        %v2660 = vsel %vm2649, 0.0, %v2656
        %v2661 = vsel %vm2649, 0.0, %v2657
        %v2662 = vld [vmem:[#allocation4 + $0x2e0] sm:$0x11]
        %v2663 = vunpack.c.l.bf16 %v2662
        %v2664 = vunpack.c.h.bf16 %v2662
        %v2665 = vadd.f32 %v2644, %v2585
        %v2666 = vadd.f32 %v2645, %v2587
        %v2667 = vadd.f32 %v2646, %v2589
        %v2668 = vadd.f32 %v2647, %v2591
        %v2669 = vadd.f32 %v2665, %v2658
        %v2670 = vadd.f32 %v2666, %v2659
        %v2671 = vadd.f32 %v2667, %v2660
        %v2672 = vadd.f32 %v2668, %v2661
        %v2673 = vlaneseq
        %v2674 = vshrl.u32 %v2673, 7
        %v2675 = vsub.s32 0, %v2674
        %v2676 = vrot.slane %v2663, %v2675
        %v2677 = vlaneseq
        %v2678 = vshrl.u32 %v2677, 7
        %v2679 = vsub.s32 0, %v2678
        %v2680 = vrot.slane %v2664, %v2679
        %v2681 = vadd.f32 %v2669, %v2676
        %v2682 = vadd.f32 %v2670, %v2680
        %v2683 = vadd.f32 %v2671, %v2676
        %v2684 = vadd.f32 %v2672, %v2680
        %v2685 = vmax.f32 %v2681, 0.0
        %v2686 = vmax.f32 %v2682, 0.0
        %v2687 = vmax.f32 %v2683, 0.0
        %v2688 = vmax.f32 %v2684, 0.0
        %v2689 = vpack.c.bf16 %v2687, %v2685
        %v2690 = vpack.c.bf16 %v2688, %v2686
        %v2691 = vld [vmem:[#allocation2 + $0x360] sm:$0xff]
        %v2692 = vld [vmem:[#allocation2 + $0x368] sm:$0xff]
        %v2693 = vld [vmem:[#allocation2 + $0x370] sm:$0xff]
        %v2694 = vld [vmem:[#allocation2 + $0x378] sm:$0xff]
        %v2695 = vld [vmem:[#allocation2 + $0x380] sm:$0xff]
        %v2696 = vld [vmem:[#allocation2 + $0x388] sm:$0xff]
        %v2697 = vld [vmem:[#allocation2 + $0x390] sm:$0xff]
        %v2698 = vld [vmem:[#allocation2 + $0x398] sm:$0xff]
        %v2699 = vld [vmem:[#allocation2 + $0x3a0] sm:$0xff]
        %v2700 = vld [vmem:[#allocation2 + $0x3a8] sm:$0xff]
        %v2701 = vld [vmem:[#allocation2 + $0x3b0] sm:$0xff]
        %v2702 = vld [vmem:[#allocation2 + $0x3b8] sm:$0xff]
        %v2703 = vld [vmem:[#allocation2 + $0x3c0] sm:$0xff]
        %v2704 = vld [vmem:[#allocation2 + $0x3c8] sm:$0xff]
        %v2705 = vld [vmem:[#allocation2 + $0x3d0] sm:$0xff]
        %v2706 = vld [vmem:[#allocation2 + $0x3d8] sm:$0xff]
        %v2707 = vld [vmem:[#allocation2 + $0x3e0] sm:$0xff]
        %v2708 = vld [vmem:[#allocation2 + $0x3e8] sm:$0xff]
        %v2709 = vld [vmem:[#allocation2 + $0x3f0] sm:$0xff]
        %v2710 = vld [vmem:[#allocation2 + $0x3f8] sm:$0xff]
        %v2711 = vld [vmem:[#allocation2 + $0x400] sm:$0xff]
        %v2712 = vld [vmem:[#allocation2 + $0x408] sm:$0xff]
        %v2713 = vld [vmem:[#allocation2 + $0x410] sm:$0xff]
        %v2714 = vld [vmem:[#allocation2 + $0x418] sm:$0xff]
        %v2715 = vld [vmem:[#allocation2 + $0x420] sm:$0xff]
        %v2716 = vld [vmem:[#allocation2 + $0x428] sm:$0xff]
        %v2717 = vld [vmem:[#allocation2 + $0x430] sm:$0xff]
        %v2718 = vld [vmem:[#allocation2 + $0x438] sm:$0xff]
        %v2719 = vld [vmem:[#allocation2 + $0x440] sm:$0xff]
        %v2720 = vld [vmem:[#allocation2 + $0x448] sm:$0xff]
        %v2721 = vld [vmem:[#allocation2 + $0x450] sm:$0xff]
        %v2722 = vld [vmem:[#allocation2 + $0x458] sm:$0xff]
        %v2723 = vld [vmem:[#allocation2 + $0x460] sm:$0xff]
        %v2724 = vld [vmem:[#allocation2 + $0x468] sm:$0xff]
        %v2725 = vld [vmem:[#allocation2 + $0x470] sm:$0xff]
        %v2726 = vld [vmem:[#allocation2 + $0x478] sm:$0xff]
        %v2727 = vld [vmem:[#allocation2 + $0x480] sm:$0xff]
        %v2728 = vld [vmem:[#allocation2 + $0x488] sm:$0xff]
        %v2729 = vld [vmem:[#allocation2 + $0x490] sm:$0xff]
        %v2730 = vld [vmem:[#allocation2 + $0x498] sm:$0xff]
        %v2731 = vld [vmem:[#allocation2 + $0x4a0] sm:$0xff]
        %v2732 = vld [vmem:[#allocation2 + $0x4a8] sm:$0xff]
        %v2733 = vld [vmem:[#allocation2 + $0x4b0] sm:$0xff]
        %v2734 = vld [vmem:[#allocation2 + $0x4b8] sm:$0xff]
        %v2735 = vld [vmem:[#allocation2 + $0x4c0] sm:$0xff]
        %v2736 = vld [vmem:[#allocation2 + $0x4c8] sm:$0xff]
        %v2737 = vld [vmem:[#allocation2 + $0x4d0] sm:$0xff]
        %v2738 = vld [vmem:[#allocation2 + $0x4d8] sm:$0xff]
        %v2739 = vld [vmem:[#allocation2 + $0x4e0] sm:$0xff]
        %v2740 = vld [vmem:[#allocation2 + $0x4e8] sm:$0xff]
        %v2741 = vld [vmem:[#allocation2 + $0x4f0] sm:$0xff]
        %v2742 = vld [vmem:[#allocation2 + $0x4f8] sm:$0xff]
        %v2743 = vld [vmem:[#allocation2 + $0x500] sm:$0xff]
        %v2744 = vld [vmem:[#allocation2 + $0x508] sm:$0xff]
        %v2745 = vld [vmem:[#allocation2 + $0x510] sm:$0xff]
        %v2746 = vld [vmem:[#allocation2 + $0x518] sm:$0xff]
        %v2747 = vld [vmem:[#allocation2 + $0x520] sm:$0xff]
        %v2748 = vld [vmem:[#allocation2 + $0x528] sm:$0xff]
        %v2749 = vld [vmem:[#allocation2 + $0x530] sm:$0xff]
        %v2750 = vld [vmem:[#allocation2 + $0x538] sm:$0xff]
        %v2751 = vld [vmem:[#allocation2 + $0x540] sm:$0xff]
        %v2752 = vld [vmem:[#allocation2 + $0x548] sm:$0xff]
        %v2753 = vld [vmem:[#allocation2 + $0x550] sm:$0xff]
        %v2754 = vld [vmem:[#allocation2 + $0x558] sm:$0xff]
        %v2755 = vld [vmem:[#allocation2 + $0x560] sm:$0xff]
        %v2756 = vld [vmem:[#allocation2 + $0x568] sm:$0xff]
        %v2757 = vld [vmem:[#allocation2 + $0x570] sm:$0xff]
        %v2758 = vld [vmem:[#allocation2 + $0x578] sm:$0xff]
        %v2759 = vld [vmem:[#allocation2 + $0x580] sm:$0xff]
        %v2760 = vld [vmem:[#allocation2 + $0x588] sm:$0xff]
        %v2761 = vld [vmem:[#allocation2 + $0x590] sm:$0xff]
        %v2762 = vld [vmem:[#allocation2 + $0x598] sm:$0xff]
        %v2763 = vld [vmem:[#allocation2 + $0x5a0] sm:$0xff]
        %v2764 = vld [vmem:[#allocation2 + $0x5a8] sm:$0xff]
        %v2765 = vld [vmem:[#allocation2 + $0x5b0] sm:$0xff]
        %v2766 = vld [vmem:[#allocation2 + $0x5b8] sm:$0xff]
        %v2767 = vld [vmem:[#allocation2 + $0x5c0] sm:$0xff]
        %v2768 = vld [vmem:[#allocation2 + $0x5c8] sm:$0xff]
        %v2769 = vld [vmem:[#allocation2 + $0x5d0] sm:$0xff]
        %v2770 = vld [vmem:[#allocation2 + $0x5d8] sm:$0xff]
        %v2771 = vld [vmem:[#allocation2 + $0x5e0] sm:$0xff]
        %v2772 = vld [vmem:[#allocation2 + $0x5e8] sm:$0xff]
        %v2773 = vld [vmem:[#allocation2 + $0x5f0] sm:$0xff]
        %v2774 = vld [vmem:[#allocation2 + $0x5f8] sm:$0xff]
        %v2775 = vld [vmem:[#allocation2 + $0x600] sm:$0xff]
        %v2776 = vld [vmem:[#allocation2 + $0x608] sm:$0xff]
        %v2777 = vld [vmem:[#allocation2 + $0x610] sm:$0xff]
        %v2778 = vld [vmem:[#allocation2 + $0x618] sm:$0xff]
        %v2779 = vld [vmem:[#allocation2 + $0x620] sm:$0xff]
        %v2780 = vld [vmem:[#allocation2 + $0x628] sm:$0xff]
        %v2781 = vld [vmem:[#allocation2 + $0x630] sm:$0xff]
        %v2782 = vld [vmem:[#allocation2 + $0x638] sm:$0xff]
        %v2783 = vld [vmem:[#allocation2 + $0x640] sm:$0xff]
        %v2784 = vld [vmem:[#allocation2 + $0x648] sm:$0xff]
        %v2785 = vld [vmem:[#allocation2 + $0x650] sm:$0xff]
        %v2786 = vld [vmem:[#allocation2 + $0x658] sm:$0xff]
        %v2883 = vunpack.c.l.b16 %v2691
        %v2884 = vunpack.c.h.b16 %v2691
        %v2885 = vunpack.c.l.b16 %v2692
        %v2886 = vunpack.c.h.b16 %v2692
        %v2887 = vunpack.c.l.b16 %v2693
        %v2888 = vunpack.c.h.b16 %v2693
        %v2889 = vunpack.c.l.b16 %v2694
        %v2890 = vunpack.c.h.b16 %v2694
        %v2891 = vunpack.c.l.b16 %v2695
        %v2892 = vunpack.c.h.b16 %v2695
        %v2893 = vunpack.c.l.b16 %v2696
        %v2894 = vunpack.c.h.b16 %v2696
        %v2895 = vunpack.c.l.b16 %v2697
        %v2896 = vunpack.c.h.b16 %v2697
        %v2897 = vunpack.c.l.b16 %v2698
        %v2898 = vunpack.c.h.b16 %v2698
        %v2899 = vunpack.c.l.b16 %v2699
        %v2900 = vunpack.c.h.b16 %v2699
        %v2901 = vunpack.c.l.b16 %v2700
        %v2902 = vunpack.c.h.b16 %v2700
        %v2903 = vunpack.c.l.b16 %v2701
        %v2904 = vunpack.c.h.b16 %v2701
        %v2905 = vunpack.c.l.b16 %v2702
        %v2906 = vunpack.c.h.b16 %v2702
        %v2907 = vunpack.c.l.b16 %v2703
        %v2908 = vunpack.c.h.b16 %v2703
        %v2909 = vunpack.c.l.b16 %v2704
        %v2910 = vunpack.c.h.b16 %v2704
        %v2911 = vunpack.c.l.b16 %v2705
        %v2912 = vunpack.c.h.b16 %v2705
        %v2913 = vunpack.c.l.b16 %v2706
        %v2914 = vunpack.c.h.b16 %v2706
        %v2915 = vunpack.c.l.b16 %v2707
        %v2916 = vunpack.c.h.b16 %v2707
        %v2917 = vunpack.c.l.b16 %v2708
        %v2918 = vunpack.c.h.b16 %v2708
        %v2919 = vunpack.c.l.b16 %v2709
        %v2920 = vunpack.c.h.b16 %v2709
        %v2921 = vunpack.c.l.b16 %v2710
        %v2922 = vunpack.c.h.b16 %v2710
        %v2923 = vunpack.c.l.b16 %v2711
        %v2924 = vunpack.c.h.b16 %v2711
        %v2925 = vunpack.c.l.b16 %v2712
        %v2926 = vunpack.c.h.b16 %v2712
        %v2927 = vunpack.c.l.b16 %v2713
        %v2928 = vunpack.c.h.b16 %v2713
        %v2929 = vunpack.c.l.b16 %v2714
        %v2930 = vunpack.c.h.b16 %v2714
        %v2931 = vunpack.c.l.b16 %v2715
        %v2932 = vunpack.c.h.b16 %v2715
        %v2933 = vunpack.c.l.b16 %v2716
        %v2934 = vunpack.c.h.b16 %v2716
        %v2935 = vunpack.c.l.b16 %v2717
        %v2936 = vunpack.c.h.b16 %v2717
        %v2937 = vunpack.c.l.b16 %v2718
        %v2938 = vunpack.c.h.b16 %v2718
        %v2939 = vunpack.c.l.b16 %v2719
        %v2940 = vunpack.c.h.b16 %v2719
        %v2941 = vunpack.c.l.b16 %v2720
        %v2942 = vunpack.c.h.b16 %v2720
        %v2943 = vunpack.c.l.b16 %v2721
        %v2944 = vunpack.c.h.b16 %v2721
        %v2945 = vunpack.c.l.b16 %v2722
        %v2946 = vunpack.c.h.b16 %v2722
        %v2947 = vunpack.c.l.b16 %v2723
        %v2948 = vunpack.c.h.b16 %v2723
        %v2949 = vunpack.c.l.b16 %v2724
        %v2950 = vunpack.c.h.b16 %v2724
        %v2951 = vunpack.c.l.b16 %v2725
        %v2952 = vunpack.c.h.b16 %v2725
        %v2953 = vunpack.c.l.b16 %v2726
        %v2954 = vunpack.c.h.b16 %v2726
        %v2955 = vunpack.c.l.b16 %v2727
        %v2956 = vunpack.c.h.b16 %v2727
        %v2957 = vunpack.c.l.b16 %v2728
        %v2958 = vunpack.c.h.b16 %v2728
        %v2959 = vunpack.c.l.b16 %v2729
        %v2960 = vunpack.c.h.b16 %v2729
        %v2961 = vunpack.c.l.b16 %v2730
        %v2962 = vunpack.c.h.b16 %v2730
        %v2963 = vunpack.c.l.b16 %v2731
        %v2964 = vunpack.c.h.b16 %v2731
        %v2965 = vunpack.c.l.b16 %v2732
        %v2966 = vunpack.c.h.b16 %v2732
        %v2967 = vunpack.c.l.b16 %v2733
        %v2968 = vunpack.c.h.b16 %v2733
        %v2969 = vunpack.c.l.b16 %v2734
        %v2970 = vunpack.c.h.b16 %v2734
        %v2971 = vunpack.c.l.b16 %v2735
        %v2972 = vunpack.c.h.b16 %v2735
        %v2973 = vunpack.c.l.b16 %v2736
        %v2974 = vunpack.c.h.b16 %v2736
        %v2975 = vunpack.c.l.b16 %v2737
        %v2976 = vunpack.c.h.b16 %v2737
        %v2977 = vunpack.c.l.b16 %v2738
        %v2978 = vunpack.c.h.b16 %v2738
        %v2979 = vunpack.c.l.b16 %v2739
        %v2980 = vunpack.c.h.b16 %v2739
        %v2981 = vunpack.c.l.b16 %v2740
        %v2982 = vunpack.c.h.b16 %v2740
        %v2983 = vunpack.c.l.b16 %v2741
        %v2984 = vunpack.c.h.b16 %v2741
        %v2985 = vunpack.c.l.b16 %v2742
        %v2986 = vunpack.c.h.b16 %v2742
        %v2987 = vunpack.c.l.b16 %v2743
        %v2988 = vunpack.c.h.b16 %v2743
        %v2989 = vunpack.c.l.b16 %v2744
        %v2990 = vunpack.c.h.b16 %v2744
        %v2991 = vunpack.c.l.b16 %v2745
        %v2992 = vunpack.c.h.b16 %v2745
        %v2993 = vunpack.c.l.b16 %v2746
        %v2994 = vunpack.c.h.b16 %v2746
        %v2995 = vunpack.c.l.b16 %v2747
        %v2996 = vunpack.c.h.b16 %v2747
        %v2997 = vunpack.c.l.b16 %v2748
        %v2998 = vunpack.c.h.b16 %v2748
        %v2999 = vunpack.c.l.b16 %v2749
        %v3000 = vunpack.c.h.b16 %v2749
        %v3001 = vunpack.c.l.b16 %v2750
        %v3002 = vunpack.c.h.b16 %v2750
        %v3003 = vunpack.c.l.b16 %v2751
        %v3004 = vunpack.c.h.b16 %v2751
        %v3005 = vunpack.c.l.b16 %v2752
        %v3006 = vunpack.c.h.b16 %v2752
        %v3007 = vunpack.c.l.b16 %v2753
        %v3008 = vunpack.c.h.b16 %v2753
        %v3009 = vunpack.c.l.b16 %v2754
        %v3010 = vunpack.c.h.b16 %v2754
        %v3011 = vunpack.c.l.b16 %v2755
        %v3012 = vunpack.c.h.b16 %v2755
        %v3013 = vunpack.c.l.b16 %v2756
        %v3014 = vunpack.c.h.b16 %v2756
        %v3015 = vunpack.c.l.b16 %v2757
        %v3016 = vunpack.c.h.b16 %v2757
        %v3017 = vunpack.c.l.b16 %v2758
        %v3018 = vunpack.c.h.b16 %v2758
        %v3019 = vunpack.c.l.b16 %v2759
        %v3020 = vunpack.c.h.b16 %v2759
        %v3021 = vunpack.c.l.b16 %v2760
        %v3022 = vunpack.c.h.b16 %v2760
        %v3023 = vunpack.c.l.b16 %v2761
        %v3024 = vunpack.c.h.b16 %v2761
        %v3025 = vunpack.c.l.b16 %v2762
        %v3026 = vunpack.c.h.b16 %v2762
        %v3027 = vunpack.c.l.b16 %v2763
        %v3028 = vunpack.c.h.b16 %v2763
        %v3029 = vunpack.c.l.b16 %v2764
        %v3030 = vunpack.c.h.b16 %v2764
        %v3031 = vunpack.c.l.b16 %v2765
        %v3032 = vunpack.c.h.b16 %v2765
        %v3033 = vunpack.c.l.b16 %v2766
        %v3034 = vunpack.c.h.b16 %v2766
        %v3035 = vunpack.c.l.b16 %v2767
        %v3036 = vunpack.c.h.b16 %v2767
        %v3037 = vunpack.c.l.b16 %v2768
        %v3038 = vunpack.c.h.b16 %v2768
        %v3039 = vunpack.c.l.b16 %v2769
        %v3040 = vunpack.c.h.b16 %v2769
        %v3041 = vunpack.c.l.b16 %v2770
        %v3042 = vunpack.c.h.b16 %v2770
        %v3043 = vunpack.c.l.b16 %v2771
        %v3044 = vunpack.c.h.b16 %v2771
        %v3045 = vunpack.c.l.b16 %v2772
        %v3046 = vunpack.c.h.b16 %v2772
        %v3047 = vunpack.c.l.b16 %v2773
        %v3048 = vunpack.c.h.b16 %v2773
        %v3049 = vunpack.c.l.b16 %v2774
        %v3050 = vunpack.c.h.b16 %v2774
        %v3051 = vunpack.c.l.b16 %v2775
        %v3052 = vunpack.c.h.b16 %v2775
        %v3053 = vunpack.c.l.b16 %v2776
        %v3054 = vunpack.c.h.b16 %v2776
        %v3055 = vunpack.c.l.b16 %v2777
        %v3056 = vunpack.c.h.b16 %v2777
        %v3057 = vunpack.c.l.b16 %v2778
        %v3058 = vunpack.c.h.b16 %v2778
        %v3059 = vunpack.c.l.b16 %v2779
        %v3060 = vunpack.c.h.b16 %v2779
        %v3061 = vunpack.c.l.b16 %v2780
        %v3062 = vunpack.c.h.b16 %v2780
        %v3063 = vunpack.c.l.b16 %v2781
        %v3064 = vunpack.c.h.b16 %v2781
        %v3065 = vunpack.c.l.b16 %v2782
        %v3066 = vunpack.c.h.b16 %v2782
        %v3067 = vunpack.c.l.b16 %v2783
        %v3068 = vunpack.c.h.b16 %v2783
        %v3069 = vunpack.c.l.b16 %v2784
        %v3070 = vunpack.c.h.b16 %v2784
        %v3071 = vunpack.c.l.b16 %v2785
        %v3072 = vunpack.c.h.b16 %v2785
        %v3073 = vunpack.c.l.b16 %v2786
        %v3074 = vunpack.c.h.b16 %v2786
        %v3075 = vpack.c.b16 %v2889, %v2883
        %v3076 = vpack.c.b16 %v2890, %v2884
        %v3077 = vpack.c.b16 %v2891, %v2885
        %v3078 = vpack.c.b16 %v2892, %v2886
        %v3079 = vpack.c.b16 %v2893, %v2887
        %v3080 = vpack.c.b16 %v2894, %v2888
        %v3081 = vpack.c.b16 %v2901, %v2895
        %v3082 = vpack.c.b16 %v2902, %v2896
        %v3083 = vpack.c.b16 %v2903, %v2897
        %v3084 = vpack.c.b16 %v2904, %v2898
        %v3085 = vpack.c.b16 %v2905, %v2899
        %v3086 = vpack.c.b16 %v2906, %v2900
        %v3087 = vpack.c.b16 %v2913, %v2907
        %v3088 = vpack.c.b16 %v2914, %v2908
        %v3089 = vpack.c.b16 %v2915, %v2909
        %v3090 = vpack.c.b16 %v2916, %v2910
        %v3091 = vpack.c.b16 %v2917, %v2911
        %v3092 = vpack.c.b16 %v2918, %v2912
        %v3093 = vpack.c.b16 %v2925, %v2919
        %v3094 = vpack.c.b16 %v2926, %v2920
        %v3095 = vpack.c.b16 %v2927, %v2921
        %v3096 = vpack.c.b16 %v2928, %v2922
        %v3097 = vpack.c.b16 %v2929, %v2923
        %v3098 = vpack.c.b16 %v2930, %v2924
        %v3099 = vpack.c.b16 %v2937, %v2931
        %v3100 = vpack.c.b16 %v2938, %v2932
        %v3101 = vpack.c.b16 %v2939, %v2933
        %v3102 = vpack.c.b16 %v2940, %v2934
        %v3103 = vpack.c.b16 %v2941, %v2935
        %v3104 = vpack.c.b16 %v2942, %v2936
        %v3105 = vpack.c.b16 %v2949, %v2943
        %v3106 = vpack.c.b16 %v2950, %v2944
        %v3107 = vpack.c.b16 %v2951, %v2945
        %v3108 = vpack.c.b16 %v2952, %v2946
        %v3109 = vpack.c.b16 %v2953, %v2947
        %v3110 = vpack.c.b16 %v2954, %v2948
        %v3111 = vpack.c.b16 %v2961, %v2955
        %v3112 = vpack.c.b16 %v2962, %v2956
        %v3113 = vpack.c.b16 %v2963, %v2957
        %v3114 = vpack.c.b16 %v2964, %v2958
        %v3115 = vpack.c.b16 %v2965, %v2959
        %v3116 = vpack.c.b16 %v2966, %v2960
        %v3117 = vpack.c.b16 %v2973, %v2967
        %v3118 = vpack.c.b16 %v2974, %v2968
        %v3119 = vpack.c.b16 %v2975, %v2969
        %v3120 = vpack.c.b16 %v2976, %v2970
        %v3121 = vpack.c.b16 %v2977, %v2971
        %v3122 = vpack.c.b16 %v2978, %v2972
        %v3123 = vpack.c.b16 %v2985, %v2979
        %v3124 = vpack.c.b16 %v2986, %v2980
        %v3125 = vpack.c.b16 %v2987, %v2981
        %v3126 = vpack.c.b16 %v2988, %v2982
        %v3127 = vpack.c.b16 %v2989, %v2983
        %v3128 = vpack.c.b16 %v2990, %v2984
        %v3129 = vpack.c.b16 %v2997, %v2991
        %v3130 = vpack.c.b16 %v2998, %v2992
        %v3131 = vpack.c.b16 %v2999, %v2993
        %v3132 = vpack.c.b16 %v3000, %v2994
        %v3133 = vpack.c.b16 %v3001, %v2995
        %v3134 = vpack.c.b16 %v3002, %v2996
        %v3135 = vpack.c.b16 %v3009, %v3003
        %v3136 = vpack.c.b16 %v3010, %v3004
        %v3137 = vpack.c.b16 %v3011, %v3005
        %v3138 = vpack.c.b16 %v3012, %v3006
        %v3139 = vpack.c.b16 %v3013, %v3007
        %v3140 = vpack.c.b16 %v3014, %v3008
        %v3141 = vpack.c.b16 %v3021, %v3015
        %v3142 = vpack.c.b16 %v3022, %v3016
        %v3143 = vpack.c.b16 %v3023, %v3017
        %v3144 = vpack.c.b16 %v3024, %v3018
        %v3145 = vpack.c.b16 %v3025, %v3019
        %v3146 = vpack.c.b16 %v3026, %v3020
        %v3147 = vpack.c.b16 %v3033, %v3027
        %v3148 = vpack.c.b16 %v3034, %v3028
        %v3149 = vpack.c.b16 %v3035, %v3029
        %v3150 = vpack.c.b16 %v3036, %v3030
        %v3151 = vpack.c.b16 %v3037, %v3031
        %v3152 = vpack.c.b16 %v3038, %v3032
        %v3153 = vpack.c.b16 %v3045, %v3039
        %v3154 = vpack.c.b16 %v3046, %v3040
        %v3155 = vpack.c.b16 %v3047, %v3041
        %v3156 = vpack.c.b16 %v3048, %v3042
        %v3157 = vpack.c.b16 %v3049, %v3043
        %v3158 = vpack.c.b16 %v3050, %v3044
        %v3159 = vpack.c.b16 %v3057, %v3051
        %v3160 = vpack.c.b16 %v3058, %v3052
        %v3161 = vpack.c.b16 %v3059, %v3053
        %v3162 = vpack.c.b16 %v3060, %v3054
        %v3163 = vpack.c.b16 %v3061, %v3055
        %v3164 = vpack.c.b16 %v3062, %v3056
        %v3165 = vpack.c.b16 %v3069, %v3063
        %v3166 = vpack.c.b16 %v3070, %v3064
        %v3167 = vpack.c.b16 %v3071, %v3065
        %v3168 = vpack.c.b16 %v3072, %v3066
        %v3169 = vpack.c.b16 %v3073, %v3067
        %v3170 = vpack.c.b16 %v3074, %v3068
        %3267 = vmatprep.subr.bf16.mxu0 %v3076
        %3268 = vmatpush1.bf16.msra.mxu0 %v3075
        %3269 = vmatprep.subr.bf16.mxu0 %v3082
        %3270 = vmatpush1.bf16.msra.mxu0 %v3081
        %3271 = vmatprep.subr.bf16.mxu0 %v3088
        %3272 = vmatpush1.bf16.msra.mxu0 %v3087
        %3273 = vmatprep.subr.bf16.mxu0 %v3094
        %3274 = vmatpush1.bf16.msra.mxu0 %v3093
        %3275 = vmatprep.subr.bf16.mxu0 %v3100
        %3276 = vmatpush1.bf16.msra.mxu0 %v3099
        %3277 = vmatprep.subr.bf16.mxu0 %v3106
        %3278 = vmatpush1.bf16.msra.mxu0 %v3105
        %3279 = vmatprep.subr.bf16.mxu0 %v3112
        %3280 = vmatpush1.bf16.msra.mxu0 %v3111
        %3281 = vmatprep.subr.bf16.mxu0 %v3118
        %3282 = vmatpush1.bf16.msra.mxu0 %v3117
        %3283 = vmatprep.subr.bf16.mxu0 %v3124
        %3284 = vmatpush1.bf16.msra.mxu0 %v3123
        %3285 = vmatprep.subr.bf16.mxu0 %v3130
        %3286 = vmatpush1.bf16.msra.mxu0 %v3129
        %3287 = vmatprep.subr.bf16.mxu0 %v3136
        %3288 = vmatpush1.bf16.msra.mxu0 %v3135
        %3289 = vmatprep.subr.bf16.mxu0 %v3142
        %3290 = vmatpush1.bf16.msra.mxu0 %v3141
        %3291 = vmatprep.subr.bf16.mxu0 %v3148
        %3292 = vmatpush1.bf16.msra.mxu0 %v3147
        %3293 = vmatprep.subr.bf16.mxu0 %v3154
        %3294 = vmatpush1.bf16.msra.mxu0 %v3153
        %3295 = vmatprep.subr.bf16.mxu0 %v3160
        %3296 = vmatpush1.bf16.msra.mxu0 %v3159
        %3297 = vmatprep.subr.bf16.mxu0 %v3166
        %3298 = vmatpush1.bf16.msra.mxu0 %v3165
        %3299 = vmatprep.mubr.bf16.mxu0 %v2690
        %3300 = vmatmul.mubr.bf16.gmra.mrb[0].mxu0 %v2689
        %v3301 = vpop.f32.mrb[0].mxu0
        %v3302 = vadd.f32 0.0, %v3301
        %v3303 = vpop.f32.mrb[0].mxu0
        %v3304 = vadd.f32 0.0, %v3303
        %v3305 = vpop.f32.mrb[0].mxu0
        %v3306 = vadd.f32 0.0, %v3305
        %v3307 = vpop.f32.mrb[0].mxu0
        %v3308 = vadd.f32 0.0, %v3307
        %3309 = vdwg.mxu0
        %3310 = vmatprep.subr.bf16.mxu0 %v3078
        %3311 = vmatpush1.bf16.msra.mxu0 %v3077
        %3312 = vmatprep.subr.bf16.mxu0 %v3084
        %3313 = vmatpush1.bf16.msra.mxu0 %v3083
        %3314 = vmatprep.subr.bf16.mxu0 %v3090
        %3315 = vmatpush1.bf16.msra.mxu0 %v3089
        %3316 = vmatprep.subr.bf16.mxu0 %v3096
        %3317 = vmatpush1.bf16.msra.mxu0 %v3095
        %3318 = vmatprep.subr.bf16.mxu0 %v3102
        %3319 = vmatpush1.bf16.msra.mxu0 %v3101
        %3320 = vmatprep.subr.bf16.mxu0 %v3108
        %3321 = vmatpush1.bf16.msra.mxu0 %v3107
        %3322 = vmatprep.subr.bf16.mxu0 %v3114
        %3323 = vmatpush1.bf16.msra.mxu0 %v3113
        %3324 = vmatprep.subr.bf16.mxu0 %v3120
        %3325 = vmatpush1.bf16.msra.mxu0 %v3119
        %3326 = vmatprep.subr.bf16.mxu0 %v3126
        %3327 = vmatpush1.bf16.msra.mxu0 %v3125
        %3328 = vmatprep.subr.bf16.mxu0 %v3132
        %3329 = vmatpush1.bf16.msra.mxu0 %v3131
        %3330 = vmatprep.subr.bf16.mxu0 %v3138
        %3331 = vmatpush1.bf16.msra.mxu0 %v3137
        %3332 = vmatprep.subr.bf16.mxu0 %v3144
        %3333 = vmatpush1.bf16.msra.mxu0 %v3143
        %3334 = vmatprep.subr.bf16.mxu0 %v3150
        %3335 = vmatpush1.bf16.msra.mxu0 %v3149
        %3336 = vmatprep.subr.bf16.mxu0 %v3156
        %3337 = vmatpush1.bf16.msra.mxu0 %v3155
        %3338 = vmatprep.subr.bf16.mxu0 %v3162
        %3339 = vmatpush1.bf16.msra.mxu0 %v3161
        %3340 = vmatprep.subr.bf16.mxu0 %v3168
        %3341 = vmatpush1.bf16.msra.mxu0 %v3167
        %3342 = vmatprep.mubr.bf16.mxu0 %v2690
        %3343 = vmatmul.mubr.bf16.gmra.mrb[0].mxu0 %v2689
        %v3344 = vpop.f32.mrb[0].mxu0
        %v3345 = vadd.f32 0.0, %v3344
        %v3346 = vpop.f32.mrb[0].mxu0
        %v3347 = vadd.f32 0.0, %v3346
        %v3348 = vpop.f32.mrb[0].mxu0
        %v3349 = vadd.f32 0.0, %v3348
        %v3350 = vpop.f32.mrb[0].mxu0
        %v3351 = vadd.f32 0.0, %v3350
        %3352 = vdwg.mxu0
        %3353 = vmatprep.subr.bf16.mxu0 %v3080
        %3354 = vmatpush1.bf16.msra.mxu0 %v3079
        %3355 = vmatprep.subr.bf16.mxu0 %v3086
        %3356 = vmatpush1.bf16.msra.mxu0 %v3085
        %3357 = vmatprep.subr.bf16.mxu0 %v3092
        %3358 = vmatpush1.bf16.msra.mxu0 %v3091
        %3359 = vmatprep.subr.bf16.mxu0 %v3098
        %3360 = vmatpush1.bf16.msra.mxu0 %v3097
        %3361 = vmatprep.subr.bf16.mxu0 %v3104
        %3362 = vmatpush1.bf16.msra.mxu0 %v3103
        %3363 = vmatprep.subr.bf16.mxu0 %v3110
        %3364 = vmatpush1.bf16.msra.mxu0 %v3109
        %3365 = vmatprep.subr.bf16.mxu0 %v3116
        %3366 = vmatpush1.bf16.msra.mxu0 %v3115
        %3367 = vmatprep.subr.bf16.mxu0 %v3122
        %3368 = vmatpush1.bf16.msra.mxu0 %v3121
        %3369 = vmatprep.subr.bf16.mxu0 %v3128
        %3370 = vmatpush1.bf16.msra.mxu0 %v3127
        %3371 = vmatprep.subr.bf16.mxu0 %v3134
        %3372 = vmatpush1.bf16.msra.mxu0 %v3133
        %3373 = vmatprep.subr.bf16.mxu0 %v3140
        %3374 = vmatpush1.bf16.msra.mxu0 %v3139
        %3375 = vmatprep.subr.bf16.mxu0 %v3146
        %3376 = vmatpush1.bf16.msra.mxu0 %v3145
        %3377 = vmatprep.subr.bf16.mxu0 %v3152
        %3378 = vmatpush1.bf16.msra.mxu0 %v3151
        %3379 = vmatprep.subr.bf16.mxu0 %v3158
        %3380 = vmatpush1.bf16.msra.mxu0 %v3157
        %3381 = vmatprep.subr.bf16.mxu0 %v3164
        %3382 = vmatpush1.bf16.msra.mxu0 %v3163
        %3383 = vmatprep.subr.bf16.mxu0 %v3170
        %3384 = vmatpush1.bf16.msra.mxu0 %v3169
        %3385 = vmatprep.mubr.bf16.mxu0 %v2690
        %3386 = vmatmul.mubr.bf16.gmra.mrb[0].mxu0 %v2689
        %v3387 = vpop.f32.mrb[0].mxu0
        %v3388 = vadd.f32 0.0, %v3387
        %v3389 = vpop.f32.mrb[0].mxu0
        %v3390 = vadd.f32 0.0, %v3389
        %v3391 = vpop.f32.mrb[0].mxu0
        %v3392 = vadd.f32 0.0, %v3391
        %v3393 = vpop.f32.mrb[0].mxu0
        %v3394 = vadd.f32 0.0, %v3393
        %3395 = vdwg.mxu0
        %v3396 = vrot.slane %v3302, 7
        %v3397 = vrot.slane %v3304, 7
        %v3398 = vrot.slane %v3306, 7
        %v3399 = vrot.slane %v3308, 7
        %v3400 = vsel %vm894, %v3396, %v3398
        %v3401 = vsel %vm894, %v3397, %v3399
        %v3402 = vsel %vm894, %v3398, %v3396
        %v3403 = vsel %vm894, %v3399, %v3397
        %v3404 = vsel %vm870, 0.0, %v3402
        %v3405 = vsel %vm870, 0.0, %v3403
        %v3406 = vsel %vm871, 0.0, %v3400
        %v3407 = vsel %vm871, 0.0, %v3401
        %v3408 = vrot.slane %v3388, 1
        %v3409 = vrot.slane %v3390, 1
        %v3410 = vrot.slane %v3392, 1
        %v3411 = vrot.slane %v3394, 1
        %v3412 = vsel %vm951, %v3408, %v3410
        %v3413 = vsel %vm951, %v3409, %v3411
        %v3414 = vsel %vm951, %v3410, %v3408
        %v3415 = vsel %vm951, %v3411, %v3409
        %v3416 = vsel %vm2648, 0.0, %v3412
        %v3417 = vsel %vm2648, 0.0, %v3413
        %v3418 = vsel %vm2649, 0.0, %v3414
        %v3419 = vsel %vm2649, 0.0, %v3415
        %v3420 = vld [vmem:[#allocation4 + $0x2e8] sm:$0x11]
        %v3421 = vunpack.c.l.bf16 %v3420
        %v3422 = vunpack.c.h.bf16 %v3420
        %v3423 = vadd.f32 %v3404, %v3345
        %v3424 = vadd.f32 %v3405, %v3347
        %v3425 = vadd.f32 %v3406, %v3349
        %v3426 = vadd.f32 %v3407, %v3351
        %v3427 = vadd.f32 %v3423, %v3416
        %v3428 = vadd.f32 %v3424, %v3417
        %v3429 = vadd.f32 %v3425, %v3418
        %v3430 = vadd.f32 %v3426, %v3419
        %v3431 = vlaneseq
        %v3432 = vshrl.u32 %v3431, 7
        %v3433 = vsub.s32 0, %v3432
        %v3434 = vrot.slane %v3421, %v3433
        %v3435 = vlaneseq
        %v3436 = vshrl.u32 %v3435, 7
        %v3437 = vsub.s32 0, %v3436
        %v3438 = vrot.slane %v3422, %v3437
        %v3439 = vadd.f32 %v3427, %v3434
        %v3440 = vadd.f32 %v3428, %v3438
        %v3441 = vadd.f32 %v3429, %v3434
        %v3442 = vadd.f32 %v3430, %v3438
        %v3443 = vmax.f32 %v3439, 0.0
        %v3444 = vmax.f32 %v3440, 0.0
        %v3445 = vmax.f32 %v3441, 0.0
        %v3446 = vmax.f32 %v3442, 0.0
        %v3447 = vrot.slane %v3443, 1
        %v3448 = vrot.slane %v3444, 1
        %v3449 = vrot.slane %v3445, 1
        %v3450 = vrot.slane %v3446, 1
        %v3451 = vsel %vm951, %v3447, %v3449
        %v3452 = vsel %vm951, %v3448, %v3450
        %v3453 = vsel %vm951, %v3449, %v3447
        %v3454 = vsel %vm951, %v3450, %v3448
        %v3455 = vmax.f32 %v3443, %v3451
        %v3456 = vmax.f32 %v3444, %v3452
        %v3457 = vmax.f32 %v3445, %v3453
        %v3458 = vmax.f32 %v3446, %v3454
        %v3459 = vld [vmem:[#allocation4 + $0x2f0] sm:$0xf]
        %v3460 = vpack.c.bf16 %v3457, %v3455
        %v3461 = vpack.c.bf16 %v3458, %v3456
        %vm3462 = vcmask 130048
        %v3464 = vsel %vm3462, %v3459, 0
        %3466 = vmatprep.subr.bf16.mxu0 %v3461
        %3467 = vmatpush1.bf16.msra.mxu0 %v3460
        %3468 = vmatprep.subr.bf16.mxu0 0
        %3469 = vmatpush1.bf16.msra.mxu0 0
        %3470 = vmatprep.subr.bf16.mxu0 0
        %3471 = vmatpush1.bf16.msra.mxu0 0
        %3472 = vmatprep.subr.bf16.mxu0 0
        %3473 = vmatpush1.bf16.msra.mxu0 0
        %3474 = vmatprep.subr.bf16.mxu0 0
        %3475 = vmatpush1.bf16.msra.mxu0 0
        %3476 = vmatprep.subr.bf16.mxu0 0
        %3477 = vmatpush1.bf16.msra.mxu0 0
        %3478 = vmatprep.subr.bf16.mxu0 0
        %3479 = vmatpush1.bf16.msra.mxu0 0
        %3480 = vmatprep.subr.bf16.mxu0 0
        %3481 = vmatpush1.bf16.msra.mxu0 0
        %3482 = vmatprep.subr.bf16.mxu0 0
        %3483 = vmatpush1.bf16.msra.mxu0 0
        %3484 = vmatprep.subr.bf16.mxu0 0
        %3485 = vmatpush1.bf16.msra.mxu0 0
        %3486 = vmatprep.subr.bf16.mxu0 0
        %3487 = vmatpush1.bf16.msra.mxu0 0
        %3488 = vmatprep.subr.bf16.mxu0 0
        %3489 = vmatpush1.bf16.msra.mxu0 0
        %3490 = vmatprep.subr.bf16.mxu0 0
        %3491 = vmatpush1.bf16.msra.mxu0 0
        %3492 = vmatprep.subr.bf16.mxu0 0
        %3493 = vmatpush1.bf16.msra.mxu0 0
        %3494 = vmatprep.subr.bf16.mxu0 0
        %3495 = vmatpush1.bf16.msra.mxu0 0
        %3496 = vmatprep.subr.bf16.mxu0 0
        %3497 = vmatpush1.bf16.msra.mxu0 0
        %3498 = vmatprep.mubr.bf16.mxu0 0
        %3499 = vmatmul.mubr.bf16.gmra.mrb[0].mxu0 %v3464
        %v3500 = vpop.f32.mrb[0].mxu0
        %v3501 = vadd.f32 0.0, %v3500
        %v3502 = vpop.f32.mrb[0].mxu0
        %v3503 = vadd.f32 0.0, %v3502
        %v3504 = vpop.f32.mrb[0].mxu0
        %v3505 = vpop.f32.mrb[0].mxu0
        %3506 = vdwg.mxu0
        %3507 = vrot.lane.b32.xlu0 %v3501, 96
        %v3508 = vpop.permute.xlu0 %3507
        %3509 = vrot.lane.b32.xlu0 %v3503, 96
        %v3510 = vpop.permute.xlu0 %3509
        %vm3511 = vcmp.lt.s32.totalorder %v1206, 96
        %v3512 = vsel %vm3511, %v3508, %v3510
        %v3513 = vsel %vm3511, %v3510, %v3508
        %v3514 = vmax.f32 %v3501, %v3512
        %v3515 = vmax.f32 %v3503, %v3513
        %v3516 = vpack.c.bf16 %v3514, %v3514
        %v3517 = vpack.c.bf16 %v3515, %v3515
        %v3518 = vld [vmem:[#allocation4 + $0x2f8] sm:$0xf]
        %v3519 = vld [vmem:[#allocation4 + $0x300] sm:$0xf]
        %v3520 = vld [vmem:[#allocation4 + $0x308] sm:$0xf]
        %v3521 = vld [vmem:[#allocation4 + $0x310] sm:$0xf]
        %v3522 = vld [vmem:[#allocation4 + $0x318] sm:$0xf]
        %v3523 = vld [vmem:[#allocation4 + $0x320] sm:$0xf]
        %v3524 = vld [vmem:[#allocation4 + $0x328] sm:$0xf]
        %v3525 = vld [vmem:[#allocation4 + $0x330] sm:$0xf]
        %v3526 = vld [vmem:[#allocation4 + $0x338] sm:$0xf]
        %v3527 = vld [vmem:[#allocation4 + $0x340] sm:$0xf]
        %v3528 = vld [vmem:[#allocation4 + $0x348] sm:$0xf]
        %v3529 = vld [vmem:[#allocation4 + $0x350] sm:$0xf]
        %v3530 = vld [vmem:[#allocation4 + $0x358] sm:$0xf]
        %v3531 = vld [vmem:[#allocation4 + $0x360] sm:$0xf]
        %v3532 = vld [vmem:[#allocation4 + $0x368] sm:$0xf]
        %v3533 = vld [vmem:[#allocation4 + $0x370] sm:$0xf]
        %v3534 = vld [vmem:[#allocation4 + $0x378] sm:$0xf]
        %v3535 = vld [vmem:[#allocation4 + $0x380] sm:$0xf]
        %v3536 = vld [vmem:[#allocation4 + $0x388] sm:$0xf]
        %v3537 = vld [vmem:[#allocation4 + $0x390] sm:$0xf]
        %v3538 = vld [vmem:[#allocation4 + $0x398] sm:$0xf]
        %v3539 = vld [vmem:[#allocation4 + $0x3a0] sm:$0xf]
        %v3540 = vld [vmem:[#allocation4 + $0x3a8] sm:$0xf]
        %v3541 = vld [vmem:[#allocation4 + $0x3b0] sm:$0xf]
        %v3542 = vld [vmem:[#allocation4 + $0x3b8] sm:$0xf]
        %v3543 = vld [vmem:[#allocation4 + $0x3c0] sm:$0xf]
        %v3544 = vld [vmem:[#allocation4 + $0x3c8] sm:$0xf]
        %v3545 = vld [vmem:[#allocation4 + $0x3d0] sm:$0xf]
        %v3546 = vld [vmem:[#allocation4 + $0x3d8] sm:$0xf]
        %v3547 = vld [vmem:[#allocation4 + $0x3e0] sm:$0xf]
        %v3548 = vld [vmem:[#allocation4 + $0x3e8] sm:$0xf]
        %v3549 = vld [vmem:[#allocation4 + $0x3f0] sm:$0xf]
        %v3582 = vunpack.c.l.b16 %v3518
        %v3583 = vunpack.c.l.b16 %v3519
        %v3584 = vunpack.c.l.b16 %v3520
        %v3585 = vunpack.c.l.b16 %v3521
        %v3586 = vunpack.c.l.b16 %v3522
        %v3587 = vunpack.c.l.b16 %v3523
        %v3588 = vunpack.c.l.b16 %v3524
        %v3589 = vunpack.c.l.b16 %v3525
        %v3590 = vunpack.c.l.b16 %v3526
        %v3591 = vunpack.c.l.b16 %v3527
        %v3592 = vunpack.c.l.b16 %v3528
        %v3593 = vunpack.c.l.b16 %v3529
        %v3594 = vunpack.c.l.b16 %v3530
        %v3595 = vunpack.c.l.b16 %v3531
        %v3596 = vunpack.c.l.b16 %v3532
        %v3597 = vunpack.c.l.b16 %v3533
        %v3598 = vunpack.c.l.b16 %v3534
        %v3599 = vunpack.c.l.b16 %v3535
        %v3600 = vunpack.c.l.b16 %v3536
        %v3601 = vunpack.c.l.b16 %v3537
        %v3602 = vunpack.c.l.b16 %v3538
        %v3603 = vunpack.c.l.b16 %v3539
        %v3604 = vunpack.c.l.b16 %v3540
        %v3605 = vunpack.c.l.b16 %v3541
        %v3606 = vunpack.c.l.b16 %v3542
        %v3607 = vunpack.c.l.b16 %v3543
        %v3608 = vunpack.c.l.b16 %v3544
        %v3609 = vunpack.c.l.b16 %v3545
        %v3610 = vunpack.c.l.b16 %v3546
        %v3611 = vunpack.c.l.b16 %v3547
        %v3612 = vunpack.c.l.b16 %v3548
        %v3613 = vunpack.c.l.b16 %v3549
        %v3614 = vpack.c.b16 %v3583, %v3582
        %v3615 = vpack.c.b16 %v3585, %v3584
        %v3616 = vpack.c.b16 %v3587, %v3586
        %v3617 = vpack.c.b16 %v3589, %v3588
        %v3618 = vpack.c.b16 %v3591, %v3590
        %v3619 = vpack.c.b16 %v3593, %v3592
        %v3620 = vpack.c.b16 %v3595, %v3594
        %v3621 = vpack.c.b16 %v3597, %v3596
        %v3622 = vpack.c.b16 %v3599, %v3598
        %v3623 = vpack.c.b16 %v3601, %v3600
        %v3624 = vpack.c.b16 %v3603, %v3602
        %v3625 = vpack.c.b16 %v3605, %v3604
        %v3626 = vpack.c.b16 %v3607, %v3606
        %v3627 = vpack.c.b16 %v3609, %v3608
        %v3628 = vpack.c.b16 %v3611, %v3610
        %v3629 = vpack.c.b16 %v3613, %v3612
        %3646 = vmatprep.subr.bf16.mxu0 0
        %3647 = vmatpush1.bf16.msra.mxu0 %v3614
        %3648 = vmatprep.subr.bf16.mxu0 0
        %3649 = vmatpush1.bf16.msra.mxu0 %v3615
        %3650 = vmatprep.subr.bf16.mxu0 0
        %3651 = vmatpush1.bf16.msra.mxu0 %v3616
        %3652 = vmatprep.subr.bf16.mxu0 0
        %3653 = vmatpush1.bf16.msra.mxu0 %v3617
        %3654 = vmatprep.subr.bf16.mxu0 0
        %3655 = vmatpush1.bf16.msra.mxu0 %v3618
        %3656 = vmatprep.subr.bf16.mxu0 0
        %3657 = vmatpush1.bf16.msra.mxu0 %v3619
        %3658 = vmatprep.subr.bf16.mxu0 0
        %3659 = vmatpush1.bf16.msra.mxu0 %v3620
        %3660 = vmatprep.subr.bf16.mxu0 0
        %3661 = vmatpush1.bf16.msra.mxu0 %v3621
        %3662 = vmatprep.subr.bf16.mxu0 0
        %3663 = vmatpush1.bf16.msra.mxu0 %v3622
        %3664 = vmatprep.subr.bf16.mxu0 0
        %3665 = vmatpush1.bf16.msra.mxu0 %v3623
        %3666 = vmatprep.subr.bf16.mxu0 0
        %3667 = vmatpush1.bf16.msra.mxu0 %v3624
        %3668 = vmatprep.subr.bf16.mxu0 0
        %3669 = vmatpush1.bf16.msra.mxu0 %v3625
        %3670 = vmatprep.subr.bf16.mxu0 0
        %3671 = vmatpush1.bf16.msra.mxu0 %v3626
        %3672 = vmatprep.subr.bf16.mxu0 0
        %3673 = vmatpush1.bf16.msra.mxu0 %v3627
        %3674 = vmatprep.subr.bf16.mxu0 0
        %3675 = vmatpush1.bf16.msra.mxu0 %v3628
        %3676 = vmatprep.subr.bf16.mxu0 0
        %3677 = vmatpush1.bf16.msra.mxu0 %v3629
        %3678 = vmatprep.mubr.bf16.mxu0 %v3517
        %3679 = vmatmul.mubr.bf16.gmra.mrb[0].mxu0 %v3516
        %v3680 = vpop.f32.mrb[0].mxu0
        %v3681 = vadd.f32 0.0, %v3680
        %v3682 = vpop.f32.mrb[0].mxu0
        %v3683 = vpop.f32.mrb[0].mxu0
        %v3684 = vpop.f32.mrb[0].mxu0
        %3685 = vdwg.mxu0
        %v3686 = vpack.c.bf16 %v3681, %v3681
        %v3687 = vld [vmem:[#allocation2 + $0x660] sm:$0xff]
        %v3688 = vld [vmem:[#allocation2 + $0x668] sm:$0xff]
        %v3689 = vld [vmem:[#allocation2 + $0x670] sm:$0xff]
        %v3690 = vld [vmem:[#allocation2 + $0x678] sm:$0xff]
        %v3691 = vld [vmem:[#allocation2 + $0x680] sm:$0xff]
        %v3692 = vld [vmem:[#allocation2 + $0x688] sm:$0xff]
        %v3693 = vld [vmem:[#allocation2 + $0x690] sm:$0xff]
        %v3694 = vld [vmem:[#allocation2 + $0x698] sm:$0xff]
        %v3695 = vld [vmem:[#allocation2 + $0x6a0] sm:$0xff]
        %v3696 = vld [vmem:[#allocation2 + $0x6a8] sm:$0xff]
        %v3697 = vld [vmem:[#allocation2 + $0x6b0] sm:$0xff]
        %v3698 = vld [vmem:[#allocation2 + $0x6b8] sm:$0xff]
        %v3699 = vld [vmem:[#allocation2 + $0x6c0] sm:$0xff]
        %v3700 = vld [vmem:[#allocation2 + $0x6c8] sm:$0xff]
        %v3701 = vld [vmem:[#allocation2 + $0x6d0] sm:$0xff]
        %v3702 = vld [vmem:[#allocation2 + $0x6d8] sm:$0xff]
        %v3703 = vld [vmem:[#allocation2 + $0x6e0] sm:$0xff]
        %v3704 = vld [vmem:[#allocation2 + $0x6e8] sm:$0xff]
        %v3705 = vld [vmem:[#allocation2 + $0x6f0] sm:$0xff]
        %v3706 = vld [vmem:[#allocation2 + $0x6f8] sm:$0xff]
        %v3707 = vld [vmem:[#allocation2 + $0x700] sm:$0xff]
        %v3708 = vld [vmem:[#allocation2 + $0x708] sm:$0xff]
        %v3709 = vld [vmem:[#allocation2 + $0x710] sm:$0xff]
        %v3710 = vld [vmem:[#allocation2 + $0x718] sm:$0xff]
        %v3711 = vld [vmem:[#allocation2 + $0x720] sm:$0xff]
        %v3712 = vld [vmem:[#allocation2 + $0x728] sm:$0xff]
        %v3713 = vld [vmem:[#allocation2 + $0x730] sm:$0xff]
        %v3714 = vld [vmem:[#allocation2 + $0x738] sm:$0xff]
        %v3715 = vld [vmem:[#allocation2 + $0x740] sm:$0xff]
        %v3716 = vld [vmem:[#allocation2 + $0x748] sm:$0xff]
        %v3717 = vld [vmem:[#allocation2 + $0x750] sm:$0xff]
        %v3718 = vld [vmem:[#allocation2 + $0x758] sm:$0xff]
        %v3719 = vld [vmem:[#allocation2 + $0x760] sm:$0xff]
        %v3720 = vld [vmem:[#allocation2 + $0x768] sm:$0xff]
        %v3721 = vld [vmem:[#allocation2 + $0x770] sm:$0xff]
        %v3722 = vld [vmem:[#allocation2 + $0x778] sm:$0xff]
        %v3723 = vld [vmem:[#allocation2 + $0x780] sm:$0xff]
        %v3724 = vld [vmem:[#allocation2 + $0x788] sm:$0xff]
        %v3725 = vld [vmem:[#allocation2 + $0x790] sm:$0xff]
        %v3726 = vld [vmem:[#allocation2 + $0x798] sm:$0xff]
        %v3727 = vld [vmem:[#allocation2 + $0x7a0] sm:$0xff]
        %v3728 = vld [vmem:[#allocation2 + $0x7a8] sm:$0xff]
        %v3729 = vld [vmem:[#allocation2 + $0x7b0] sm:$0xff]
        %v3730 = vld [vmem:[#allocation2 + $0x7b8] sm:$0xff]
        %v3731 = vld [vmem:[#allocation2 + $0x7c0] sm:$0xff]
        %v3732 = vld [vmem:[#allocation2 + $0x7c8] sm:$0xff]
        %v3733 = vld [vmem:[#allocation2 + $0x7d0] sm:$0xff]
        %v3734 = vld [vmem:[#allocation2 + $0x7d8] sm:$0xff]
        %v3783 = vunpack.c.l.b16 %v3687
        %v3784 = vunpack.c.h.b16 %v3687
        %v3785 = vunpack.c.l.b16 %v3688
        %v3786 = vunpack.c.h.b16 %v3688
        %v3787 = vunpack.c.l.b16 %v3689
        %v3788 = vunpack.c.h.b16 %v3689
        %v3789 = vunpack.c.l.b16 %v3690
        %v3790 = vunpack.c.h.b16 %v3690
        %v3791 = vunpack.c.l.b16 %v3691
        %v3792 = vunpack.c.h.b16 %v3691
        %v3793 = vunpack.c.l.b16 %v3692
        %v3794 = vunpack.c.h.b16 %v3692
        %v3795 = vunpack.c.l.b16 %v3693
        %v3796 = vunpack.c.h.b16 %v3693
        %v3797 = vunpack.c.l.b16 %v3694
        %v3798 = vunpack.c.h.b16 %v3694
        %v3799 = vunpack.c.l.b16 %v3695
        %v3800 = vunpack.c.h.b16 %v3695
        %v3801 = vunpack.c.l.b16 %v3696
        %v3802 = vunpack.c.h.b16 %v3696
        %v3803 = vunpack.c.l.b16 %v3697
        %v3804 = vunpack.c.h.b16 %v3697
        %v3805 = vunpack.c.l.b16 %v3698
        %v3806 = vunpack.c.h.b16 %v3698
        %v3807 = vunpack.c.l.b16 %v3699
        %v3808 = vunpack.c.h.b16 %v3699
        %v3809 = vunpack.c.l.b16 %v3700
        %v3810 = vunpack.c.h.b16 %v3700
        %v3811 = vunpack.c.l.b16 %v3701
        %v3812 = vunpack.c.h.b16 %v3701
        %v3813 = vunpack.c.l.b16 %v3702
        %v3814 = vunpack.c.h.b16 %v3702
        %v3815 = vunpack.c.l.b16 %v3703
        %v3816 = vunpack.c.h.b16 %v3703
        %v3817 = vunpack.c.l.b16 %v3704
        %v3818 = vunpack.c.h.b16 %v3704
        %v3819 = vunpack.c.l.b16 %v3705
        %v3820 = vunpack.c.h.b16 %v3705
        %v3821 = vunpack.c.l.b16 %v3706
        %v3822 = vunpack.c.h.b16 %v3706
        %v3823 = vunpack.c.l.b16 %v3707
        %v3824 = vunpack.c.h.b16 %v3707
        %v3825 = vunpack.c.l.b16 %v3708
        %v3826 = vunpack.c.h.b16 %v3708
        %v3827 = vunpack.c.l.b16 %v3709
        %v3828 = vunpack.c.h.b16 %v3709
        %v3829 = vunpack.c.l.b16 %v3710
        %v3830 = vunpack.c.h.b16 %v3710
        %v3831 = vunpack.c.l.b16 %v3711
        %v3832 = vunpack.c.h.b16 %v3711
        %v3833 = vunpack.c.l.b16 %v3712
        %v3834 = vunpack.c.h.b16 %v3712
        %v3835 = vunpack.c.l.b16 %v3713
        %v3836 = vunpack.c.h.b16 %v3713
        %v3837 = vunpack.c.l.b16 %v3714
        %v3838 = vunpack.c.h.b16 %v3714
        %v3839 = vunpack.c.l.b16 %v3715
        %v3840 = vunpack.c.h.b16 %v3715
        %v3841 = vunpack.c.l.b16 %v3716
        %v3842 = vunpack.c.h.b16 %v3716
        %v3843 = vunpack.c.l.b16 %v3717
        %v3844 = vunpack.c.h.b16 %v3717
        %v3845 = vunpack.c.l.b16 %v3718
        %v3846 = vunpack.c.h.b16 %v3718
        %v3847 = vunpack.c.l.b16 %v3719
        %v3848 = vunpack.c.h.b16 %v3719
        %v3849 = vunpack.c.l.b16 %v3720
        %v3850 = vunpack.c.h.b16 %v3720
        %v3851 = vunpack.c.l.b16 %v3721
        %v3852 = vunpack.c.h.b16 %v3721
        %v3853 = vunpack.c.l.b16 %v3722
        %v3854 = vunpack.c.h.b16 %v3722
        %v3855 = vunpack.c.l.b16 %v3723
        %v3856 = vunpack.c.h.b16 %v3723
        %v3857 = vunpack.c.l.b16 %v3724
        %v3858 = vunpack.c.h.b16 %v3724
        %v3859 = vunpack.c.l.b16 %v3725
        %v3860 = vunpack.c.h.b16 %v3725
        %v3861 = vunpack.c.l.b16 %v3726
        %v3862 = vunpack.c.h.b16 %v3726
        %v3863 = vunpack.c.l.b16 %v3727
        %v3864 = vunpack.c.h.b16 %v3727
        %v3865 = vunpack.c.l.b16 %v3728
        %v3866 = vunpack.c.h.b16 %v3728
        %v3867 = vunpack.c.l.b16 %v3729
        %v3868 = vunpack.c.h.b16 %v3729
        %v3869 = vunpack.c.l.b16 %v3730
        %v3870 = vunpack.c.h.b16 %v3730
        %v3871 = vunpack.c.l.b16 %v3731
        %v3872 = vunpack.c.h.b16 %v3731
        %v3873 = vunpack.c.l.b16 %v3732
        %v3874 = vunpack.c.h.b16 %v3732
        %v3875 = vunpack.c.l.b16 %v3733
        %v3876 = vunpack.c.h.b16 %v3733
        %v3877 = vunpack.c.l.b16 %v3734
        %v3878 = vunpack.c.h.b16 %v3734
        %v3879 = vpack.c.b16 %v3789, %v3783
        %v3880 = vpack.c.b16 %v3790, %v3784
        %v3881 = vpack.c.b16 %v3791, %v3785
        %v3882 = vpack.c.b16 %v3792, %v3786
        %v3883 = vpack.c.b16 %v3793, %v3787
        %v3884 = vpack.c.b16 %v3794, %v3788
        %v3885 = vpack.c.b16 %v3801, %v3795
        %v3886 = vpack.c.b16 %v3802, %v3796
        %v3887 = vpack.c.b16 %v3803, %v3797
        %v3888 = vpack.c.b16 %v3804, %v3798
        %v3889 = vpack.c.b16 %v3805, %v3799
        %v3890 = vpack.c.b16 %v3806, %v3800
        %v3891 = vpack.c.b16 %v3813, %v3807
        %v3892 = vpack.c.b16 %v3814, %v3808
        %v3893 = vpack.c.b16 %v3815, %v3809
        %v3894 = vpack.c.b16 %v3816, %v3810
        %v3895 = vpack.c.b16 %v3817, %v3811
        %v3896 = vpack.c.b16 %v3818, %v3812
        %v3897 = vpack.c.b16 %v3825, %v3819
        %v3898 = vpack.c.b16 %v3826, %v3820
        %v3899 = vpack.c.b16 %v3827, %v3821
        %v3900 = vpack.c.b16 %v3828, %v3822
        %v3901 = vpack.c.b16 %v3829, %v3823
        %v3902 = vpack.c.b16 %v3830, %v3824
        %v3903 = vpack.c.b16 %v3837, %v3831
        %v3904 = vpack.c.b16 %v3838, %v3832
        %v3905 = vpack.c.b16 %v3839, %v3833
        %v3906 = vpack.c.b16 %v3840, %v3834
        %v3907 = vpack.c.b16 %v3841, %v3835
        %v3908 = vpack.c.b16 %v3842, %v3836
        %v3909 = vpack.c.b16 %v3849, %v3843
        %v3910 = vpack.c.b16 %v3850, %v3844
        %v3911 = vpack.c.b16 %v3851, %v3845
        %v3912 = vpack.c.b16 %v3852, %v3846
        %v3913 = vpack.c.b16 %v3853, %v3847
        %v3914 = vpack.c.b16 %v3854, %v3848
        %v3915 = vpack.c.b16 %v3861, %v3855
        %v3916 = vpack.c.b16 %v3862, %v3856
        %v3917 = vpack.c.b16 %v3863, %v3857
        %v3918 = vpack.c.b16 %v3864, %v3858
        %v3919 = vpack.c.b16 %v3865, %v3859
        %v3920 = vpack.c.b16 %v3866, %v3860
        %v3921 = vpack.c.b16 %v3873, %v3867
        %v3922 = vpack.c.b16 %v3874, %v3868
        %v3923 = vpack.c.b16 %v3875, %v3869
        %v3924 = vpack.c.b16 %v3876, %v3870
        %v3925 = vpack.c.b16 %v3877, %v3871
        %v3926 = vpack.c.b16 %v3878, %v3872
        %3975 = vmatprep.subr.bf16.mxu0 %v3880
        %3976 = vmatpush1.bf16.msra.mxu0 %v3879
        %3977 = vmatprep.subr.bf16.mxu0 %v3886
        %3978 = vmatpush1.bf16.msra.mxu0 %v3885
        %3979 = vmatprep.subr.bf16.mxu0 %v3892
        %3980 = vmatpush1.bf16.msra.mxu0 %v3891
        %3981 = vmatprep.subr.bf16.mxu0 %v3898
        %3982 = vmatpush1.bf16.msra.mxu0 %v3897
        %3983 = vmatprep.subr.bf16.mxu0 %v3904
        %3984 = vmatpush1.bf16.msra.mxu0 %v3903
        %3985 = vmatprep.subr.bf16.mxu0 %v3910
        %3986 = vmatpush1.bf16.msra.mxu0 %v3909
        %3987 = vmatprep.subr.bf16.mxu0 %v3916
        %3988 = vmatpush1.bf16.msra.mxu0 %v3915
        %3989 = vmatprep.subr.bf16.mxu0 %v3922
        %3990 = vmatpush1.bf16.msra.mxu0 %v3921
        %3991 = vmatprep.subr.bf16.mxu0 0
        %3992 = vmatpush1.bf16.msra.mxu0 0
        %3993 = vmatprep.subr.bf16.mxu0 0
        %3994 = vmatpush1.bf16.msra.mxu0 0
        %3995 = vmatprep.subr.bf16.mxu0 0
        %3996 = vmatpush1.bf16.msra.mxu0 0
        %3997 = vmatprep.subr.bf16.mxu0 0
        %3998 = vmatpush1.bf16.msra.mxu0 0
        %3999 = vmatprep.subr.bf16.mxu0 0
        %4000 = vmatpush1.bf16.msra.mxu0 0
        %4001 = vmatprep.subr.bf16.mxu0 0
        %4002 = vmatpush1.bf16.msra.mxu0 0
        %4003 = vmatprep.subr.bf16.mxu0 0
        %4004 = vmatpush1.bf16.msra.mxu0 0
        %4005 = vmatprep.subr.bf16.mxu0 0
        %4006 = vmatpush1.bf16.msra.mxu0 0
        %4007 = vmatprep.mubr.bf16.mxu0 0
        %4008 = vmatmul.mubr.bf16.gmra.mrb[0].mxu0 %v3686
        %v4009 = vpop.f32.mrb[0].mxu0
        %v4010 = vadd.f32 0.0, %v4009
        %v4011 = vpop.f32.mrb[0].mxu0
        %v4012 = vadd.f32 0.0, %v4011
        %v4013 = vpop.f32.mrb[0].mxu0
        %v4014 = vpop.f32.mrb[0].mxu0
        %4015 = vdwg.mxu0
        %4016 = vmatprep.subr.bf16.mxu0 %v3882
        %4017 = vmatpush1.bf16.msra.mxu0 %v3881
        %4018 = vmatprep.subr.bf16.mxu0 %v3888
        %4019 = vmatpush1.bf16.msra.mxu0 %v3887
        %4020 = vmatprep.subr.bf16.mxu0 %v3894
        %4021 = vmatpush1.bf16.msra.mxu0 %v3893
        %4022 = vmatprep.subr.bf16.mxu0 %v3900
        %4023 = vmatpush1.bf16.msra.mxu0 %v3899
        %4024 = vmatprep.subr.bf16.mxu0 %v3906
        %4025 = vmatpush1.bf16.msra.mxu0 %v3905
        %4026 = vmatprep.subr.bf16.mxu0 %v3912
        %4027 = vmatpush1.bf16.msra.mxu0 %v3911
        %4028 = vmatprep.subr.bf16.mxu0 %v3918
        %4029 = vmatpush1.bf16.msra.mxu0 %v3917
        %4030 = vmatprep.subr.bf16.mxu0 %v3924
        %4031 = vmatpush1.bf16.msra.mxu0 %v3923
        %4032 = vmatprep.subr.bf16.mxu0 0
        %4033 = vmatpush1.bf16.msra.mxu0 0
        %4034 = vmatprep.subr.bf16.mxu0 0
        %4035 = vmatpush1.bf16.msra.mxu0 0
        %4036 = vmatprep.subr.bf16.mxu0 0
        %4037 = vmatpush1.bf16.msra.mxu0 0
        %4038 = vmatprep.subr.bf16.mxu0 0
        %4039 = vmatpush1.bf16.msra.mxu0 0
        %4040 = vmatprep.subr.bf16.mxu0 0
        %4041 = vmatpush1.bf16.msra.mxu0 0
        %4042 = vmatprep.subr.bf16.mxu0 0
        %4043 = vmatpush1.bf16.msra.mxu0 0
        %4044 = vmatprep.subr.bf16.mxu0 0
        %4045 = vmatpush1.bf16.msra.mxu0 0
        %4046 = vmatprep.subr.bf16.mxu0 0
        %4047 = vmatpush1.bf16.msra.mxu0 0
        %4048 = vmatprep.mubr.bf16.mxu0 0
        %4049 = vmatmul.mubr.bf16.gmra.mrb[0].mxu0 %v3686
        %v4050 = vpop.f32.mrb[0].mxu0
        %v4051 = vadd.f32 0.0, %v4050
        %v4052 = vpop.f32.mrb[0].mxu0
        %v4053 = vadd.f32 0.0, %v4052
        %v4054 = vpop.f32.mrb[0].mxu0
        %v4055 = vpop.f32.mrb[0].mxu0
        %4056 = vdwg.mxu0
        %4057 = vmatprep.subr.bf16.mxu0 %v3884
        %4058 = vmatpush1.bf16.msra.mxu0 %v3883
        %4059 = vmatprep.subr.bf16.mxu0 %v3890
        %4060 = vmatpush1.bf16.msra.mxu0 %v3889
        %4061 = vmatprep.subr.bf16.mxu0 %v3896
        %4062 = vmatpush1.bf16.msra.mxu0 %v3895
        %4063 = vmatprep.subr.bf16.mxu0 %v3902
        %4064 = vmatpush1.bf16.msra.mxu0 %v3901
        %4065 = vmatprep.subr.bf16.mxu0 %v3908
        %4066 = vmatpush1.bf16.msra.mxu0 %v3907
        %4067 = vmatprep.subr.bf16.mxu0 %v3914
        %4068 = vmatpush1.bf16.msra.mxu0 %v3913
        %4069 = vmatprep.subr.bf16.mxu0 %v3920
        %4070 = vmatpush1.bf16.msra.mxu0 %v3919
        %4071 = vmatprep.subr.bf16.mxu0 %v3926
        %4072 = vmatpush1.bf16.msra.mxu0 %v3925
        %4073 = vmatprep.subr.bf16.mxu0 0
        %4074 = vmatpush1.bf16.msra.mxu0 0
        %4075 = vmatprep.subr.bf16.mxu0 0
        %4076 = vmatpush1.bf16.msra.mxu0 0
        %4077 = vmatprep.subr.bf16.mxu0 0
        %4078 = vmatpush1.bf16.msra.mxu0 0
        %4079 = vmatprep.subr.bf16.mxu0 0
        %4080 = vmatpush1.bf16.msra.mxu0 0
        %4081 = vmatprep.subr.bf16.mxu0 0
        %4082 = vmatpush1.bf16.msra.mxu0 0
        %4083 = vmatprep.subr.bf16.mxu0 0
        %4084 = vmatpush1.bf16.msra.mxu0 0
        %4085 = vmatprep.subr.bf16.mxu0 0
        %4086 = vmatpush1.bf16.msra.mxu0 0
        %4087 = vmatprep.subr.bf16.mxu0 0
        %4088 = vmatpush1.bf16.msra.mxu0 0
        %4089 = vmatprep.mubr.bf16.mxu0 0
        %4090 = vmatmul.mubr.bf16.gmra.mrb[0].mxu0 %v3686
        %v4091 = vpop.f32.mrb[0].mxu0
        %v4092 = vadd.f32 0.0, %v4091
        %v4093 = vpop.f32.mrb[0].mxu0
        %v4094 = vadd.f32 0.0, %v4093
        %v4095 = vpop.f32.mrb[0].mxu0
        %v4096 = vpop.f32.mrb[0].mxu0
        %4097 = vdwg.mxu0
        %v4098 = vrot.slane %v4010, 7
        %v4099 = vrot.slane %v4012, 7
        %v4100 = vsel %vm870, 0.0, %v4098
        %v4101 = vsel %vm870, 0.0, %v4099
        %vm4102 = vcmp.eq.s32.totalorder %v862, 7
        %v4103 = vrot.slane %v4092, 1
        %v4104 = vrot.slane %v4094, 1
        %v4105 = vsel %vm4102, 0.0, %v4103
        %v4106 = vsel %vm4102, 0.0, %v4104
        %v4107 = vld [vmem:[#allocation4 + $0x3f8] sm:$0x11]
        %v4108 = vunpack.c.l.bf16 %v4107
        %v4109 = vunpack.c.h.bf16 %v4107
        %v4110 = vadd.f32 %v4100, %v4051
        %v4111 = vadd.f32 %v4101, %v4053
        %v4112 = vadd.f32 %v4110, %v4105
        %v4113 = vadd.f32 %v4111, %v4106
        %v4114 = vlaneseq
        %v4115 = vshrl.u32 %v4114, 7
        %v4116 = vsub.s32 0, %v4115
        %v4117 = vrot.slane %v4108, %v4116
        %v4118 = vlaneseq
        %v4119 = vshrl.u32 %v4118, 7
        %v4120 = vsub.s32 0, %v4119
        %v4121 = vrot.slane %v4109, %v4120
        %v4122 = vadd.f32 %v4112, %v4117
        %v4123 = vadd.f32 %v4113, %v4121
        %v4124 = vmax.f32 %v4122, 0.0
        %v4125 = vmax.f32 %v4123, 0.0
        %v4126 = vpack.c.bf16 %v4124, %v4124
        %v4127 = vpack.c.bf16 %v4125, %v4125
        %v4128 = vld [vmem:[#allocation2 + $0x7e0] sm:$0xff]
        %v4129 = vld [vmem:[#allocation2 + $0x7e8] sm:$0xff]
        %v4130 = vld [vmem:[#allocation2 + $0x7f0] sm:$0xff]
        %v4131 = vld [vmem:[#allocation2 + $0x7f8] sm:$0xff]
        %v4132 = vld [vmem:[#allocation2 + $0x800] sm:$0xff]
        %v4133 = vld [vmem:[#allocation2 + $0x808] sm:$0xff]
        %v4134 = vld [vmem:[#allocation2 + $0x810] sm:$0xff]
        %v4135 = vld [vmem:[#allocation2 + $0x818] sm:$0xff]
        %v4136 = vld [vmem:[#allocation2 + $0x820] sm:$0xff]
        %v4137 = vld [vmem:[#allocation2 + $0x828] sm:$0xff]
        %v4138 = vld [vmem:[#allocation2 + $0x830] sm:$0xff]
        %v4139 = vld [vmem:[#allocation2 + $0x838] sm:$0xff]
        %v4140 = vld [vmem:[#allocation2 + $0x840] sm:$0xff]
        %v4141 = vld [vmem:[#allocation2 + $0x848] sm:$0xff]
        %v4142 = vld [vmem:[#allocation2 + $0x850] sm:$0xff]
        %v4143 = vld [vmem:[#allocation2 + $0x858] sm:$0xff]
        %v4144 = vld [vmem:[#allocation2 + $0x860] sm:$0xff]
        %v4145 = vld [vmem:[#allocation2 + $0x868] sm:$0xff]
        %v4146 = vld [vmem:[#allocation2 + $0x870] sm:$0xff]
        %v4147 = vld [vmem:[#allocation2 + $0x878] sm:$0xff]
        %v4148 = vld [vmem:[#allocation2 + $0x880] sm:$0xff]
        %v4149 = vld [vmem:[#allocation2 + $0x888] sm:$0xff]
        %v4150 = vld [vmem:[#allocation2 + $0x890] sm:$0xff]
        %v4151 = vld [vmem:[#allocation2 + $0x898] sm:$0xff]
        %v4152 = vld [vmem:[#allocation2 + $0x8a0] sm:$0xff]
        %v4153 = vld [vmem:[#allocation2 + $0x8a8] sm:$0xff]
        %v4154 = vld [vmem:[#allocation2 + $0x8b0] sm:$0xff]
        %v4155 = vld [vmem:[#allocation2 + $0x8b8] sm:$0xff]
        %v4156 = vld [vmem:[#allocation2 + $0x8c0] sm:$0xff]
        %v4157 = vld [vmem:[#allocation2 + $0x8c8] sm:$0xff]
        %v4158 = vld [vmem:[#allocation2 + $0x8d0] sm:$0xff]
        %v4159 = vld [vmem:[#allocation2 + $0x8d8] sm:$0xff]
        %v4160 = vld [vmem:[#allocation2 + $0x8e0] sm:$0xff]
        %v4161 = vld [vmem:[#allocation2 + $0x8e8] sm:$0xff]
        %v4162 = vld [vmem:[#allocation2 + $0x8f0] sm:$0xff]
        %v4163 = vld [vmem:[#allocation2 + $0x8f8] sm:$0xff]
        %v4164 = vld [vmem:[#allocation2 + $0x900] sm:$0xff]
        %v4165 = vld [vmem:[#allocation2 + $0x908] sm:$0xff]
        %v4166 = vld [vmem:[#allocation2 + $0x910] sm:$0xff]
        %v4167 = vld [vmem:[#allocation2 + $0x918] sm:$0xff]
        %v4168 = vld [vmem:[#allocation2 + $0x920] sm:$0xff]
        %v4169 = vld [vmem:[#allocation2 + $0x928] sm:$0xff]
        %v4170 = vld [vmem:[#allocation2 + $0x930] sm:$0xff]
        %v4171 = vld [vmem:[#allocation2 + $0x938] sm:$0xff]
        %v4172 = vld [vmem:[#allocation2 + $0x940] sm:$0xff]
        %v4173 = vld [vmem:[#allocation2 + $0x948] sm:$0xff]
        %v4174 = vld [vmem:[#allocation2 + $0x950] sm:$0xff]
        %v4175 = vld [vmem:[#allocation2 + $0x958] sm:$0xff]
        %v4176 = vld [vmem:[#allocation2 + $0x960] sm:$0xff]
        %v4177 = vld [vmem:[#allocation2 + $0x968] sm:$0xff]
        %v4178 = vld [vmem:[#allocation2 + $0x970] sm:$0xff]
        %v4179 = vld [vmem:[#allocation2 + $0x978] sm:$0xff]
        %v4180 = vld [vmem:[#allocation2 + $0x980] sm:$0xff]
        %v4181 = vld [vmem:[#allocation2 + $0x988] sm:$0xff]
        %v4182 = vld [vmem:[#allocation2 + $0x990] sm:$0xff]
        %v4183 = vld [vmem:[#allocation2 + $0x998] sm:$0xff]
        %v4184 = vld [vmem:[#allocation2 + $0x9a0] sm:$0xff]
        %v4185 = vld [vmem:[#allocation2 + $0x9a8] sm:$0xff]
        %v4186 = vld [vmem:[#allocation2 + $0x9b0] sm:$0xff]
        %v4187 = vld [vmem:[#allocation2 + $0x9b8] sm:$0xff]
        %v4188 = vld [vmem:[#allocation2 + $0x9c0] sm:$0xff]
        %v4189 = vld [vmem:[#allocation2 + $0x9c8] sm:$0xff]
        %v4190 = vld [vmem:[#allocation2 + $0x9d0] sm:$0xff]
        %v4191 = vld [vmem:[#allocation2 + $0x9d8] sm:$0xff]
        %v4192 = vld [vmem:[#allocation2 + $0x9e0] sm:$0xff]
        %v4193 = vld [vmem:[#allocation2 + $0x9e8] sm:$0xff]
        %v4194 = vld [vmem:[#allocation2 + $0x9f0] sm:$0xff]
        %v4195 = vld [vmem:[#allocation2 + $0x9f8] sm:$0xff]
        %v4196 = vld [vmem:[#allocation2 + $0xa00] sm:$0xff]
        %v4197 = vld [vmem:[#allocation2 + $0xa08] sm:$0xff]
        %v4198 = vld [vmem:[#allocation2 + $0xa10] sm:$0xff]
        %v4199 = vld [vmem:[#allocation2 + $0xa18] sm:$0xff]
        %v4200 = vld [vmem:[#allocation2 + $0xa20] sm:$0xff]
        %v4201 = vld [vmem:[#allocation2 + $0xa28] sm:$0xff]
        %v4202 = vld [vmem:[#allocation2 + $0xa30] sm:$0xff]
        %v4203 = vld [vmem:[#allocation2 + $0xa38] sm:$0xff]
        %v4204 = vld [vmem:[#allocation2 + $0xa40] sm:$0xff]
        %v4205 = vld [vmem:[#allocation2 + $0xa48] sm:$0xff]
        %v4206 = vld [vmem:[#allocation2 + $0xa50] sm:$0xff]
        %v4207 = vld [vmem:[#allocation2 + $0xa58] sm:$0xff]
        %v4208 = vld [vmem:[#allocation2 + $0xa60] sm:$0xff]
        %v4209 = vld [vmem:[#allocation2 + $0xa68] sm:$0xff]
        %v4210 = vld [vmem:[#allocation2 + $0xa70] sm:$0xff]
        %v4211 = vld [vmem:[#allocation2 + $0xa78] sm:$0xff]
        %v4212 = vld [vmem:[#allocation2 + $0xa80] sm:$0xff]
        %v4213 = vld [vmem:[#allocation2 + $0xa88] sm:$0xff]
        %v4214 = vld [vmem:[#allocation2 + $0xa90] sm:$0xff]
        %v4215 = vld [vmem:[#allocation2 + $0xa98] sm:$0xff]
        %v4216 = vld [vmem:[#allocation2 + $0xaa0] sm:$0xff]
        %v4217 = vld [vmem:[#allocation2 + $0xaa8] sm:$0xff]
        %v4218 = vld [vmem:[#allocation2 + $0xab0] sm:$0xff]
        %v4219 = vld [vmem:[#allocation2 + $0xab8] sm:$0xff]
        %v4220 = vld [vmem:[#allocation2 + $0xac0] sm:$0xff]
        %v4221 = vld [vmem:[#allocation2 + $0xac8] sm:$0xff]
        %v4222 = vld [vmem:[#allocation2 + $0xad0] sm:$0xff]
        %v4223 = vld [vmem:[#allocation2 + $0xad8] sm:$0xff]
        %v4320 = vunpack.c.l.b16 %v4128
        %v4321 = vunpack.c.h.b16 %v4128
        %v4322 = vunpack.c.l.b16 %v4129
        %v4323 = vunpack.c.h.b16 %v4129
        %v4324 = vunpack.c.l.b16 %v4130
        %v4325 = vunpack.c.h.b16 %v4130
        %v4326 = vunpack.c.l.b16 %v4131
        %v4327 = vunpack.c.h.b16 %v4131
        %v4328 = vunpack.c.l.b16 %v4132
        %v4329 = vunpack.c.h.b16 %v4132
        %v4330 = vunpack.c.l.b16 %v4133
        %v4331 = vunpack.c.h.b16 %v4133
        %v4332 = vunpack.c.l.b16 %v4134
        %v4333 = vunpack.c.h.b16 %v4134
        %v4334 = vunpack.c.l.b16 %v4135
        %v4335 = vunpack.c.h.b16 %v4135
        %v4336 = vunpack.c.l.b16 %v4136
        %v4337 = vunpack.c.h.b16 %v4136
        %v4338 = vunpack.c.l.b16 %v4137
        %v4339 = vunpack.c.h.b16 %v4137
        %v4340 = vunpack.c.l.b16 %v4138
        %v4341 = vunpack.c.h.b16 %v4138
        %v4342 = vunpack.c.l.b16 %v4139
        %v4343 = vunpack.c.h.b16 %v4139
        %v4344 = vunpack.c.l.b16 %v4140
        %v4345 = vunpack.c.h.b16 %v4140
        %v4346 = vunpack.c.l.b16 %v4141
        %v4347 = vunpack.c.h.b16 %v4141
        %v4348 = vunpack.c.l.b16 %v4142
        %v4349 = vunpack.c.h.b16 %v4142
        %v4350 = vunpack.c.l.b16 %v4143
        %v4351 = vunpack.c.h.b16 %v4143
        %v4352 = vunpack.c.l.b16 %v4144
        %v4353 = vunpack.c.h.b16 %v4144
        %v4354 = vunpack.c.l.b16 %v4145
        %v4355 = vunpack.c.h.b16 %v4145
        %v4356 = vunpack.c.l.b16 %v4146
        %v4357 = vunpack.c.h.b16 %v4146
        %v4358 = vunpack.c.l.b16 %v4147
        %v4359 = vunpack.c.h.b16 %v4147
        %v4360 = vunpack.c.l.b16 %v4148
        %v4361 = vunpack.c.h.b16 %v4148
        %v4362 = vunpack.c.l.b16 %v4149
        %v4363 = vunpack.c.h.b16 %v4149
        %v4364 = vunpack.c.l.b16 %v4150
        %v4365 = vunpack.c.h.b16 %v4150
        %v4366 = vunpack.c.l.b16 %v4151
        %v4367 = vunpack.c.h.b16 %v4151
        %v4368 = vunpack.c.l.b16 %v4152
        %v4369 = vunpack.c.h.b16 %v4152
        %v4370 = vunpack.c.l.b16 %v4153
        %v4371 = vunpack.c.h.b16 %v4153
        %v4372 = vunpack.c.l.b16 %v4154
        %v4373 = vunpack.c.h.b16 %v4154
        %v4374 = vunpack.c.l.b16 %v4155
        %v4375 = vunpack.c.h.b16 %v4155
        %v4376 = vunpack.c.l.b16 %v4156
        %v4377 = vunpack.c.h.b16 %v4156
        %v4378 = vunpack.c.l.b16 %v4157
        %v4379 = vunpack.c.h.b16 %v4157
        %v4380 = vunpack.c.l.b16 %v4158
        %v4381 = vunpack.c.h.b16 %v4158
        %v4382 = vunpack.c.l.b16 %v4159
        %v4383 = vunpack.c.h.b16 %v4159
        %v4384 = vunpack.c.l.b16 %v4160
        %v4385 = vunpack.c.h.b16 %v4160
        %v4386 = vunpack.c.l.b16 %v4161
        %v4387 = vunpack.c.h.b16 %v4161
        %v4388 = vunpack.c.l.b16 %v4162
        %v4389 = vunpack.c.h.b16 %v4162
        %v4390 = vunpack.c.l.b16 %v4163
        %v4391 = vunpack.c.h.b16 %v4163
        %v4392 = vunpack.c.l.b16 %v4164
        %v4393 = vunpack.c.h.b16 %v4164
        %v4394 = vunpack.c.l.b16 %v4165
        %v4395 = vunpack.c.h.b16 %v4165
        %v4396 = vunpack.c.l.b16 %v4166
        %v4397 = vunpack.c.h.b16 %v4166
        %v4398 = vunpack.c.l.b16 %v4167
        %v4399 = vunpack.c.h.b16 %v4167
        %v4400 = vunpack.c.l.b16 %v4168
        %v4401 = vunpack.c.h.b16 %v4168
        %v4402 = vunpack.c.l.b16 %v4169
        %v4403 = vunpack.c.h.b16 %v4169
        %v4404 = vunpack.c.l.b16 %v4170
        %v4405 = vunpack.c.h.b16 %v4170
        %v4406 = vunpack.c.l.b16 %v4171
        %v4407 = vunpack.c.h.b16 %v4171
        %v4408 = vunpack.c.l.b16 %v4172
        %v4409 = vunpack.c.h.b16 %v4172
        %v4410 = vunpack.c.l.b16 %v4173
        %v4411 = vunpack.c.h.b16 %v4173
        %v4412 = vunpack.c.l.b16 %v4174
        %v4413 = vunpack.c.h.b16 %v4174
        %v4414 = vunpack.c.l.b16 %v4175
        %v4415 = vunpack.c.h.b16 %v4175
        %v4416 = vunpack.c.l.b16 %v4176
        %v4417 = vunpack.c.h.b16 %v4176
        %v4418 = vunpack.c.l.b16 %v4177
        %v4419 = vunpack.c.h.b16 %v4177
        %v4420 = vunpack.c.l.b16 %v4178
        %v4421 = vunpack.c.h.b16 %v4178
        %v4422 = vunpack.c.l.b16 %v4179
        %v4423 = vunpack.c.h.b16 %v4179
        %v4424 = vunpack.c.l.b16 %v4180
        %v4425 = vunpack.c.h.b16 %v4180
        %v4426 = vunpack.c.l.b16 %v4181
        %v4427 = vunpack.c.h.b16 %v4181
        %v4428 = vunpack.c.l.b16 %v4182
        %v4429 = vunpack.c.h.b16 %v4182
        %v4430 = vunpack.c.l.b16 %v4183
        %v4431 = vunpack.c.h.b16 %v4183
        %v4432 = vunpack.c.l.b16 %v4184
        %v4433 = vunpack.c.h.b16 %v4184
        %v4434 = vunpack.c.l.b16 %v4185
        %v4435 = vunpack.c.h.b16 %v4185
        %v4436 = vunpack.c.l.b16 %v4186
        %v4437 = vunpack.c.h.b16 %v4186
        %v4438 = vunpack.c.l.b16 %v4187
        %v4439 = vunpack.c.h.b16 %v4187
        %v4440 = vunpack.c.l.b16 %v4188
        %v4441 = vunpack.c.h.b16 %v4188
        %v4442 = vunpack.c.l.b16 %v4189
        %v4443 = vunpack.c.h.b16 %v4189
        %v4444 = vunpack.c.l.b16 %v4190
        %v4445 = vunpack.c.h.b16 %v4190
        %v4446 = vunpack.c.l.b16 %v4191
        %v4447 = vunpack.c.h.b16 %v4191
        %v4448 = vunpack.c.l.b16 %v4192
        %v4449 = vunpack.c.h.b16 %v4192
        %v4450 = vunpack.c.l.b16 %v4193
        %v4451 = vunpack.c.h.b16 %v4193
        %v4452 = vunpack.c.l.b16 %v4194
        %v4453 = vunpack.c.h.b16 %v4194
        %v4454 = vunpack.c.l.b16 %v4195
        %v4455 = vunpack.c.h.b16 %v4195
        %v4456 = vunpack.c.l.b16 %v4196
        %v4457 = vunpack.c.h.b16 %v4196
        %v4458 = vunpack.c.l.b16 %v4197
        %v4459 = vunpack.c.h.b16 %v4197
        %v4460 = vunpack.c.l.b16 %v4198
        %v4461 = vunpack.c.h.b16 %v4198
        %v4462 = vunpack.c.l.b16 %v4199
        %v4463 = vunpack.c.h.b16 %v4199
        %v4464 = vunpack.c.l.b16 %v4200
        %v4465 = vunpack.c.h.b16 %v4200
        %v4466 = vunpack.c.l.b16 %v4201
        %v4467 = vunpack.c.h.b16 %v4201
        %v4468 = vunpack.c.l.b16 %v4202
        %v4469 = vunpack.c.h.b16 %v4202
        %v4470 = vunpack.c.l.b16 %v4203
        %v4471 = vunpack.c.h.b16 %v4203
        %v4472 = vunpack.c.l.b16 %v4204
        %v4473 = vunpack.c.h.b16 %v4204
        %v4474 = vunpack.c.l.b16 %v4205
        %v4475 = vunpack.c.h.b16 %v4205
        %v4476 = vunpack.c.l.b16 %v4206
        %v4477 = vunpack.c.h.b16 %v4206
        %v4478 = vunpack.c.l.b16 %v4207
        %v4479 = vunpack.c.h.b16 %v4207
        %v4480 = vunpack.c.l.b16 %v4208
        %v4481 = vunpack.c.h.b16 %v4208
        %v4482 = vunpack.c.l.b16 %v4209
        %v4483 = vunpack.c.h.b16 %v4209
        %v4484 = vunpack.c.l.b16 %v4210
        %v4485 = vunpack.c.h.b16 %v4210
        %v4486 = vunpack.c.l.b16 %v4211
        %v4487 = vunpack.c.h.b16 %v4211
        %v4488 = vunpack.c.l.b16 %v4212
        %v4489 = vunpack.c.h.b16 %v4212
        %v4490 = vunpack.c.l.b16 %v4213
        %v4491 = vunpack.c.h.b16 %v4213
        %v4492 = vunpack.c.l.b16 %v4214
        %v4493 = vunpack.c.h.b16 %v4214
        %v4494 = vunpack.c.l.b16 %v4215
        %v4495 = vunpack.c.h.b16 %v4215
        %v4496 = vunpack.c.l.b16 %v4216
        %v4497 = vunpack.c.h.b16 %v4216
        %v4498 = vunpack.c.l.b16 %v4217
        %v4499 = vunpack.c.h.b16 %v4217
        %v4500 = vunpack.c.l.b16 %v4218
        %v4501 = vunpack.c.h.b16 %v4218
        %v4502 = vunpack.c.l.b16 %v4219
        %v4503 = vunpack.c.h.b16 %v4219
        %v4504 = vunpack.c.l.b16 %v4220
        %v4505 = vunpack.c.h.b16 %v4220
        %v4506 = vunpack.c.l.b16 %v4221
        %v4507 = vunpack.c.h.b16 %v4221
        %v4508 = vunpack.c.l.b16 %v4222
        %v4509 = vunpack.c.h.b16 %v4222
        %v4510 = vunpack.c.l.b16 %v4223
        %v4511 = vunpack.c.h.b16 %v4223
        %v4512 = vpack.c.b16 %v4326, %v4320
        %v4513 = vpack.c.b16 %v4327, %v4321
        %v4514 = vpack.c.b16 %v4328, %v4322
        %v4515 = vpack.c.b16 %v4329, %v4323
        %v4516 = vpack.c.b16 %v4330, %v4324
        %v4517 = vpack.c.b16 %v4331, %v4325
        %v4518 = vpack.c.b16 %v4338, %v4332
        %v4519 = vpack.c.b16 %v4339, %v4333
        %v4520 = vpack.c.b16 %v4340, %v4334
        %v4521 = vpack.c.b16 %v4341, %v4335
        %v4522 = vpack.c.b16 %v4342, %v4336
        %v4523 = vpack.c.b16 %v4343, %v4337
        %v4524 = vpack.c.b16 %v4350, %v4344
        %v4525 = vpack.c.b16 %v4351, %v4345
        %v4526 = vpack.c.b16 %v4352, %v4346
        %v4527 = vpack.c.b16 %v4353, %v4347
        %v4528 = vpack.c.b16 %v4354, %v4348
        %v4529 = vpack.c.b16 %v4355, %v4349
        %v4530 = vpack.c.b16 %v4362, %v4356
        %v4531 = vpack.c.b16 %v4363, %v4357
        %v4532 = vpack.c.b16 %v4364, %v4358
        %v4533 = vpack.c.b16 %v4365, %v4359
        %v4534 = vpack.c.b16 %v4366, %v4360
        %v4535 = vpack.c.b16 %v4367, %v4361
        %v4536 = vpack.c.b16 %v4374, %v4368
        %v4537 = vpack.c.b16 %v4375, %v4369
        %v4538 = vpack.c.b16 %v4376, %v4370
        %v4539 = vpack.c.b16 %v4377, %v4371
        %v4540 = vpack.c.b16 %v4378, %v4372
        %v4541 = vpack.c.b16 %v4379, %v4373
        %v4542 = vpack.c.b16 %v4386, %v4380
        %v4543 = vpack.c.b16 %v4387, %v4381
        %v4544 = vpack.c.b16 %v4388, %v4382
        %v4545 = vpack.c.b16 %v4389, %v4383
        %v4546 = vpack.c.b16 %v4390, %v4384
        %v4547 = vpack.c.b16 %v4391, %v4385
        %v4548 = vpack.c.b16 %v4398, %v4392
        %v4549 = vpack.c.b16 %v4399, %v4393
        %v4550 = vpack.c.b16 %v4400, %v4394
        %v4551 = vpack.c.b16 %v4401, %v4395
        %v4552 = vpack.c.b16 %v4402, %v4396
        %v4553 = vpack.c.b16 %v4403, %v4397
        %v4554 = vpack.c.b16 %v4410, %v4404
        %v4555 = vpack.c.b16 %v4411, %v4405
        %v4556 = vpack.c.b16 %v4412, %v4406
        %v4557 = vpack.c.b16 %v4413, %v4407
        %v4558 = vpack.c.b16 %v4414, %v4408
        %v4559 = vpack.c.b16 %v4415, %v4409
        %v4560 = vpack.c.b16 %v4422, %v4416
        %v4561 = vpack.c.b16 %v4423, %v4417
        %v4562 = vpack.c.b16 %v4424, %v4418
        %v4563 = vpack.c.b16 %v4425, %v4419
        %v4564 = vpack.c.b16 %v4426, %v4420
        %v4565 = vpack.c.b16 %v4427, %v4421
        %v4566 = vpack.c.b16 %v4434, %v4428
        %v4567 = vpack.c.b16 %v4435, %v4429
        %v4568 = vpack.c.b16 %v4436, %v4430
        %v4569 = vpack.c.b16 %v4437, %v4431
        %v4570 = vpack.c.b16 %v4438, %v4432
        %v4571 = vpack.c.b16 %v4439, %v4433
        %v4572 = vpack.c.b16 %v4446, %v4440
        %v4573 = vpack.c.b16 %v4447, %v4441
        %v4574 = vpack.c.b16 %v4448, %v4442
        %v4575 = vpack.c.b16 %v4449, %v4443
        %v4576 = vpack.c.b16 %v4450, %v4444
        %v4577 = vpack.c.b16 %v4451, %v4445
        %v4578 = vpack.c.b16 %v4458, %v4452
        %v4579 = vpack.c.b16 %v4459, %v4453
        %v4580 = vpack.c.b16 %v4460, %v4454
        %v4581 = vpack.c.b16 %v4461, %v4455
        %v4582 = vpack.c.b16 %v4462, %v4456
        %v4583 = vpack.c.b16 %v4463, %v4457
        %v4584 = vpack.c.b16 %v4470, %v4464
        %v4585 = vpack.c.b16 %v4471, %v4465
        %v4586 = vpack.c.b16 %v4472, %v4466
        %v4587 = vpack.c.b16 %v4473, %v4467
        %v4588 = vpack.c.b16 %v4474, %v4468
        %v4589 = vpack.c.b16 %v4475, %v4469
        %v4590 = vpack.c.b16 %v4482, %v4476
        %v4591 = vpack.c.b16 %v4483, %v4477
        %v4592 = vpack.c.b16 %v4484, %v4478
        %v4593 = vpack.c.b16 %v4485, %v4479
        %v4594 = vpack.c.b16 %v4486, %v4480
        %v4595 = vpack.c.b16 %v4487, %v4481
        %v4596 = vpack.c.b16 %v4494, %v4488
        %v4597 = vpack.c.b16 %v4495, %v4489
        %v4598 = vpack.c.b16 %v4496, %v4490
        %v4599 = vpack.c.b16 %v4497, %v4491
        %v4600 = vpack.c.b16 %v4498, %v4492
        %v4601 = vpack.c.b16 %v4499, %v4493
        %v4602 = vpack.c.b16 %v4506, %v4500
        %v4603 = vpack.c.b16 %v4507, %v4501
        %v4604 = vpack.c.b16 %v4508, %v4502
        %v4605 = vpack.c.b16 %v4509, %v4503
        %v4606 = vpack.c.b16 %v4510, %v4504
        %v4607 = vpack.c.b16 %v4511, %v4505
        %4704 = vmatprep.subr.bf16.mxu0 %v4513
        %4705 = vmatpush1.bf16.msra.mxu0 %v4512
        %4706 = vmatprep.subr.bf16.mxu0 %v4519
        %4707 = vmatpush1.bf16.msra.mxu0 %v4518
        %4708 = vmatprep.subr.bf16.mxu0 %v4525
        %4709 = vmatpush1.bf16.msra.mxu0 %v4524
        %4710 = vmatprep.subr.bf16.mxu0 %v4531
        %4711 = vmatpush1.bf16.msra.mxu0 %v4530
        %4712 = vmatprep.subr.bf16.mxu0 %v4537
        %4713 = vmatpush1.bf16.msra.mxu0 %v4536
        %4714 = vmatprep.subr.bf16.mxu0 %v4543
        %4715 = vmatpush1.bf16.msra.mxu0 %v4542
        %4716 = vmatprep.subr.bf16.mxu0 %v4549
        %4717 = vmatpush1.bf16.msra.mxu0 %v4548
        %4718 = vmatprep.subr.bf16.mxu0 %v4555
        %4719 = vmatpush1.bf16.msra.mxu0 %v4554
        %4720 = vmatprep.subr.bf16.mxu0 %v4561
        %4721 = vmatpush1.bf16.msra.mxu0 %v4560
        %4722 = vmatprep.subr.bf16.mxu0 %v4567
        %4723 = vmatpush1.bf16.msra.mxu0 %v4566
        %4724 = vmatprep.subr.bf16.mxu0 %v4573
        %4725 = vmatpush1.bf16.msra.mxu0 %v4572
        %4726 = vmatprep.subr.bf16.mxu0 %v4579
        %4727 = vmatpush1.bf16.msra.mxu0 %v4578
        %4728 = vmatprep.subr.bf16.mxu0 %v4585
        %4729 = vmatpush1.bf16.msra.mxu0 %v4584
        %4730 = vmatprep.subr.bf16.mxu0 %v4591
        %4731 = vmatpush1.bf16.msra.mxu0 %v4590
        %4732 = vmatprep.subr.bf16.mxu0 %v4597
        %4733 = vmatpush1.bf16.msra.mxu0 %v4596
        %4734 = vmatprep.subr.bf16.mxu0 %v4603
        %4735 = vmatpush1.bf16.msra.mxu0 %v4602
        %4736 = vmatprep.mubr.bf16.mxu0 %v4127
        %4737 = vmatmul.mubr.bf16.gmra.mrb[0].mxu0 %v4126
        %v4738 = vpop.f32.mrb[0].mxu0
        %v4739 = vadd.f32 0.0, %v4738
        %v4740 = vpop.f32.mrb[0].mxu0
        %v4741 = vadd.f32 0.0, %v4740
        %v4742 = vpop.f32.mrb[0].mxu0
        %v4743 = vpop.f32.mrb[0].mxu0
        %4744 = vdwg.mxu0
        %4745 = vmatprep.subr.bf16.mxu0 %v4515
        %4746 = vmatpush1.bf16.msra.mxu0 %v4514
        %4747 = vmatprep.subr.bf16.mxu0 %v4521
        %4748 = vmatpush1.bf16.msra.mxu0 %v4520
        %4749 = vmatprep.subr.bf16.mxu0 %v4527
        %4750 = vmatpush1.bf16.msra.mxu0 %v4526
        %4751 = vmatprep.subr.bf16.mxu0 %v4533
        %4752 = vmatpush1.bf16.msra.mxu0 %v4532
        %4753 = vmatprep.subr.bf16.mxu0 %v4539
        %4754 = vmatpush1.bf16.msra.mxu0 %v4538
        %4755 = vmatprep.subr.bf16.mxu0 %v4545
        %4756 = vmatpush1.bf16.msra.mxu0 %v4544
        %4757 = vmatprep.subr.bf16.mxu0 %v4551
        %4758 = vmatpush1.bf16.msra.mxu0 %v4550
        %4759 = vmatprep.subr.bf16.mxu0 %v4557
        %4760 = vmatpush1.bf16.msra.mxu0 %v4556
        %4761 = vmatprep.subr.bf16.mxu0 %v4563
        %4762 = vmatpush1.bf16.msra.mxu0 %v4562
        %4763 = vmatprep.subr.bf16.mxu0 %v4569
        %4764 = vmatpush1.bf16.msra.mxu0 %v4568
        %4765 = vmatprep.subr.bf16.mxu0 %v4575
        %4766 = vmatpush1.bf16.msra.mxu0 %v4574
        %4767 = vmatprep.subr.bf16.mxu0 %v4581
        %4768 = vmatpush1.bf16.msra.mxu0 %v4580
        %4769 = vmatprep.subr.bf16.mxu0 %v4587
        %4770 = vmatpush1.bf16.msra.mxu0 %v4586
        %4771 = vmatprep.subr.bf16.mxu0 %v4593
        %4772 = vmatpush1.bf16.msra.mxu0 %v4592
        %4773 = vmatprep.subr.bf16.mxu0 %v4599
        %4774 = vmatpush1.bf16.msra.mxu0 %v4598
        %4775 = vmatprep.subr.bf16.mxu0 %v4605
        %4776 = vmatpush1.bf16.msra.mxu0 %v4604
        %4777 = vmatprep.mubr.bf16.mxu0 %v4127
        %4778 = vmatmul.mubr.bf16.gmra.mrb[0].mxu0 %v4126
        %v4779 = vpop.f32.mrb[0].mxu0
        %v4780 = vadd.f32 0.0, %v4779
        %v4781 = vpop.f32.mrb[0].mxu0
        %v4782 = vadd.f32 0.0, %v4781
        %v4783 = vpop.f32.mrb[0].mxu0
        %v4784 = vpop.f32.mrb[0].mxu0
        %4785 = vdwg.mxu0
        %4786 = vmatprep.subr.bf16.mxu0 %v4517
        %4787 = vmatpush1.bf16.msra.mxu0 %v4516
        %4788 = vmatprep.subr.bf16.mxu0 %v4523
        %4789 = vmatpush1.bf16.msra.mxu0 %v4522
        %4790 = vmatprep.subr.bf16.mxu0 %v4529
        %4791 = vmatpush1.bf16.msra.mxu0 %v4528
        %4792 = vmatprep.subr.bf16.mxu0 %v4535
        %4793 = vmatpush1.bf16.msra.mxu0 %v4534
        %4794 = vmatprep.subr.bf16.mxu0 %v4541
        %4795 = vmatpush1.bf16.msra.mxu0 %v4540
        %4796 = vmatprep.subr.bf16.mxu0 %v4547
        %4797 = vmatpush1.bf16.msra.mxu0 %v4546
        %4798 = vmatprep.subr.bf16.mxu0 %v4553
        %4799 = vmatpush1.bf16.msra.mxu0 %v4552
        %4800 = vmatprep.subr.bf16.mxu0 %v4559
        %4801 = vmatpush1.bf16.msra.mxu0 %v4558
        %4802 = vmatprep.subr.bf16.mxu0 %v4565
        %4803 = vmatpush1.bf16.msra.mxu0 %v4564
        %4804 = vmatprep.subr.bf16.mxu0 %v4571
        %4805 = vmatpush1.bf16.msra.mxu0 %v4570
        %4806 = vmatprep.subr.bf16.mxu0 %v4577
        %4807 = vmatpush1.bf16.msra.mxu0 %v4576
        %4808 = vmatprep.subr.bf16.mxu0 %v4583
        %4809 = vmatpush1.bf16.msra.mxu0 %v4582
        %4810 = vmatprep.subr.bf16.mxu0 %v4589
        %4811 = vmatpush1.bf16.msra.mxu0 %v4588
        %4812 = vmatprep.subr.bf16.mxu0 %v4595
        %4813 = vmatpush1.bf16.msra.mxu0 %v4594
        %4814 = vmatprep.subr.bf16.mxu0 %v4601
        %4815 = vmatpush1.bf16.msra.mxu0 %v4600
        %4816 = vmatprep.subr.bf16.mxu0 %v4607
        %4817 = vmatpush1.bf16.msra.mxu0 %v4606
        %4818 = vmatprep.mubr.bf16.mxu0 %v4127
        %4819 = vmatmul.mubr.bf16.gmra.mrb[0].mxu0 %v4126
        %v4820 = vpop.f32.mrb[0].mxu0
        %v4821 = vadd.f32 0.0, %v4820
        %v4822 = vpop.f32.mrb[0].mxu0
        %v4823 = vadd.f32 0.0, %v4822
        %v4824 = vpop.f32.mrb[0].mxu0
        %v4825 = vpop.f32.mrb[0].mxu0
        %4826 = vdwg.mxu0
        %v4827 = vrot.slane %v4739, 7
        %v4828 = vrot.slane %v4741, 7
        %v4829 = vsel %vm870, 0.0, %v4827
        %v4830 = vsel %vm870, 0.0, %v4828
        %v4831 = vrot.slane %v4821, 1
        %v4832 = vrot.slane %v4823, 1
        %v4833 = vsel %vm4102, 0.0, %v4831
        %v4834 = vsel %vm4102, 0.0, %v4832
        %v4835 = vld [vmem:[#allocation4 + $0x400] sm:$0x11]
        %v4836 = vunpack.c.l.bf16 %v4835
        %v4837 = vunpack.c.h.bf16 %v4835
        %v4838 = vadd.f32 %v4829, %v4780
        %v4839 = vadd.f32 %v4830, %v4782
        %v4840 = vadd.f32 %v4838, %v4833
        %v4841 = vadd.f32 %v4839, %v4834
        %v4842 = vlaneseq
        %v4843 = vshrl.u32 %v4842, 7
        %v4844 = vsub.s32 0, %v4843
        %v4845 = vrot.slane %v4836, %v4844
        %v4846 = vlaneseq
        %v4847 = vshrl.u32 %v4846, 7
        %v4848 = vsub.s32 0, %v4847
        %v4849 = vrot.slane %v4837, %v4848
        %v4850 = vadd.f32 %v4840, %v4845
        %v4851 = vadd.f32 %v4841, %v4849
        %v4852 = vmax.f32 %v4850, 0.0
        %v4853 = vmax.f32 %v4851, 0.0
        %v4854 = vrot.slane %v4852, 1
        %v4855 = vrot.slane %v4853, 1
        %v4856 = vmax.f32 %v4852, %v4854
        %v4857 = vmax.f32 %v4853, %v4855
        %v4858 = vld [vmem:[#allocation4 + $0x408] sm:$0x3]
        %v4859 = vpack.c.bf16 %v4856, %v4856
        %v4860 = vpack.c.bf16 %v4857, %v4857
        %vm4861 = vcmask 64512
        %v4863 = vsel %vm4861, %v4858, 0
        %vm4865 = vcmask 1043456
        %v4867 = vsel %vm4865, %v4859, 0
        %v4870 = vsel %vm4865, %v4860, 0
        %4872 = vmatprep.subr.bf16.mxu0 %v4870
        %4873 = vmatpush1.bf16.msra.mxu0 %v4867
        %4874 = vmatprep.subr.bf16.mxu0 0
        %4875 = vmatpush1.bf16.msra.mxu0 0
        %4876 = vmatprep.subr.bf16.mxu0 0
        %4877 = vmatpush1.bf16.msra.mxu0 0
        %4878 = vmatprep.subr.bf16.mxu0 0
        %4879 = vmatpush1.bf16.msra.mxu0 0
        %4880 = vmatprep.subr.bf16.mxu0 0
        %4881 = vmatpush1.bf16.msra.mxu0 0
        %4882 = vmatprep.subr.bf16.mxu0 0
        %4883 = vmatpush1.bf16.msra.mxu0 0
        %4884 = vmatprep.subr.bf16.mxu0 0
        %4885 = vmatpush1.bf16.msra.mxu0 0
        %4886 = vmatprep.subr.bf16.mxu0 0
        %4887 = vmatpush1.bf16.msra.mxu0 0
        %4888 = vmatprep.subr.bf16.mxu0 0
        %4889 = vmatpush1.bf16.msra.mxu0 0
        %4890 = vmatprep.subr.bf16.mxu0 0
        %4891 = vmatpush1.bf16.msra.mxu0 0
        %4892 = vmatprep.subr.bf16.mxu0 0
        %4893 = vmatpush1.bf16.msra.mxu0 0
        %4894 = vmatprep.subr.bf16.mxu0 0
        %4895 = vmatpush1.bf16.msra.mxu0 0
        %4896 = vmatprep.subr.bf16.mxu0 0
        %4897 = vmatpush1.bf16.msra.mxu0 0
        %4898 = vmatprep.subr.bf16.mxu0 0
        %4899 = vmatpush1.bf16.msra.mxu0 0
        %4900 = vmatprep.subr.bf16.mxu0 0
        %4901 = vmatpush1.bf16.msra.mxu0 0
        %4902 = vmatprep.subr.bf16.mxu0 0
        %4903 = vmatpush1.bf16.msra.mxu0 0
        %4904 = vmatprep.mubr.bf16.mxu0 0
        %4905 = vmatmul.mubr.bf16.gmra.mrb[0].mxu0 %v4863
        %v4906 = vpop.f32.mrb[0].mxu0
        %v4907 = vadd.f32 0.0, %v4906
        %v4908 = vpop.f32.mrb[0].mxu0
        %v4909 = vadd.f32 0.0, %v4908
        %v4910 = vpop.f32.mrb[0].mxu0
        %v4911 = vpop.f32.mrb[0].mxu0
        %4912 = vdwg.mxu0
        %4913 = vrot.lane.b32.xlu0 %v4907, 64
        %v4914 = vpop.permute.xlu0 %4913
        %4915 = vrot.lane.b32.xlu0 %v4909, 64
        %v4916 = vpop.permute.xlu0 %4915
        %vm4917 = vcmp.lt.s32.totalorder %v1206, 64
        %v4918 = vsel %vm4917, %v4914, %v4916
        %v4919 = vsel %vm4917, %v4916, %v4914
        %v4920 = vmax.f32 %v4907, %v4918
        %v4921 = vmax.f32 %v4909, %v4919
        %v4922 = vpack.c.bf16 %v4920, %v4920
        %v4923 = vpack.c.bf16 %v4921, %v4921
        %v4924 = vld [vmem:[#allocation4 + $0x410] sm:$0xf]
        %v4925 = vld [vmem:[#allocation4 + $0x418] sm:$0xf]
        %v4926 = vld [vmem:[#allocation4 + $0x420] sm:$0xf]
        %v4927 = vld [vmem:[#allocation4 + $0x428] sm:$0xf]
        %v4928 = vld [vmem:[#allocation4 + $0x430] sm:$0xf]
        %v4929 = vld [vmem:[#allocation4 + $0x438] sm:$0xf]
        %v4930 = vld [vmem:[#allocation4 + $0x440] sm:$0xf]
        %v4931 = vld [vmem:[#allocation4 + $0x448] sm:$0xf]
        %v4932 = vld [vmem:[#allocation4 + $0x450] sm:$0xf]
        %v4933 = vld [vmem:[#allocation4 + $0x458] sm:$0xf]
        %v4934 = vld [vmem:[#allocation4 + $0x460] sm:$0xf]
        %v4935 = vld [vmem:[#allocation4 + $0x468] sm:$0xf]
        %v4936 = vld [vmem:[#allocation4 + $0x470] sm:$0xf]
        %v4937 = vld [vmem:[#allocation4 + $0x478] sm:$0xf]
        %v4938 = vld [vmem:[#allocation4 + $0x480] sm:$0xf]
        %v4939 = vld [vmem:[#allocation4 + $0x488] sm:$0xf]
        %v4940 = vld [vmem:[#allocation4 + $0x490] sm:$0xf]
        %v4941 = vld [vmem:[#allocation4 + $0x498] sm:$0xf]
        %v4942 = vld [vmem:[#allocation4 + $0x4a0] sm:$0xf]
        %v4943 = vld [vmem:[#allocation4 + $0x4a8] sm:$0xf]
        %v4944 = vld [vmem:[#allocation4 + $0x4b0] sm:$0xf]
        %v4945 = vld [vmem:[#allocation4 + $0x4b8] sm:$0xf]
        %v4946 = vld [vmem:[#allocation4 + $0x4c0] sm:$0xf]
        %v4947 = vld [vmem:[#allocation4 + $0x4c8] sm:$0xf]
        %v4948 = vld [vmem:[#allocation4 + $0x4d0] sm:$0xf]
        %v4949 = vld [vmem:[#allocation4 + $0x4d8] sm:$0xf]
        %v4950 = vld [vmem:[#allocation4 + $0x4e0] sm:$0xf]
        %v4951 = vld [vmem:[#allocation4 + $0x4e8] sm:$0xf]
        %v4952 = vld [vmem:[#allocation4 + $0x4f0] sm:$0xf]
        %v4953 = vld [vmem:[#allocation4 + $0x4f8] sm:$0xf]
        %v4954 = vld [vmem:[#allocation4 + $0x500] sm:$0xf]
        %v4955 = vld [vmem:[#allocation4 + $0x508] sm:$0xf]
        %v4988 = vunpack.c.l.b16 %v4924
        %v4989 = vunpack.c.l.b16 %v4925
        %v4990 = vunpack.c.l.b16 %v4926
        %v4991 = vunpack.c.l.b16 %v4927
        %v4992 = vunpack.c.l.b16 %v4928
        %v4993 = vunpack.c.l.b16 %v4929
        %v4994 = vunpack.c.l.b16 %v4930
        %v4995 = vunpack.c.l.b16 %v4931
        %v4996 = vunpack.c.l.b16 %v4932
        %v4997 = vunpack.c.l.b16 %v4933
        %v4998 = vunpack.c.l.b16 %v4934
        %v4999 = vunpack.c.l.b16 %v4935
        %v5000 = vunpack.c.l.b16 %v4936
        %v5001 = vunpack.c.l.b16 %v4937
        %v5002 = vunpack.c.l.b16 %v4938
        %v5003 = vunpack.c.l.b16 %v4939
        %v5004 = vunpack.c.l.b16 %v4940
        %v5005 = vunpack.c.l.b16 %v4941
        %v5006 = vunpack.c.l.b16 %v4942
        %v5007 = vunpack.c.l.b16 %v4943
        %v5008 = vunpack.c.l.b16 %v4944
        %v5009 = vunpack.c.l.b16 %v4945
        %v5010 = vunpack.c.l.b16 %v4946
        %v5011 = vunpack.c.l.b16 %v4947
        %v5012 = vunpack.c.l.b16 %v4948
        %v5013 = vunpack.c.l.b16 %v4949
        %v5014 = vunpack.c.l.b16 %v4950
        %v5015 = vunpack.c.l.b16 %v4951
        %v5016 = vunpack.c.l.b16 %v4952
        %v5017 = vunpack.c.l.b16 %v4953
        %v5018 = vunpack.c.l.b16 %v4954
        %v5019 = vunpack.c.l.b16 %v4955
        %v5020 = vpack.c.b16 %v4989, %v4988
        %v5021 = vpack.c.b16 %v4991, %v4990
        %v5022 = vpack.c.b16 %v4993, %v4992
        %v5023 = vpack.c.b16 %v4995, %v4994
        %v5024 = vpack.c.b16 %v4997, %v4996
        %v5025 = vpack.c.b16 %v4999, %v4998
        %v5026 = vpack.c.b16 %v5001, %v5000
        %v5027 = vpack.c.b16 %v5003, %v5002
        %v5028 = vpack.c.b16 %v5005, %v5004
        %v5029 = vpack.c.b16 %v5007, %v5006
        %v5030 = vpack.c.b16 %v5009, %v5008
        %v5031 = vpack.c.b16 %v5011, %v5010
        %v5032 = vpack.c.b16 %v5013, %v5012
        %v5033 = vpack.c.b16 %v5015, %v5014
        %v5034 = vpack.c.b16 %v5017, %v5016
        %v5035 = vpack.c.b16 %v5019, %v5018
        %5052 = vmatprep.subr.bf16.mxu0 0
        %5053 = vmatpush1.bf16.msra.mxu0 %v5020
        %5054 = vmatprep.subr.bf16.mxu0 0
        %5055 = vmatpush1.bf16.msra.mxu0 %v5021
        %5056 = vmatprep.subr.bf16.mxu0 0
        %5057 = vmatpush1.bf16.msra.mxu0 %v5022
        %5058 = vmatprep.subr.bf16.mxu0 0
        %5059 = vmatpush1.bf16.msra.mxu0 %v5023
        %5060 = vmatprep.subr.bf16.mxu0 0
        %5061 = vmatpush1.bf16.msra.mxu0 %v5024
        %5062 = vmatprep.subr.bf16.mxu0 0
        %5063 = vmatpush1.bf16.msra.mxu0 %v5025
        %5064 = vmatprep.subr.bf16.mxu0 0
        %5065 = vmatpush1.bf16.msra.mxu0 %v5026
        %5066 = vmatprep.subr.bf16.mxu0 0
        %5067 = vmatpush1.bf16.msra.mxu0 %v5027
        %5068 = vmatprep.subr.bf16.mxu0 0
        %5069 = vmatpush1.bf16.msra.mxu0 %v5028
        %5070 = vmatprep.subr.bf16.mxu0 0
        %5071 = vmatpush1.bf16.msra.mxu0 %v5029
        %5072 = vmatprep.subr.bf16.mxu0 0
        %5073 = vmatpush1.bf16.msra.mxu0 %v5030
        %5074 = vmatprep.subr.bf16.mxu0 0
        %5075 = vmatpush1.bf16.msra.mxu0 %v5031
        %5076 = vmatprep.subr.bf16.mxu0 0
        %5077 = vmatpush1.bf16.msra.mxu0 %v5032
        %5078 = vmatprep.subr.bf16.mxu0 0
        %5079 = vmatpush1.bf16.msra.mxu0 %v5033
        %5080 = vmatprep.subr.bf16.mxu0 0
        %5081 = vmatpush1.bf16.msra.mxu0 %v5034
        %5082 = vmatprep.subr.bf16.mxu0 0
        %5083 = vmatpush1.bf16.msra.mxu0 %v5035
        %5084 = vmatprep.mubr.bf16.mxu0 %v4923
        %5085 = vmatmul.mubr.bf16.gmra.mrb[0].mxu0 %v4922
        %v5086 = vpop.f32.mrb[0].mxu0
        %v5087 = vadd.f32 0.0, %v5086
        %v5088 = vpop.f32.mrb[0].mxu0
        %v5089 = vpop.f32.mrb[0].mxu0
        %v5090 = vpop.f32.mrb[0].mxu0
        %5091 = vdwg.mxu0
        %v5092 = vpack.c.bf16 %v5087, %v5087
        %v5093 = vld [vmem:[#allocation6] sm:$0xff]
        %v5094 = vld [vmem:[#allocation6 + $0x8] sm:$0xff]
        %v5095 = vld [vmem:[#allocation6 + $0x10] sm:$0xff]
        %v5096 = vld [vmem:[#allocation6 + $0x18] sm:$0xff]
        %v5097 = vld [vmem:[#allocation6 + $0x20] sm:$0xff]
        %v5098 = vld [vmem:[#allocation6 + $0x28] sm:$0xff]
        %v5099 = vld [vmem:[#allocation6 + $0x30] sm:$0xff]
        %v5100 = vld [vmem:[#allocation6 + $0x38] sm:$0xff]
        %v5101 = vld [vmem:[#allocation6 + $0x40] sm:$0xff]
        %v5102 = vld [vmem:[#allocation6 + $0x48] sm:$0xff]
        %v5103 = vld [vmem:[#allocation6 + $0x50] sm:$0xff]
        %v5104 = vld [vmem:[#allocation6 + $0x58] sm:$0xff]
        %v5105 = vld [vmem:[#allocation6 + $0x60] sm:$0xff]
        %v5106 = vld [vmem:[#allocation6 + $0x68] sm:$0xff]
        %v5107 = vld [vmem:[#allocation6 + $0x70] sm:$0xff]
        %v5108 = vld [vmem:[#allocation6 + $0x78] sm:$0xff]
        %v5109 = vld [vmem:[#allocation6 + $0x80] sm:$0xff]
        %v5110 = vld [vmem:[#allocation6 + $0x88] sm:$0xff]
        %v5111 = vld [vmem:[#allocation6 + $0x90] sm:$0xff]
        %v5112 = vld [vmem:[#allocation6 + $0x98] sm:$0xff]
        %v5113 = vld [vmem:[#allocation6 + $0xa0] sm:$0xff]
        %v5114 = vld [vmem:[#allocation6 + $0xa8] sm:$0xff]
        %v5115 = vld [vmem:[#allocation6 + $0xb0] sm:$0xff]
        %v5116 = vld [vmem:[#allocation6 + $0xb8] sm:$0xff]
        %v5117 = vld [vmem:[#allocation6 + $0xc0] sm:$0xff]
        %v5118 = vld [vmem:[#allocation6 + $0xc8] sm:$0xff]
        %v5119 = vld [vmem:[#allocation6 + $0xd0] sm:$0xff]
        %v5120 = vld [vmem:[#allocation6 + $0xd8] sm:$0xff]
        %v5121 = vld [vmem:[#allocation6 + $0xe0] sm:$0xff]
        %v5122 = vld [vmem:[#allocation6 + $0xe8] sm:$0xff]
        %v5123 = vld [vmem:[#allocation6 + $0xf0] sm:$0xff]
        %v5124 = vld [vmem:[#allocation6 + $0xf8] sm:$0xff]
        %v5125 = vld [vmem:[#allocation6 + $0x100] sm:$0xff]
        %v5126 = vld [vmem:[#allocation6 + $0x108] sm:$0xff]
        %v5127 = vld [vmem:[#allocation6 + $0x110] sm:$0xff]
        %v5128 = vld [vmem:[#allocation6 + $0x118] sm:$0xff]
        %v5129 = vld [vmem:[#allocation6 + $0x120] sm:$0xff]
        %v5130 = vld [vmem:[#allocation6 + $0x128] sm:$0xff]
        %v5131 = vld [vmem:[#allocation6 + $0x130] sm:$0xff]
        %v5132 = vld [vmem:[#allocation6 + $0x138] sm:$0xff]
        %v5133 = vld [vmem:[#allocation6 + $0x140] sm:$0xff]
        %v5134 = vld [vmem:[#allocation6 + $0x148] sm:$0xff]
        %v5135 = vld [vmem:[#allocation6 + $0x150] sm:$0xff]
        %v5136 = vld [vmem:[#allocation6 + $0x158] sm:$0xff]
        %v5137 = vld [vmem:[#allocation6 + $0x160] sm:$0xff]
        %v5138 = vld [vmem:[#allocation6 + $0x168] sm:$0xff]
        %v5139 = vld [vmem:[#allocation6 + $0x170] sm:$0xff]
        %v5140 = vld [vmem:[#allocation6 + $0x178] sm:$0xff]
        %v5141 = vld [vmem:[#allocation6 + $0x180] sm:$0xff]
        %v5142 = vld [vmem:[#allocation6 + $0x188] sm:$0xff]
        %v5143 = vld [vmem:[#allocation6 + $0x190] sm:$0xff]
        %v5144 = vld [vmem:[#allocation6 + $0x198] sm:$0xff]
        %v5145 = vld [vmem:[#allocation6 + $0x1a0] sm:$0xff]
        %v5146 = vld [vmem:[#allocation6 + $0x1a8] sm:$0xff]
        %v5147 = vld [vmem:[#allocation6 + $0x1b0] sm:$0xff]
        %v5148 = vld [vmem:[#allocation6 + $0x1b8] sm:$0xff]
        %v5149 = vld [vmem:[#allocation6 + $0x1c0] sm:$0xff]
        %v5150 = vld [vmem:[#allocation6 + $0x1c8] sm:$0xff]
        %v5151 = vld [vmem:[#allocation6 + $0x1d0] sm:$0xff]
        %v5152 = vld [vmem:[#allocation6 + $0x1d8] sm:$0xff]
        %v5153 = vld [vmem:[#allocation6 + $0x1e0] sm:$0xff]
        %v5154 = vld [vmem:[#allocation6 + $0x1e8] sm:$0xff]
        %v5155 = vld [vmem:[#allocation6 + $0x1f0] sm:$0xff]
        %v5156 = vld [vmem:[#allocation6 + $0x1f8] sm:$0xff]
        %v5221 = vunpack.c.l.b16 %v5093
        %v5222 = vunpack.c.h.b16 %v5093
        %v5223 = vunpack.c.l.b16 %v5094
        %v5224 = vunpack.c.h.b16 %v5094
        %v5225 = vunpack.c.l.b16 %v5095
        %v5226 = vunpack.c.h.b16 %v5095
        %v5227 = vunpack.c.l.b16 %v5096
        %v5228 = vunpack.c.h.b16 %v5096
        %v5229 = vunpack.c.l.b16 %v5097
        %v5230 = vunpack.c.h.b16 %v5097
        %v5231 = vunpack.c.l.b16 %v5098
        %v5232 = vunpack.c.h.b16 %v5098
        %v5233 = vunpack.c.l.b16 %v5099
        %v5234 = vunpack.c.h.b16 %v5099
        %v5235 = vunpack.c.l.b16 %v5100
        %v5236 = vunpack.c.h.b16 %v5100
        %v5237 = vunpack.c.l.b16 %v5101
        %v5238 = vunpack.c.h.b16 %v5101
        %v5239 = vunpack.c.l.b16 %v5102
        %v5240 = vunpack.c.h.b16 %v5102
        %v5241 = vunpack.c.l.b16 %v5103
        %v5242 = vunpack.c.h.b16 %v5103
        %v5243 = vunpack.c.l.b16 %v5104
        %v5244 = vunpack.c.h.b16 %v5104
        %v5245 = vunpack.c.l.b16 %v5105
        %v5246 = vunpack.c.h.b16 %v5105
        %v5247 = vunpack.c.l.b16 %v5106
        %v5248 = vunpack.c.h.b16 %v5106
        %v5249 = vunpack.c.l.b16 %v5107
        %v5250 = vunpack.c.h.b16 %v5107
        %v5251 = vunpack.c.l.b16 %v5108
        %v5252 = vunpack.c.h.b16 %v5108
        %v5253 = vunpack.c.l.b16 %v5109
        %v5254 = vunpack.c.h.b16 %v5109
        %v5255 = vunpack.c.l.b16 %v5110
        %v5256 = vunpack.c.h.b16 %v5110
        %v5257 = vunpack.c.l.b16 %v5111
        %v5258 = vunpack.c.h.b16 %v5111
        %v5259 = vunpack.c.l.b16 %v5112
        %v5260 = vunpack.c.h.b16 %v5112
        %v5261 = vunpack.c.l.b16 %v5113
        %v5262 = vunpack.c.h.b16 %v5113
        %v5263 = vunpack.c.l.b16 %v5114
        %v5264 = vunpack.c.h.b16 %v5114
        %v5265 = vunpack.c.l.b16 %v5115
        %v5266 = vunpack.c.h.b16 %v5115
        %v5267 = vunpack.c.l.b16 %v5116
        %v5268 = vunpack.c.h.b16 %v5116
        %v5269 = vunpack.c.l.b16 %v5117
        %v5270 = vunpack.c.h.b16 %v5117
        %v5271 = vunpack.c.l.b16 %v5118
        %v5272 = vunpack.c.h.b16 %v5118
        %v5273 = vunpack.c.l.b16 %v5119
        %v5274 = vunpack.c.h.b16 %v5119
        %v5275 = vunpack.c.l.b16 %v5120
        %v5276 = vunpack.c.h.b16 %v5120
        %v5277 = vunpack.c.l.b16 %v5121
        %v5278 = vunpack.c.h.b16 %v5121
        %v5279 = vunpack.c.l.b16 %v5122
        %v5280 = vunpack.c.h.b16 %v5122
        %v5281 = vunpack.c.l.b16 %v5123
        %v5282 = vunpack.c.h.b16 %v5123
        %v5283 = vunpack.c.l.b16 %v5124
        %v5284 = vunpack.c.h.b16 %v5124
        %v5285 = vunpack.c.l.b16 %v5125
        %v5286 = vunpack.c.h.b16 %v5125
        %v5287 = vunpack.c.l.b16 %v5126
        %v5288 = vunpack.c.h.b16 %v5126
        %v5289 = vunpack.c.l.b16 %v5127
        %v5290 = vunpack.c.h.b16 %v5127
        %v5291 = vunpack.c.l.b16 %v5128
        %v5292 = vunpack.c.h.b16 %v5128
        %v5293 = vunpack.c.l.b16 %v5129
        %v5294 = vunpack.c.h.b16 %v5129
        %v5295 = vunpack.c.l.b16 %v5130
        %v5296 = vunpack.c.h.b16 %v5130
        %v5297 = vunpack.c.l.b16 %v5131
        %v5298 = vunpack.c.h.b16 %v5131
        %v5299 = vunpack.c.l.b16 %v5132
        %v5300 = vunpack.c.h.b16 %v5132
        %v5301 = vunpack.c.l.b16 %v5133
        %v5302 = vunpack.c.h.b16 %v5133
        %v5303 = vunpack.c.l.b16 %v5134
        %v5304 = vunpack.c.h.b16 %v5134
        %v5305 = vunpack.c.l.b16 %v5135
        %v5306 = vunpack.c.h.b16 %v5135
        %v5307 = vunpack.c.l.b16 %v5136
        %v5308 = vunpack.c.h.b16 %v5136
        %v5309 = vunpack.c.l.b16 %v5137
        %v5310 = vunpack.c.h.b16 %v5137
        %v5311 = vunpack.c.l.b16 %v5138
        %v5312 = vunpack.c.h.b16 %v5138
        %v5313 = vunpack.c.l.b16 %v5139
        %v5314 = vunpack.c.h.b16 %v5139
        %v5315 = vunpack.c.l.b16 %v5140
        %v5316 = vunpack.c.h.b16 %v5140
        %v5317 = vunpack.c.l.b16 %v5141
        %v5318 = vunpack.c.h.b16 %v5141
        %v5319 = vunpack.c.l.b16 %v5142
        %v5320 = vunpack.c.h.b16 %v5142
        %v5321 = vunpack.c.l.b16 %v5143
        %v5322 = vunpack.c.h.b16 %v5143
        %v5323 = vunpack.c.l.b16 %v5144
        %v5324 = vunpack.c.h.b16 %v5144
        %v5325 = vunpack.c.l.b16 %v5145
        %v5326 = vunpack.c.h.b16 %v5145
        %v5327 = vunpack.c.l.b16 %v5146
        %v5328 = vunpack.c.h.b16 %v5146
        %v5329 = vunpack.c.l.b16 %v5147
        %v5330 = vunpack.c.h.b16 %v5147
        %v5331 = vunpack.c.l.b16 %v5148
        %v5332 = vunpack.c.h.b16 %v5148
        %v5333 = vunpack.c.l.b16 %v5149
        %v5334 = vunpack.c.h.b16 %v5149
        %v5335 = vunpack.c.l.b16 %v5150
        %v5336 = vunpack.c.h.b16 %v5150
        %v5337 = vunpack.c.l.b16 %v5151
        %v5338 = vunpack.c.h.b16 %v5151
        %v5339 = vunpack.c.l.b16 %v5152
        %v5340 = vunpack.c.h.b16 %v5152
        %v5341 = vunpack.c.l.b16 %v5153
        %v5342 = vunpack.c.h.b16 %v5153
        %v5343 = vunpack.c.l.b16 %v5154
        %v5344 = vunpack.c.h.b16 %v5154
        %v5345 = vunpack.c.l.b16 %v5155
        %v5346 = vunpack.c.h.b16 %v5155
        %v5347 = vunpack.c.l.b16 %v5156
        %v5348 = vunpack.c.h.b16 %v5156
        %v5349 = vpack.c.b16 %v5229, %v5221
        %v5350 = vpack.c.b16 %v5230, %v5222
        %v5351 = vpack.c.b16 %v5231, %v5223
        %v5352 = vpack.c.b16 %v5232, %v5224
        %v5353 = vpack.c.b16 %v5233, %v5225
        %v5354 = vpack.c.b16 %v5234, %v5226
        %v5355 = vpack.c.b16 %v5235, %v5227
        %v5356 = vpack.c.b16 %v5236, %v5228
        %v5357 = vpack.c.b16 %v5245, %v5237
        %v5358 = vpack.c.b16 %v5246, %v5238
        %v5359 = vpack.c.b16 %v5247, %v5239
        %v5360 = vpack.c.b16 %v5248, %v5240
        %v5361 = vpack.c.b16 %v5249, %v5241
        %v5362 = vpack.c.b16 %v5250, %v5242
        %v5363 = vpack.c.b16 %v5251, %v5243
        %v5364 = vpack.c.b16 %v5252, %v5244
        %v5365 = vpack.c.b16 %v5261, %v5253
        %v5366 = vpack.c.b16 %v5262, %v5254
        %v5367 = vpack.c.b16 %v5263, %v5255
        %v5368 = vpack.c.b16 %v5264, %v5256
        %v5369 = vpack.c.b16 %v5265, %v5257
        %v5370 = vpack.c.b16 %v5266, %v5258
        %v5371 = vpack.c.b16 %v5267, %v5259
        %v5372 = vpack.c.b16 %v5268, %v5260
        %v5373 = vpack.c.b16 %v5277, %v5269
        %v5374 = vpack.c.b16 %v5278, %v5270
        %v5375 = vpack.c.b16 %v5279, %v5271
        %v5376 = vpack.c.b16 %v5280, %v5272
        %v5377 = vpack.c.b16 %v5281, %v5273
        %v5378 = vpack.c.b16 %v5282, %v5274
        %v5379 = vpack.c.b16 %v5283, %v5275
        %v5380 = vpack.c.b16 %v5284, %v5276
        %v5381 = vpack.c.b16 %v5293, %v5285
        %v5382 = vpack.c.b16 %v5294, %v5286
        %v5383 = vpack.c.b16 %v5295, %v5287
        %v5384 = vpack.c.b16 %v5296, %v5288
        %v5385 = vpack.c.b16 %v5297, %v5289
        %v5386 = vpack.c.b16 %v5298, %v5290
        %v5387 = vpack.c.b16 %v5299, %v5291
        %v5388 = vpack.c.b16 %v5300, %v5292
        %v5389 = vpack.c.b16 %v5309, %v5301
        %v5390 = vpack.c.b16 %v5310, %v5302
        %v5391 = vpack.c.b16 %v5311, %v5303
        %v5392 = vpack.c.b16 %v5312, %v5304
        %v5393 = vpack.c.b16 %v5313, %v5305
        %v5394 = vpack.c.b16 %v5314, %v5306
        %v5395 = vpack.c.b16 %v5315, %v5307
        %v5396 = vpack.c.b16 %v5316, %v5308
        %v5397 = vpack.c.b16 %v5325, %v5317
        %v5398 = vpack.c.b16 %v5326, %v5318
        %v5399 = vpack.c.b16 %v5327, %v5319
        %v5400 = vpack.c.b16 %v5328, %v5320
        %v5401 = vpack.c.b16 %v5329, %v5321
        %v5402 = vpack.c.b16 %v5330, %v5322
        %v5403 = vpack.c.b16 %v5331, %v5323
        %v5404 = vpack.c.b16 %v5332, %v5324
        %v5405 = vpack.c.b16 %v5341, %v5333
        %v5406 = vpack.c.b16 %v5342, %v5334
        %v5407 = vpack.c.b16 %v5343, %v5335
        %v5408 = vpack.c.b16 %v5344, %v5336
        %v5409 = vpack.c.b16 %v5345, %v5337
        %v5410 = vpack.c.b16 %v5346, %v5338
        %v5411 = vpack.c.b16 %v5347, %v5339
        %v5412 = vpack.c.b16 %v5348, %v5340
        %5477 = vmatprep.subr.bf16.mxu0 %v5350
        %5478 = vmatpush1.bf16.msra.mxu0 %v5349
        %5479 = vmatprep.subr.bf16.mxu0 %v5358
        %5480 = vmatpush1.bf16.msra.mxu0 %v5357
        %5481 = vmatprep.subr.bf16.mxu0 %v5366
        %5482 = vmatpush1.bf16.msra.mxu0 %v5365
        %5483 = vmatprep.subr.bf16.mxu0 %v5374
        %5484 = vmatpush1.bf16.msra.mxu0 %v5373
        %5485 = vmatprep.subr.bf16.mxu0 %v5382
        %5486 = vmatpush1.bf16.msra.mxu0 %v5381
        %5487 = vmatprep.subr.bf16.mxu0 %v5390
        %5488 = vmatpush1.bf16.msra.mxu0 %v5389
        %5489 = vmatprep.subr.bf16.mxu0 %v5398
        %5490 = vmatpush1.bf16.msra.mxu0 %v5397
        %5491 = vmatprep.subr.bf16.mxu0 %v5406
        %5492 = vmatpush1.bf16.msra.mxu0 %v5405
        %5493 = vmatprep.subr.bf16.mxu0 0
        %5494 = vmatpush1.bf16.msra.mxu0 0
        %5495 = vmatprep.subr.bf16.mxu0 0
        %5496 = vmatpush1.bf16.msra.mxu0 0
        %5497 = vmatprep.subr.bf16.mxu0 0
        %5498 = vmatpush1.bf16.msra.mxu0 0
        %5499 = vmatprep.subr.bf16.mxu0 0
        %5500 = vmatpush1.bf16.msra.mxu0 0
        %5501 = vmatprep.subr.bf16.mxu0 0
        %5502 = vmatpush1.bf16.msra.mxu0 0
        %5503 = vmatprep.subr.bf16.mxu0 0
        %5504 = vmatpush1.bf16.msra.mxu0 0
        %5505 = vmatprep.subr.bf16.mxu0 0
        %5506 = vmatpush1.bf16.msra.mxu0 0
        %5507 = vmatprep.subr.bf16.mxu0 0
        %5508 = vmatpush1.bf16.msra.mxu0 0
        %5509 = vmatprep.mubr.bf16.mxu0 0
        %5510 = vmatmul.mubr.bf16.gmra.mrb[0].mxu0 %v5092
        %v5511 = vpop.f32.mrb[0].mxu0
        %v5512 = vadd.f32 0.0, %v5511
        %v5513 = vpop.f32.mrb[0].mxu0
        %v5514 = vadd.f32 0.0, %v5513
        %v5515 = vpop.f32.mrb[0].mxu0
        %v5516 = vpop.f32.mrb[0].mxu0
        %5517 = vdwg.mxu0
        %5518 = vmatprep.subr.bf16.mxu0 %v5352
        %5519 = vmatpush1.bf16.msra.mxu0 %v5351
        %5520 = vmatprep.subr.bf16.mxu0 %v5360
        %5521 = vmatpush1.bf16.msra.mxu0 %v5359
        %5522 = vmatprep.subr.bf16.mxu0 %v5368
        %5523 = vmatpush1.bf16.msra.mxu0 %v5367
        %5524 = vmatprep.subr.bf16.mxu0 %v5376
        %5525 = vmatpush1.bf16.msra.mxu0 %v5375
        %5526 = vmatprep.subr.bf16.mxu0 %v5384
        %5527 = vmatpush1.bf16.msra.mxu0 %v5383
        %5528 = vmatprep.subr.bf16.mxu0 %v5392
        %5529 = vmatpush1.bf16.msra.mxu0 %v5391
        %5530 = vmatprep.subr.bf16.mxu0 %v5400
        %5531 = vmatpush1.bf16.msra.mxu0 %v5399
        %5532 = vmatprep.subr.bf16.mxu0 %v5408
        %5533 = vmatpush1.bf16.msra.mxu0 %v5407
        %5534 = vmatprep.subr.bf16.mxu0 0
        %5535 = vmatpush1.bf16.msra.mxu0 0
        %5536 = vmatprep.subr.bf16.mxu0 0
        %5537 = vmatpush1.bf16.msra.mxu0 0
        %5538 = vmatprep.subr.bf16.mxu0 0
        %5539 = vmatpush1.bf16.msra.mxu0 0
        %5540 = vmatprep.subr.bf16.mxu0 0
        %5541 = vmatpush1.bf16.msra.mxu0 0
        %5542 = vmatprep.subr.bf16.mxu0 0
        %5543 = vmatpush1.bf16.msra.mxu0 0
        %5544 = vmatprep.subr.bf16.mxu0 0
        %5545 = vmatpush1.bf16.msra.mxu0 0
        %5546 = vmatprep.subr.bf16.mxu0 0
        %5547 = vmatpush1.bf16.msra.mxu0 0
        %5548 = vmatprep.subr.bf16.mxu0 0
        %5549 = vmatpush1.bf16.msra.mxu0 0
        %5550 = vmatprep.mubr.bf16.mxu0 0
        %5551 = vmatmul.mubr.bf16.gmra.mrb[0].mxu0 %v5092
        %v5552 = vpop.f32.mrb[0].mxu0
        %v5553 = vadd.f32 0.0, %v5552
        %v5554 = vpop.f32.mrb[0].mxu0
        %v5555 = vadd.f32 0.0, %v5554
        %v5556 = vpop.f32.mrb[0].mxu0
        %v5557 = vpop.f32.mrb[0].mxu0
        %5558 = vdwg.mxu0
        %5559 = vmatprep.subr.bf16.mxu0 %v5354
        %5560 = vmatpush1.bf16.msra.mxu0 %v5353
        %5561 = vmatprep.subr.bf16.mxu0 %v5362
        %5562 = vmatpush1.bf16.msra.mxu0 %v5361
        %5563 = vmatprep.subr.bf16.mxu0 %v5370
        %5564 = vmatpush1.bf16.msra.mxu0 %v5369
        %5565 = vmatprep.subr.bf16.mxu0 %v5378
        %5566 = vmatpush1.bf16.msra.mxu0 %v5377
        %5567 = vmatprep.subr.bf16.mxu0 %v5386
        %5568 = vmatpush1.bf16.msra.mxu0 %v5385
        %5569 = vmatprep.subr.bf16.mxu0 %v5394
        %5570 = vmatpush1.bf16.msra.mxu0 %v5393
        %5571 = vmatprep.subr.bf16.mxu0 %v5402
        %5572 = vmatpush1.bf16.msra.mxu0 %v5401
        %5573 = vmatprep.subr.bf16.mxu0 %v5410
        %5574 = vmatpush1.bf16.msra.mxu0 %v5409
        %5575 = vmatprep.subr.bf16.mxu0 0
        %5576 = vmatpush1.bf16.msra.mxu0 0
        %5577 = vmatprep.subr.bf16.mxu0 0
        %5578 = vmatpush1.bf16.msra.mxu0 0
        %5579 = vmatprep.subr.bf16.mxu0 0
        %5580 = vmatpush1.bf16.msra.mxu0 0
        %5581 = vmatprep.subr.bf16.mxu0 0
        %5582 = vmatpush1.bf16.msra.mxu0 0
        %5583 = vmatprep.subr.bf16.mxu0 0
        %5584 = vmatpush1.bf16.msra.mxu0 0
        %5585 = vmatprep.subr.bf16.mxu0 0
        %5586 = vmatpush1.bf16.msra.mxu0 0
        %5587 = vmatprep.subr.bf16.mxu0 0
        %5588 = vmatpush1.bf16.msra.mxu0 0
        %5589 = vmatprep.subr.bf16.mxu0 0
        %5590 = vmatpush1.bf16.msra.mxu0 0
        %5591 = vmatprep.mubr.bf16.mxu0 0
        %5592 = vmatmul.mubr.bf16.gmra.mrb[0].mxu0 %v5092
        %v5593 = vpop.f32.mrb[0].mxu0
        %v5594 = vadd.f32 0.0, %v5593
        %v5595 = vpop.f32.mrb[0].mxu0
        %v5596 = vadd.f32 0.0, %v5595
        %v5597 = vpop.f32.mrb[0].mxu0
        %v5598 = vpop.f32.mrb[0].mxu0
        %5599 = vdwg.mxu0
        %5600 = vmatprep.subr.bf16.mxu0 %v5356
        %5601 = vmatpush1.bf16.msra.mxu0 %v5355
        %5602 = vmatprep.subr.bf16.mxu0 %v5364
        %5603 = vmatpush1.bf16.msra.mxu0 %v5363
        %5604 = vmatprep.subr.bf16.mxu0 %v5372
        %5605 = vmatpush1.bf16.msra.mxu0 %v5371
        %5606 = vmatprep.subr.bf16.mxu0 %v5380
        %5607 = vmatpush1.bf16.msra.mxu0 %v5379
        %5608 = vmatprep.subr.bf16.mxu0 %v5388
        %5609 = vmatpush1.bf16.msra.mxu0 %v5387
        %5610 = vmatprep.subr.bf16.mxu0 %v5396
        %5611 = vmatpush1.bf16.msra.mxu0 %v5395
        %5612 = vmatprep.subr.bf16.mxu0 %v5404
        %5613 = vmatpush1.bf16.msra.mxu0 %v5403
        %5614 = vmatprep.subr.bf16.mxu0 %v5412
        %5615 = vmatpush1.bf16.msra.mxu0 %v5411
        %5616 = vmatprep.subr.bf16.mxu0 0
        %5617 = vmatpush1.bf16.msra.mxu0 0
        %5618 = vmatprep.subr.bf16.mxu0 0
        %5619 = vmatpush1.bf16.msra.mxu0 0
        %5620 = vmatprep.subr.bf16.mxu0 0
        %5621 = vmatpush1.bf16.msra.mxu0 0
        %5622 = vmatprep.subr.bf16.mxu0 0
        %5623 = vmatpush1.bf16.msra.mxu0 0
        %5624 = vmatprep.subr.bf16.mxu0 0
        %5625 = vmatpush1.bf16.msra.mxu0 0
        %5626 = vmatprep.subr.bf16.mxu0 0
        %5627 = vmatpush1.bf16.msra.mxu0 0
        %5628 = vmatprep.subr.bf16.mxu0 0
        %5629 = vmatpush1.bf16.msra.mxu0 0
        %5630 = vmatprep.subr.bf16.mxu0 0
        %5631 = vmatpush1.bf16.msra.mxu0 0
        %5632 = vmatprep.mubr.bf16.mxu0 0
        %5633 = vmatmul.mubr.bf16.gmra.mrb[0].mxu0 %v5092
        %v5634 = vpop.f32.mrb[0].mxu0
        %v5635 = vadd.f32 0.0, %v5634
        %v5636 = vpop.f32.mrb[0].mxu0
        %v5637 = vadd.f32 0.0, %v5636
        %v5638 = vpop.f32.mrb[0].mxu0
        %v5639 = vpop.f32.mrb[0].mxu0
        %5640 = vdwg.mxu0
        %v5641 = vld [vmem:[#allocation4 + $0x510] sm:$0x11]
        %v5642 = vunpack.c.l.bf16 %v5641
        %v5643 = vunpack.c.h.bf16 %v5641
        %v5644 = vadd.f32 %v5642, %v5512
        %v5645 = vadd.f32 %v5643, %v5514
        %v5648 = vrot.slane %v5553, 1
        %v5649 = vrot.slane %v5555, 1
        %v5652 = vadd.f32 %v5644, %v5648
        %v5653 = vadd.f32 %v5645, %v5649
        %v5656 = vrot.slane %v5594, 2
        %v5657 = vrot.slane %v5596, 2
        %v5660 = vadd.f32 %v5652, %v5656
        %v5661 = vadd.f32 %v5653, %v5657
        %v5664 = vrot.slane %v5635, 3
        %v5665 = vrot.slane %v5637, 3
        %v5668 = vadd.f32 %v5660, %v5664
        %v5669 = vadd.f32 %v5661, %v5665
        %v5670 = vmax.f32 %v5668, 0.0
        %v5671 = vmax.f32 %v5669, 0.0
        %v5672 = vpack.c.bf16 %v5670, %v5670
        %v5673 = vpack.c.bf16 %v5671, %v5671
        %v5674 = vld [vmem:[#allocation4 + $0x518] sm:$0xff]
        %v5675 = vld [vmem:[#allocation4 + $0x520] sm:$0xff]
        %v5676 = vld [vmem:[#allocation4 + $0x528] sm:$0xff]
        %v5677 = vld [vmem:[#allocation4 + $0x530] sm:$0xff]
        %v5678 = vld [vmem:[#allocation4 + $0x538] sm:$0xff]
        %v5679 = vld [vmem:[#allocation4 + $0x540] sm:$0xff]
        %v5680 = vld [vmem:[#allocation4 + $0x548] sm:$0xff]
        %v5681 = vld [vmem:[#allocation4 + $0x550] sm:$0xff]
        %v5682 = vld [vmem:[#allocation4 + $0x558] sm:$0xff]
        %v5683 = vld [vmem:[#allocation4 + $0x560] sm:$0xff]
        %v5684 = vld [vmem:[#allocation4 + $0x568] sm:$0xff]
        %v5685 = vld [vmem:[#allocation4 + $0x570] sm:$0xff]
        %v5686 = vld [vmem:[#allocation4 + $0x578] sm:$0xff]
        %v5687 = vld [vmem:[#allocation4 + $0x580] sm:$0xff]
        %v5688 = vld [vmem:[#allocation4 + $0x588] sm:$0xff]
        %v5689 = vld [vmem:[#allocation4 + $0x590] sm:$0xff]
        %v5690 = vld [vmem:[#allocation4 + $0x598] sm:$0xff]
        %v5691 = vld [vmem:[#allocation4 + $0x5a0] sm:$0xff]
        %v5692 = vld [vmem:[#allocation4 + $0x5a8] sm:$0xff]
        %v5693 = vld [vmem:[#allocation4 + $0x5b0] sm:$0xff]
        %v5694 = vld [vmem:[#allocation4 + $0x5b8] sm:$0xff]
        %v5695 = vld [vmem:[#allocation4 + $0x5c0] sm:$0xff]
        %v5696 = vld [vmem:[#allocation4 + $0x5c8] sm:$0xff]
        %v5697 = vld [vmem:[#allocation4 + $0x5d0] sm:$0xff]
        %v5698 = vld [vmem:[#allocation4 + $0x5d8] sm:$0xff]
        %v5699 = vld [vmem:[#allocation4 + $0x5e0] sm:$0xff]
        %v5700 = vld [vmem:[#allocation4 + $0x5e8] sm:$0xff]
        %v5701 = vld [vmem:[#allocation4 + $0x5f0] sm:$0xff]
        %v5702 = vld [vmem:[#allocation4 + $0x5f8] sm:$0xff]
        %v5703 = vld [vmem:[#allocation4 + $0x600] sm:$0xff]
        %v5704 = vld [vmem:[#allocation4 + $0x608] sm:$0xff]
        %v5705 = vld [vmem:[#allocation4 + $0x610] sm:$0xff]
        %v5706 = vld [vmem:[#allocation4 + $0x618] sm:$0x11]
        %v5707 = vunpack.c.l.bf16 %v5706
        %v5708 = vunpack.c.h.bf16 %v5706
        %v5741 = vunpack.c.l.b16 %v5674
        %v5742 = vunpack.c.h.b16 %v5674
        %v5743 = vunpack.c.l.b16 %v5675
        %v5744 = vunpack.c.h.b16 %v5675
        %v5745 = vunpack.c.l.b16 %v5676
        %v5746 = vunpack.c.h.b16 %v5676
        %v5747 = vunpack.c.l.b16 %v5677
        %v5748 = vunpack.c.h.b16 %v5677
        %v5749 = vunpack.c.l.b16 %v5678
        %v5750 = vunpack.c.h.b16 %v5678
        %v5751 = vunpack.c.l.b16 %v5679
        %v5752 = vunpack.c.h.b16 %v5679
        %v5753 = vunpack.c.l.b16 %v5680
        %v5754 = vunpack.c.h.b16 %v5680
        %v5755 = vunpack.c.l.b16 %v5681
        %v5756 = vunpack.c.h.b16 %v5681
        %v5757 = vunpack.c.l.b16 %v5682
        %v5758 = vunpack.c.h.b16 %v5682
        %v5759 = vunpack.c.l.b16 %v5683
        %v5760 = vunpack.c.h.b16 %v5683
        %v5761 = vunpack.c.l.b16 %v5684
        %v5762 = vunpack.c.h.b16 %v5684
        %v5763 = vunpack.c.l.b16 %v5685
        %v5764 = vunpack.c.h.b16 %v5685
        %v5765 = vunpack.c.l.b16 %v5686
        %v5766 = vunpack.c.h.b16 %v5686
        %v5767 = vunpack.c.l.b16 %v5687
        %v5768 = vunpack.c.h.b16 %v5687
        %v5769 = vunpack.c.l.b16 %v5688
        %v5770 = vunpack.c.h.b16 %v5688
        %v5771 = vunpack.c.l.b16 %v5689
        %v5772 = vunpack.c.h.b16 %v5689
        %v5773 = vunpack.c.l.b16 %v5690
        %v5774 = vunpack.c.h.b16 %v5690
        %v5775 = vunpack.c.l.b16 %v5691
        %v5776 = vunpack.c.h.b16 %v5691
        %v5777 = vunpack.c.l.b16 %v5692
        %v5778 = vunpack.c.h.b16 %v5692
        %v5779 = vunpack.c.l.b16 %v5693
        %v5780 = vunpack.c.h.b16 %v5693
        %v5781 = vunpack.c.l.b16 %v5694
        %v5782 = vunpack.c.h.b16 %v5694
        %v5783 = vunpack.c.l.b16 %v5695
        %v5784 = vunpack.c.h.b16 %v5695
        %v5785 = vunpack.c.l.b16 %v5696
        %v5786 = vunpack.c.h.b16 %v5696
        %v5787 = vunpack.c.l.b16 %v5697
        %v5788 = vunpack.c.h.b16 %v5697
        %v5789 = vunpack.c.l.b16 %v5698
        %v5790 = vunpack.c.h.b16 %v5698
        %v5791 = vunpack.c.l.b16 %v5699
        %v5792 = vunpack.c.h.b16 %v5699
        %v5793 = vunpack.c.l.b16 %v5700
        %v5794 = vunpack.c.h.b16 %v5700
        %v5795 = vunpack.c.l.b16 %v5701
        %v5796 = vunpack.c.h.b16 %v5701
        %v5797 = vunpack.c.l.b16 %v5702
        %v5798 = vunpack.c.h.b16 %v5702
        %v5799 = vunpack.c.l.b16 %v5703
        %v5800 = vunpack.c.h.b16 %v5703
        %v5801 = vunpack.c.l.b16 %v5704
        %v5802 = vunpack.c.h.b16 %v5704
        %v5803 = vunpack.c.l.b16 %v5705
        %v5804 = vunpack.c.h.b16 %v5705
        %v5805 = vpack.c.b16 %v5743, %v5741
        %v5806 = vpack.c.b16 %v5744, %v5742
        %v5807 = vpack.c.b16 %v5747, %v5745
        %v5808 = vpack.c.b16 %v5748, %v5746
        %v5809 = vpack.c.b16 %v5751, %v5749
        %v5810 = vpack.c.b16 %v5752, %v5750
        %v5811 = vpack.c.b16 %v5755, %v5753
        %v5812 = vpack.c.b16 %v5756, %v5754
        %v5813 = vpack.c.b16 %v5759, %v5757
        %v5814 = vpack.c.b16 %v5760, %v5758
        %v5815 = vpack.c.b16 %v5763, %v5761
        %v5816 = vpack.c.b16 %v5764, %v5762
        %v5817 = vpack.c.b16 %v5767, %v5765
        %v5818 = vpack.c.b16 %v5768, %v5766
        %v5819 = vpack.c.b16 %v5771, %v5769
        %v5820 = vpack.c.b16 %v5772, %v5770
        %v5821 = vpack.c.b16 %v5775, %v5773
        %v5822 = vpack.c.b16 %v5776, %v5774
        %v5823 = vpack.c.b16 %v5779, %v5777
        %v5824 = vpack.c.b16 %v5780, %v5778
        %v5825 = vpack.c.b16 %v5783, %v5781
        %v5826 = vpack.c.b16 %v5784, %v5782
        %v5827 = vpack.c.b16 %v5787, %v5785
        %v5828 = vpack.c.b16 %v5788, %v5786
        %v5829 = vpack.c.b16 %v5791, %v5789
        %v5830 = vpack.c.b16 %v5792, %v5790
        %v5831 = vpack.c.b16 %v5795, %v5793
        %v5832 = vpack.c.b16 %v5796, %v5794
        %v5833 = vpack.c.b16 %v5799, %v5797
        %v5834 = vpack.c.b16 %v5800, %v5798
        %v5835 = vpack.c.b16 %v5803, %v5801
        %v5836 = vpack.c.b16 %v5804, %v5802
        %5869 = vmatprep.subr.bf16.mxu0 %v5806
        %5870 = vmatpush1.bf16.msra.mxu0 %v5805
        %5871 = vmatprep.subr.bf16.mxu0 %v5808
        %5872 = vmatpush1.bf16.msra.mxu0 %v5807
        %5873 = vmatprep.subr.bf16.mxu0 %v5810
        %5874 = vmatpush1.bf16.msra.mxu0 %v5809
        %5875 = vmatprep.subr.bf16.mxu0 %v5812
        %5876 = vmatpush1.bf16.msra.mxu0 %v5811
        %5877 = vmatprep.subr.bf16.mxu0 %v5814
        %5878 = vmatpush1.bf16.msra.mxu0 %v5813
        %5879 = vmatprep.subr.bf16.mxu0 %v5816
        %5880 = vmatpush1.bf16.msra.mxu0 %v5815
        %5881 = vmatprep.subr.bf16.mxu0 %v5818
        %5882 = vmatpush1.bf16.msra.mxu0 %v5817
        %5883 = vmatprep.subr.bf16.mxu0 %v5820
        %5884 = vmatpush1.bf16.msra.mxu0 %v5819
        %5885 = vmatprep.subr.bf16.mxu0 %v5822
        %5886 = vmatpush1.bf16.msra.mxu0 %v5821
        %5887 = vmatprep.subr.bf16.mxu0 %v5824
        %5888 = vmatpush1.bf16.msra.mxu0 %v5823
        %5889 = vmatprep.subr.bf16.mxu0 %v5826
        %5890 = vmatpush1.bf16.msra.mxu0 %v5825
        %5891 = vmatprep.subr.bf16.mxu0 %v5828
        %5892 = vmatpush1.bf16.msra.mxu0 %v5827
        %5893 = vmatprep.subr.bf16.mxu0 %v5830
        %5894 = vmatpush1.bf16.msra.mxu0 %v5829
        %5895 = vmatprep.subr.bf16.mxu0 %v5832
        %5896 = vmatpush1.bf16.msra.mxu0 %v5831
        %5897 = vmatprep.subr.bf16.mxu0 %v5834
        %5898 = vmatpush1.bf16.msra.mxu0 %v5833
        %5899 = vmatprep.subr.bf16.mxu0 %v5836
        %5900 = vmatpush1.bf16.msra.mxu0 %v5835
        %5901 = vmatprep.mubr.bf16.mxu0 %v5673
        %5902 = vmatmul.mubr.bf16.gmra.mrb[0].mxu0 %v5672
        %v5903 = vpop.f32.mrb[0].mxu0
        %v5904 = vadd.f32 %v5707, %v5903
        %v5905 = vpop.f32.mrb[0].mxu0
        %v5906 = vadd.f32 %v5708, %v5905
        %v5907 = vpop.f32.mrb[0].mxu0
        %v5908 = vpop.f32.mrb[0].mxu0
        %5909 = vdwg.mxu0
        %v5910 = vmax.f32 %v5904, 0.0
        %v5911 = vmax.f32 %v5906, 0.0
        %v5912 = vpack.c.bf16 %v5910, %v5910
        %v5913 = vpack.c.bf16 %v5911, %v5911
        %v5914 = vld [vmem:[#allocation4 + $0x620] sm:$0xf]
        %v5915 = vld [vmem:[#allocation4 + $0x628] sm:$0xf]
        %v5916 = vld [vmem:[#allocation4 + $0x630] sm:$0xf]
        %v5917 = vld [vmem:[#allocation4 + $0x638] sm:$0xf]
        %v5918 = vld [vmem:[#allocation4 + $0x640] sm:$0xf]
        %v5919 = vld [vmem:[#allocation4 + $0x648] sm:$0xf]
        %v5920 = vld [vmem:[#allocation4 + $0x650] sm:$0xf]
        %v5921 = vld [vmem:[#allocation4 + $0x658] sm:$0xf]
        %v5922 = vld [vmem:[#allocation4 + $0x660] sm:$0xf]
        %v5923 = vld [vmem:[#allocation4 + $0x668] sm:$0xf]
        %v5924 = vld [vmem:[#allocation4 + $0x670] sm:$0xf]
        %v5925 = vld [vmem:[#allocation4 + $0x678] sm:$0xf]
        %v5926 = vld [vmem:[#allocation4 + $0x680] sm:$0xf]
        %v5927 = vld [vmem:[#allocation4 + $0x688] sm:$0xf]
        %v5928 = vld [vmem:[#allocation4 + $0x690] sm:$0xf]
        %v5929 = vld [vmem:[#allocation4 + $0x698] sm:$0xf]
        %v5930 = vld [vmem:[#allocation4 + $0x6a0] sm:$0xf]
        %v5931 = vld [vmem:[#allocation4 + $0x6a8] sm:$0xf]
        %v5932 = vld [vmem:[#allocation4 + $0x6b0] sm:$0xf]
        %v5933 = vld [vmem:[#allocation4 + $0x6b8] sm:$0xf]
        %v5934 = vld [vmem:[#allocation4 + $0x6c0] sm:$0xf]
        %v5935 = vld [vmem:[#allocation4 + $0x6c8] sm:$0xf]
        %v5936 = vld [vmem:[#allocation4 + $0x6d0] sm:$0xf]
        %v5937 = vld [vmem:[#allocation4 + $0x6d8] sm:$0xf]
        %v5938 = vld [vmem:[#allocation4 + $0x6e0] sm:$0xf]
        %v5939 = vld [vmem:[#allocation4 + $0x6e8] sm:$0xf]
        %v5940 = vld [vmem:[#allocation4 + $0x6f0] sm:$0xf]
        %v5941 = vld [vmem:[#allocation4 + $0x6f8] sm:$0xf]
        %v5942 = vld [vmem:[#allocation4 + $0x700] sm:$0xf]
        %v5943 = vld [vmem:[#allocation4 + $0x708] sm:$0xf]
        %v5944 = vld [vmem:[#allocation4 + $0x710] sm:$0xf]
        %v5945 = vld [vmem:[#allocation4 + $0x718] sm:$0xf]
        %v5946 = vld [vmem:[#allocation4 + $0x720] sm:$0x1]
        %v5947 = vunpack.c.l.bf16 %v5946
        %v5980 = vunpack.c.l.b16 %v5914
        %v5981 = vunpack.c.l.b16 %v5915
        %v5982 = vunpack.c.l.b16 %v5916
        %v5983 = vunpack.c.l.b16 %v5917
        %v5984 = vunpack.c.l.b16 %v5918
        %v5985 = vunpack.c.l.b16 %v5919
        %v5986 = vunpack.c.l.b16 %v5920
        %v5987 = vunpack.c.l.b16 %v5921
        %v5988 = vunpack.c.l.b16 %v5922
        %v5989 = vunpack.c.l.b16 %v5923
        %v5990 = vunpack.c.l.b16 %v5924
        %v5991 = vunpack.c.l.b16 %v5925
        %v5992 = vunpack.c.l.b16 %v5926
        %v5993 = vunpack.c.l.b16 %v5927
        %v5994 = vunpack.c.l.b16 %v5928
        %v5995 = vunpack.c.l.b16 %v5929
        %v5996 = vunpack.c.l.b16 %v5930
        %v5997 = vunpack.c.l.b16 %v5931
        %v5998 = vunpack.c.l.b16 %v5932
        %v5999 = vunpack.c.l.b16 %v5933
        %v6000 = vunpack.c.l.b16 %v5934
        %v6001 = vunpack.c.l.b16 %v5935
        %v6002 = vunpack.c.l.b16 %v5936
        %v6003 = vunpack.c.l.b16 %v5937
        %v6004 = vunpack.c.l.b16 %v5938
        %v6005 = vunpack.c.l.b16 %v5939
        %v6006 = vunpack.c.l.b16 %v5940
        %v6007 = vunpack.c.l.b16 %v5941
        %v6008 = vunpack.c.l.b16 %v5942
        %v6009 = vunpack.c.l.b16 %v5943
        %v6010 = vunpack.c.l.b16 %v5944
        %v6011 = vunpack.c.l.b16 %v5945
        %v6012 = vpack.c.b16 %v5981, %v5980
        %v6013 = vpack.c.b16 %v5983, %v5982
        %v6014 = vpack.c.b16 %v5985, %v5984
        %v6015 = vpack.c.b16 %v5987, %v5986
        %v6016 = vpack.c.b16 %v5989, %v5988
        %v6017 = vpack.c.b16 %v5991, %v5990
        %v6018 = vpack.c.b16 %v5993, %v5992
        %v6019 = vpack.c.b16 %v5995, %v5994
        %v6020 = vpack.c.b16 %v5997, %v5996
        %v6021 = vpack.c.b16 %v5999, %v5998
        %v6022 = vpack.c.b16 %v6001, %v6000
        %v6023 = vpack.c.b16 %v6003, %v6002
        %v6024 = vpack.c.b16 %v6005, %v6004
        %v6025 = vpack.c.b16 %v6007, %v6006
        %v6026 = vpack.c.b16 %v6009, %v6008
        %v6027 = vpack.c.b16 %v6011, %v6010
        %6044 = vmatprep.subr.bf16.mxu0 0
        %6045 = vmatpush1.bf16.msra.mxu0 %v6012
        %6046 = vmatprep.subr.bf16.mxu0 0
        %6047 = vmatpush1.bf16.msra.mxu0 %v6013
        %6048 = vmatprep.subr.bf16.mxu0 0
        %6049 = vmatpush1.bf16.msra.mxu0 %v6014
        %6050 = vmatprep.subr.bf16.mxu0 0
        %6051 = vmatpush1.bf16.msra.mxu0 %v6015
        %6052 = vmatprep.subr.bf16.mxu0 0
        %6053 = vmatpush1.bf16.msra.mxu0 %v6016
        %6054 = vmatprep.subr.bf16.mxu0 0
        %6055 = vmatpush1.bf16.msra.mxu0 %v6017
        %6056 = vmatprep.subr.bf16.mxu0 0
        %6057 = vmatpush1.bf16.msra.mxu0 %v6018
        %6058 = vmatprep.subr.bf16.mxu0 0
        %6059 = vmatpush1.bf16.msra.mxu0 %v6019
        %6060 = vmatprep.subr.bf16.mxu0 0
        %6061 = vmatpush1.bf16.msra.mxu0 %v6020
        %6062 = vmatprep.subr.bf16.mxu0 0
        %6063 = vmatpush1.bf16.msra.mxu0 %v6021
        %6064 = vmatprep.subr.bf16.mxu0 0
        %6065 = vmatpush1.bf16.msra.mxu0 %v6022
        %6066 = vmatprep.subr.bf16.mxu0 0
        %6067 = vmatpush1.bf16.msra.mxu0 %v6023
        %6068 = vmatprep.subr.bf16.mxu0 0
        %6069 = vmatpush1.bf16.msra.mxu0 %v6024
        %6070 = vmatprep.subr.bf16.mxu0 0
        %6071 = vmatpush1.bf16.msra.mxu0 %v6025
        %6072 = vmatprep.subr.bf16.mxu0 0
        %6073 = vmatpush1.bf16.msra.mxu0 %v6026
        %6074 = vmatprep.subr.bf16.mxu0 0
        %6075 = vmatpush1.bf16.msra.mxu0 %v6027
        %6076 = vmatprep.mubr.bf16.mxu0 %v5913
        %6077 = vmatmul.mubr.bf16.gmra.mrb[0].mxu0 %v5912
        %v6078 = vpop.f32.mrb[0].mxu0
        %v6079 = vadd.f32 %v5947, %v6078
        %v6080 = vpop.f32.mrb[0].mxu0
        %v6081 = vpop.f32.mrb[0].mxu0
        %v6082 = vpop.f32.mrb[0].mxu0
        %6083 = vdwg.mxu0
        %v6084 = vmax.f32 %v6079, 0.0
        %v6085 = vpack.c.bf16 %v6084, %v6084
        %v6086 = vld [vmem:[#allocation4 + $0x728] sm:$0xf]
        %v6087 = vld [vmem:[#allocation4 + $0x730] sm:$0xf]
        %v6088 = vld [vmem:[#allocation4 + $0x738] sm:$0xf]
        %v6089 = vld [vmem:[#allocation4 + $0x740] sm:$0xf]
        %v6090 = vld [vmem:[#allocation4 + $0x748] sm:$0xf]
        %v6091 = vld [vmem:[#allocation4 + $0x750] sm:$0xf]
        %v6092 = vld [vmem:[#allocation4 + $0x758] sm:$0xf]
        %v6093 = vld [vmem:[#allocation4 + $0x760] sm:$0xf]
        %v6094 = vld [vmem:[#allocation4 + $0x768] sm:$0xf]
        %v6095 = vld [vmem:[#allocation4 + $0x770] sm:$0xf]
        %v6096 = vld [vmem:[#allocation4 + $0x778] sm:$0xf]
        %v6097 = vld [vmem:[#allocation4 + $0x780] sm:$0xf]
        %v6098 = vld [vmem:[#allocation4 + $0x788] sm:$0xf]
        %v6099 = vld [vmem:[#allocation4 + $0x790] sm:$0xf]
        %v6100 = vld [vmem:[#allocation4 + $0x798] sm:$0xf]
        %v6101 = vld [vmem:[#allocation4 + $0x7a0] sm:$0xf]
        %v6102 = vld [vmem:[#allocation4 + $0x7a8] sm:$0x1]
        %v6103 = vunpack.c.l.bf16 %v6102
        %v6120 = vunpack.c.l.b16 %v6086
        %v6121 = vunpack.c.l.b16 %v6087
        %v6122 = vunpack.c.l.b16 %v6088
        %v6123 = vunpack.c.l.b16 %v6089
        %v6124 = vunpack.c.l.b16 %v6090
        %v6125 = vunpack.c.l.b16 %v6091
        %v6126 = vunpack.c.l.b16 %v6092
        %v6127 = vunpack.c.l.b16 %v6093
        %v6128 = vunpack.c.l.b16 %v6094
        %v6129 = vunpack.c.l.b16 %v6095
        %v6130 = vunpack.c.l.b16 %v6096
        %v6131 = vunpack.c.l.b16 %v6097
        %v6132 = vunpack.c.l.b16 %v6098
        %v6133 = vunpack.c.l.b16 %v6099
        %v6134 = vunpack.c.l.b16 %v6100
        %v6135 = vunpack.c.l.b16 %v6101
        %v6136 = vpack.c.b16 %v6121, %v6120
        %v6137 = vpack.c.b16 %v6123, %v6122
        %v6138 = vpack.c.b16 %v6125, %v6124
        %v6139 = vpack.c.b16 %v6127, %v6126
        %v6140 = vpack.c.b16 %v6129, %v6128
        %v6141 = vpack.c.b16 %v6131, %v6130
        %v6142 = vpack.c.b16 %v6133, %v6132
        %v6143 = vpack.c.b16 %v6135, %v6134
        %6152 = vmatprep.subr.bf16.mxu0 0
        %6153 = vmatpush1.bf16.msra.mxu0 %v6136
        %6154 = vmatprep.subr.bf16.mxu0 0
        %6155 = vmatpush1.bf16.msra.mxu0 %v6137
        %6156 = vmatprep.subr.bf16.mxu0 0
        %6157 = vmatpush1.bf16.msra.mxu0 %v6138
        %6158 = vmatprep.subr.bf16.mxu0 0
        %6159 = vmatpush1.bf16.msra.mxu0 %v6139
        %6160 = vmatprep.subr.bf16.mxu0 0
        %6161 = vmatpush1.bf16.msra.mxu0 %v6140
        %6162 = vmatprep.subr.bf16.mxu0 0
        %6163 = vmatpush1.bf16.msra.mxu0 %v6141
        %6164 = vmatprep.subr.bf16.mxu0 0
        %6165 = vmatpush1.bf16.msra.mxu0 %v6142
        %6166 = vmatprep.subr.bf16.mxu0 0
        %6167 = vmatpush1.bf16.msra.mxu0 %v6143
        %6168 = vmatprep.subr.bf16.mxu0 0
        %6169 = vmatpush1.bf16.msra.mxu0 0
        %6170 = vmatprep.subr.bf16.mxu0 0
        %6171 = vmatpush1.bf16.msra.mxu0 0
        %6172 = vmatprep.subr.bf16.mxu0 0
        %6173 = vmatpush1.bf16.msra.mxu0 0
        %6174 = vmatprep.subr.bf16.mxu0 0
        %6175 = vmatpush1.bf16.msra.mxu0 0
        %6176 = vmatprep.subr.bf16.mxu0 0
        %6177 = vmatpush1.bf16.msra.mxu0 0
        %6178 = vmatprep.subr.bf16.mxu0 0
        %6179 = vmatpush1.bf16.msra.mxu0 0
        %6180 = vmatprep.subr.bf16.mxu0 0
        %6181 = vmatpush1.bf16.msra.mxu0 0
        %6182 = vmatprep.subr.bf16.mxu0 0
        %6183 = vmatpush1.bf16.msra.mxu0 0
        %6184 = vmatprep.mubr.bf16.mxu0 0
        %6185 = vmatmul.mubr.bf16.gmra.mrb[0].mxu0 %v6085
        %v6186 = vpop.f32.mrb[0].mxu0
        %v6187 = vadd.f32 %v6103, %v6186
        %v6188 = vpop.f32.mrb[0].mxu0
        %v6189 = vpop.f32.mrb[0].mxu0
        %v6190 = vpop.f32.mrb[0].mxu0
        %6191 = vdwg.mxu0
        %v6192 = vlaneseq
        %v6193 = vshrl.u32 %v6192, 7
        %v6194 = vsub.s32 0, %v6193
        %v6195 = vrot.slane %v6187, %v6194
        %6196 = vst [vmem:[%s241] sm:$0xff] %v6195
        %p6197 = scmp.lt.s32.totalorder %s17, 7
        %s6198 = scalar_select %p6197, %s17, 7
        %s6199 = smul.addr %s6198, 8
        %s6200 = scalar_lea.vmem %s4, %s6199
        // Predicated region
        $region49: #{forward.1} parent=35 // pred_check
          %p6201 = pneg %p124
        $region50: #{forward.1} parent=35 // pred_check_branch
          %6203 = sbr.rel (%p6201) target = $region52
        $region51: #{forward.1} parent=35 // pred_region
          _
        $region52: #{forward.1} parent=35 // pred_fallthru
          _
      $region36: #{forward.1} parent=5 // pred_fallthru
        _
      %p6204 = scmp.le.s32.totalorder 2, %s12
      // Predicated region
      $region53: #{forward.1} parent=5 // pred_check
        %p6205 = pneg %p6204
      $region54: #{forward.1} parent=5 // pred_check_branch
        %6207 = sbr.rel (%p6205) target = $region56
      $region55: #{forward.1} parent=5 // pred_region
        %s6208 = ssub.s32 %s12, 2
        // Predicated region
        $region57: #{forward.1} parent=55 // pred_check
          %p6209 = pneg %p130
        $region58: #{forward.1} parent=55 // pred_check_branch
          %6211 = sbr.rel (%p6209) target = $region60
        $region59: #{forward.1} parent=55 // pred_region
          %p6212 = scmp.lt.s32.totalorder %s18, 7
          %s6213 = scalar_select %p6212, %s18, 7
          %s6214 = smul.addr %s6213, 8
          %s6215 = scalar_lea.vmem %s4, %s6214
        $region60: #{forward.1} parent=55 // pred_fallthru
          _
      $region56: #{forward.1} parent=5 // pred_fallthru
        _
    $region6: #{forward.1} parent=1 // loop_footer
      %s16 = sadd.s32 1, %s12
    $region7: #{forward.1} parent=1 // loop_footer_branch
      %11 = sbr.rel target = $region3
    $region8: #{forward.1} parent=1 // loop_exit
      _
    %6216 = vsyncpa [#allocation3], 1
    %s6217 = scalar_lea.sflag [#allocation3], 1
    %6218 = vsyncpa %s6217, 1
    %6219 = vsyncpa [#allocation5], 1

</llo_original>
